<compile_context>
chip_gen: v7x
topology: tpu7x:2x2x1
jax: 0.10.0
libtpu: 0.0.40
codegen_flags: <defaults>
</compile_context>

<pallas_src>
import functools

import jax
import jax.numpy as jnp
from jax import lax
from jax.experimental import pallas as pl
from jax.experimental.pallas import tpu as pltpu

H = 51                 # true hidden size of the LSTM cells
HP = 64                # per-gate padded hidden size (sublane/lane aligned)
GATE_ORDER = (0, 1, 3, 2)   # PyTorch [i, f, g, o] -> kernel [i, f, o, g]


# --------------------------------------------------------------------------- #
# Kernel
# --------------------------------------------------------------------------- #
def _sequence_kernel(T, total, Tpad,
                     g1x_ref, wrec_ref, wih2t_ref,
                     wih1_ref, b1_ref, b2_ref, wlin_ref, blin_ref,
                     out_ref):
    """Runs the whole recurrence (T teacher steps + (total - T) feedback steps).

    g1x_ref   : (T, N_pad, 4*HP)  precomputed x_t * w_ih1 + b1 per teacher step
    wrec_ref  : (2*HP, 8*HP)      block-diag [[whh1^T, 0], [0, whh2^T]]
    wih2t_ref : (HP, 4*HP)        w_ih2^T (padded)
    wih1_ref  : (1, 4*HP)         w_ih1 row (for feedback steps)
    b1_ref    : (1, 4*HP)         b_ih1 + b_hh1 (for feedback steps)
    b2_ref    : (1, 4*HP)         b_ih2 + b_hh2
    wlin_ref  : (1, HP)           linear weight row
    blin_ref  : (1, 1)            linear bias
    out_ref   : (N_pad, Tpad)     predictions, batch on sublanes, time on lanes
    """
    n_pad = out_ref.shape[0]

    # ---- hoisted loop-invariant loads / broadcasts -------------------------
    wih1 = wih1_ref[...]                                        # (1, 4HP)
    b1 = jnp.broadcast_to(b1_ref[...], (n_pad, 4 * HP))         # (N_pad, 4HP)
    b2 = jnp.broadcast_to(b2_ref[...], (n_pad, 4 * HP))         # (N_pad, 4HP)
    wlin = wlin_ref[...]                                        # (1, HP)
    blin = blin_ref[...]                                        # (1, 1)
    lane_t = lax.broadcasted_iota(jnp.int32, (1, Tpad), 1)      # output lane ids

    def lstm_cell(gates, c):
        # gate order is [i | f | o | g]: one sigmoid slab + one tanh slab.
        sfo = jax.nn.sigmoid(gates[:, :3 * HP])                 # (N_pad, 3HP)
        g = jnp.tanh(gates[:, 3 * HP:])                         # (N_pad, HP)
        i = sfo[:, :HP]
        f = sfo[:, HP:2 * HP]
        o = sfo[:, 2 * HP:]
        c_new = f * c + i * g
        h_new = o * jnp.tanh(c_new)
        return h_new, c_new

    def step(hh, c1, c2, g1_in):
        # One fused recurrent matmul for both cells (block-diagonal weights):
        #   [h1 | h2] (N_pad, 2HP) @ (2HP, 8HP) -> [gates1_rec | gates2_rec]
        rec = jnp.dot(hh, wrec_ref[...], preferred_element_type=jnp.float32)
        h1, c1 = lstm_cell(g1_in + rec[:, :4 * HP], c1)
        g2 = (jnp.dot(h1, wih2t_ref[...], preferred_element_type=jnp.float32)
              + rec[:, 4 * HP:] + b2)
        h2, c2 = lstm_cell(g2, c2)
        hh = jnp.concatenate([h1, h2], axis=1)                  # (N_pad, 2HP)
        # Linear(51 -> 1) without an MXU round-trip: VPU mul + XLU lane-reduce.
        y = jnp.sum(h2 * wlin, axis=1, keepdims=True) + blin    # (N_pad, 1)
        return hh, c1, c2, y

    def teacher_body(t, carry):
        hh, c1, c2, _, y_acc = carry
        hh, c1, c2, y = step(hh, c1, c2, g1x_ref[t])
        y_acc = jnp.where(lane_t == t, y, y_acc)
        return hh, c1, c2, y, y_acc

    def feedback_body(t, carry):
        hh, c1, c2, y_prev, y_acc = carry
        g1_in = y_prev * wih1 + b1                              # (N_pad, 4HP)
        hh, c1, c2, y = step(hh, c1, c2, g1_in)
        y_acc = jnp.where(lane_t == t, y, y_acc)
        return hh, c1, c2, y, y_acc

    carry = (jnp.zeros((n_pad, 2 * HP), jnp.float32),   # [h1 | h2]
             jnp.zeros((n_pad, HP), jnp.float32),        # c1
             jnp.zeros((n_pad, HP), jnp.float32),        # c2
             jnp.zeros((n_pad, 1), jnp.float32),         # last prediction
             jnp.zeros((n_pad, Tpad), jnp.float32))      # output accumulator

    unroll = total <= 32   # short demo rollouts: give LLO full visibility
    carry = lax.fori_loop(0, T, teacher_body, carry, unroll=unroll)
    carry = lax.fori_loop(T, total, feedback_body, carry, unroll=unroll)

    out_ref[...] = carry[4]                                     # single lane-dense store


# --------------------------------------------------------------------------- #
# Parameter construction (deterministic, PyTorch-shaped) + packing helpers
# --------------------------------------------------------------------------- #
def init_params(key):
    """PyTorch-default-style init: U(-1/sqrt(H), 1/sqrt(H)), float32."""
    k = 1.0 / jnp.sqrt(jnp.float32(H))
    names_shapes = [
        ("w_ih1", (4 * H, 1)), ("w_hh1", (4 * H, H)),
        ("b_ih1", (4 * H,)), ("b_hh1", (4 * H,)),
        ("w_ih2", (4 * H, H)), ("w_hh2", (4 * H, H)),
        ("b_ih2", (4 * H,)), ("b_hh2", (4 * H,)),
        ("w_lin", (1, H)), ("b_lin", (1,)),
    ]
    keys = jax.random.split(key, len(names_shapes))
    return {n: jax.random.uniform(kk, s, jnp.float32, -k, k)
            for kk, (n, s) in zip(keys, names_shapes)}


def _gate_weight_T(w, in_pad):
    """PyTorch (4H, in_dim) gate-stacked weight -> transposed (in_pad, 4*HP).

    Per-gate zero padded; gate order remapped [i,f,g,o] -> [i,f,o,g] so the
    padded lanes / padded input rows contribute exactly zero.
    """
    in_dim = w.shape[1]
    w4 = w.reshape(4, H, in_dim)[jnp.array(GATE_ORDER)]          # (4, H, in)
    w4 = jnp.pad(w4, ((0, 0), (0, HP - H), (0, in_pad - in_dim)))  # (4, HP, in_pad)
    return jnp.transpose(w4, (2, 0, 1)).reshape(in_pad, 4 * HP)


def _gate_bias(b):
    """(4H,) -> (1, 4*HP), reordered to [i,f,o,g] and zero padded."""
    b4 = b.reshape(4, H)[jnp.array(GATE_ORDER)]
    b4 = jnp.pad(b4, ((0, 0), (0, HP - H)))
    return b4.reshape(1, 4 * HP)


def pack_params(p):
    whh1t = _gate_weight_T(p["w_hh1"], HP)                       # (HP, 4HP)
    whh2t = _gate_weight_T(p["w_hh2"], HP)                       # (HP, 4HP)
    z = jnp.zeros((HP, 4 * HP), jnp.float32)
    wrec = jnp.concatenate(
        [jnp.concatenate([whh1t, z], axis=1),
         jnp.concatenate([z, whh2t], axis=1)], axis=0)           # (2HP, 8HP)
    return dict(
        wrec=wrec,
        wih2t=_gate_weight_T(p["w_ih2"], HP),                    # (HP, 4HP)
        wih1=_gate_weight_T(p["w_ih1"], 1),                      # (1, 4HP)
        b1=_gate_bias(p["b_ih1"] + p["b_hh1"]),                  # (1, 4HP)
        b2=_gate_bias(p["b_ih2"] + p["b_hh2"]),                  # (1, 4HP)
        wlin=jnp.pad(p["w_lin"], ((0, 0), (0, HP - H))),         # (1, HP)
        blin=p["b_lin"].reshape(1, 1),                           # (1, 1)
    )


def _round_up(v, m):
    return (v + m - 1) // m * m


# --------------------------------------------------------------------------- #
# Wrapper
# --------------------------------------------------------------------------- #
@functools.partial(jax.jit, static_argnames=("future",))
def sequence_forward(x, params, future=0):
    """x: (N, T) float32 -> (N, T + future) float32 (matches PyTorch forward)."""
    N, T = x.shape
    total = T + future
    n_pad = _round_up(max(N, 1), 8)       # batch on sublanes
    t_pad = _round_up(total, 128)         # output time axis on lanes

    pk = pack_params(params)
    x_pad = jnp.pad(x.astype(jnp.float32), ((0, n_pad - N), (0, 0)))   # (N_pad, T)

    # Teacher-phase input-gate contribution precomputed off the serial path:
    #   g1x[t, n, :] = x[n, t] * w_ih1_row + (b_ih1 + b_hh1)
    g1x = (x_pad.T[:, :, None] * pk["wih1"][None, :, :]
           + pk["b1"][None, :, :])                                      # (T, N_pad, 4HP)

    # TODO(synk): for large batch on v7x, add a ('parallel',) grid axis over
    # batch blocks so the serial-in-time recurrence runs on both TensorCores.
    out_pad = pl.pallas_call(
        functools.partial(_sequence_kernel, T, total, t_pad),
        out_shape=jax.ShapeDtypeStruct((n_pad, t_pad), jnp.float32),
        in_specs=[pl.BlockSpec(memory_space=pltpu.MemorySpace.VMEM)] * 8,
        out_specs=pl.BlockSpec(memory_space=pltpu.MemorySpace.VMEM),
    )(g1x, pk["wrec"], pk["wih2t"], pk["wih1"], pk["b1"], pk["b2"],
      pk["wlin"], pk["blin"])

    return out_pad[:N, :total]


# --------------------------------------------------------------------------- #
# Pure-JAX reference (mirrors the PyTorch forward) for validation
# --------------------------------------------------------------------------- #
def reference_forward(x, p, future=0):
    N, T = x.shape

    def cell(xt, h, c, w_ih, b_ih, w_hh, b_hh):
        gates = xt @ w_ih.T + b_ih + h @ w_hh.T + b_hh
        i, f, g, o = jnp.split(gates, 4, axis=1)
        i, f, o = jax.nn.sigmoid(i), jax.nn.sigmoid(f), jax.nn.sigmoid(o)
        g = jnp.tanh(g)
        c_new = f * c + i * g
        return o * jnp.tanh(c_new), c_new

    h1 = c1 = h2 = c2 = jnp.zeros((N, H), jnp.float32)
    outs, out = [], None
    for t in range(T + future):
        xt = x[:, t:t + 1] if t < T else out
        h1, c1 = cell(xt, h1, c1, p["w_ih1"], p["b_ih1"], p["w_hh1"], p["b_hh1"])
        h2, c2 = cell(h1, h2, c2, p["w_ih2"], p["b_ih2"], p["w_hh2"], p["b_hh2"])
        out = h2 @ p["w_lin"].T + p["b_lin"]
        outs.append(out)
    return jnp.concatenate(outs, axis=1)


# --------------------------------------------------------------------------- #
if __name__ == "__main__":
    key = jax.random.PRNGKey(0)
    pkey, xkey = jax.random.split(key)

    params = init_params(pkey)

    N, T, FUTURE = 4, 8, 4
    x = jax.random.normal(xkey, (N, T), jnp.float32)

    out = sequence_forward(x, params, future=FUTURE)
    out = jax.block_until_ready(out)

    ref = reference_forward(x, params, future=FUTURE)
    assert out.shape == (N, T + FUTURE), out.shape
    assert jnp.allclose(out, ref, rtol=1e-3, atol=1e-3), (
        f"max abs err = {jnp.max(jnp.abs(out - ref))}")

    print("KERNEL_OK")
</pallas_src>

<mosaic_0001>
module attributes {stable_mosaic.version = 11 : i64} {
  func.func @_sequence_kernel(%arg0: memref<8x8x256xf32, #tpu.memory_space<vmem>>, %arg1: memref<128x512xf32, #tpu.memory_space<vmem>>, %arg2: memref<64x256xf32, #tpu.memory_space<vmem>>, %arg3: memref<1x256xf32, #tpu.memory_space<vmem>>, %arg4: memref<1x256xf32, #tpu.memory_space<vmem>>, %arg5: memref<1x256xf32, #tpu.memory_space<vmem>>, %arg6: memref<1x64xf32, #tpu.memory_space<vmem>>, %arg7: memref<1x1xf32, #tpu.memory_space<vmem>>, %arg8: memref<8x128xf32, #tpu.memory_space<vmem>>) attributes {dimension_semantics = [], scalar_prefetch = 0 : i64, scratch_operands = 0 : i64, tpu.core_type = #tpu.core_type<tc>} {
    %c0 = arith.constant 0 : index
    %c0_0 = arith.constant 0 : index
    %0 = vector.load %arg3[%c0, %c0_0] : memref<1x256xf32, #tpu.memory_space<vmem>>, vector<1x256xf32>
    %c0_1 = arith.constant 0 : index
    %c0_2 = arith.constant 0 : index
    %1 = vector.load %arg4[%c0_1, %c0_2] : memref<1x256xf32, #tpu.memory_space<vmem>>, vector<1x256xf32>
    %2 = vector.shape_cast %1 : vector<1x256xf32> to vector<1x256xf32>
    %3 = vector.broadcast %2 : vector<1x256xf32> to vector<8x256xf32>
    %c0_3 = arith.constant 0 : index
    %c0_4 = arith.constant 0 : index
    %4 = vector.load %arg5[%c0_3, %c0_4] : memref<1x256xf32, #tpu.memory_space<vmem>>, vector<1x256xf32>
    %5 = vector.shape_cast %4 : vector<1x256xf32> to vector<1x256xf32>
    %6 = vector.broadcast %5 : vector<1x256xf32> to vector<8x256xf32>
    %c0_5 = arith.constant 0 : index
    %c0_6 = arith.constant 0 : index
    %7 = vector.load %arg6[%c0_5, %c0_6] : memref<1x64xf32, #tpu.memory_space<vmem>>, vector<1x64xf32>
    %c0_7 = arith.constant 0 : index
    %c0_8 = arith.constant 0 : index
    %8 = vector.load %arg7[%c0_7, %c0_8] : memref<1x1xf32, #tpu.memory_space<vmem>>, vector<1x1xf32>
    %9 = tpu.iota {dimensions = array<i32: 1>} : vector<1x128xi32>
    %cst = arith.constant 0.000000e+00 : f32
    %10 = vector.broadcast %cst : f32 to vector<8x128xf32>
    %cst_9 = arith.constant 0.000000e+00 : f32
    %11 = vector.broadcast %cst_9 : f32 to vector<8x64xf32>
    %cst_10 = arith.constant 0.000000e+00 : f32
    %12 = vector.broadcast %cst_10 : f32 to vector<8x64xf32>
    %cst_11 = arith.constant 0.000000e+00 : f32
    %13 = vector.broadcast %cst_11 : f32 to vector<8x1xf32>
    %cst_12 = arith.constant 0.000000e+00 : f32
    %14 = vector.broadcast %cst_12 : f32 to vector<8x128xf32>
    %c0_i32 = arith.constant 0 : i32
    %15 = arith.index_cast %c0_i32 : i32 to index
    %c0_13 = arith.constant 0 : index
    %c0_14 = arith.constant 0 : index
    %16 = vector.load %arg0[%15, %c0_13, %c0_14] : memref<8x8x256xf32, #tpu.memory_space<vmem>>, vector<1x8x256xf32>
    %17 = vector.shape_cast %16 : vector<1x8x256xf32> to vector<8x256xf32>
    %c0_15 = arith.constant 0 : index
    %c0_16 = arith.constant 0 : index
    %18 = vector.load %arg1[%c0_15, %c0_16] : memref<128x512xf32, #tpu.memory_space<vmem>>, vector<128x512xf32>
    %cst_17 = arith.constant dense<0.000000e+00> : vector<8x512xf32>
    %19 = tpu.matmul %10, %18, %cst_17 {dimension_numbers = #tpu.dot_dimension_numbers<[1], [0], [0], [1], [0, 0, 1, 1], [], []>} : vector<8x128xf32>, vector<128x512xf32>, vector<8x512xf32> -> vector<8x512xf32>
    %20 = vector.extract_strided_slice %19 {offsets = [0, 0], sizes = [8, 256], strides = [1, 1]} : vector<8x512xf32> to vector<8x256xf32>
    %21 = arith.addf %17, %20 : vector<8x256xf32>
    %22 = vector.extract_strided_slice %21 {offsets = [0, 0], sizes = [8, 192], strides = [1, 1]} : vector<8x256xf32> to vector<8x192xf32>
    %23 = arith.negf %22 : vector<8x192xf32>
    %24 = math.exp %23 : vector<8x192xf32>
    %cst_18 = arith.constant 1.000000e+00 : f32
    %25 = vector.broadcast %cst_18 : f32 to vector<8x192xf32>
    %26 = arith.addf %25, %24 : vector<8x192xf32>
    %27 = arith.divf %25, %26 : vector<8x192xf32>
    %28 = vector.extract_strided_slice %21 {offsets = [0, 192], sizes = [8, 64], strides = [1, 1]} : vector<8x256xf32> to vector<8x64xf32>
    %29 = math.tanh %28 : vector<8x64xf32>
    %30 = vector.extract_strided_slice %27 {offsets = [0, 0], sizes = [8, 64], strides = [1, 1]} : vector<8x192xf32> to vector<8x64xf32>
    %31 = vector.extract_strided_slice %27 {offsets = [0, 64], sizes = [8, 64], strides = [1, 1]} : vector<8x192xf32> to vector<8x64xf32>
    %32 = vector.extract_strided_slice %27 {offsets = [0, 128], sizes = [8, 64], strides = [1, 1]} : vector<8x192xf32> to vector<8x64xf32>
    %33 = arith.mulf %31, %11 : vector<8x64xf32>
    %34 = arith.mulf %30, %29 : vector<8x64xf32>
    %35 = arith.addf %33, %34 : vector<8x64xf32>
    %36 = math.tanh %35 : vector<8x64xf32>
    %37 = arith.mulf %32, %36 : vector<8x64xf32>
    %c0_19 = arith.constant 0 : index
    %c0_20 = arith.constant 0 : index
    %38 = vector.load %arg2[%c0_19, %c0_20] : memref<64x256xf32, #tpu.memory_space<vmem>>, vector<64x256xf32>
    %cst_21 = arith.constant dense<0.000000e+00> : vector<8x256xf32>
    %39 = tpu.matmul %37, %38, %cst_21 {dimension_numbers = #tpu.dot_dimension_numbers<[1], [0], [0], [1], [0, 0, 1, 1], [], []>} : vector<8x64xf32>, vector<64x256xf32>, vector<8x256xf32> -> vector<8x256xf32>
    %40 = vector.extract_strided_slice %19 {offsets = [0, 256], sizes = [8, 256], strides = [1, 1]} : vector<8x512xf32> to vector<8x256xf32>
    %41 = arith.addf %39, %40 : vector<8x256xf32>
    %42 = arith.addf %41, %6 : vector<8x256xf32>
    %43 = vector.extract_strided_slice %42 {offsets = [0, 0], sizes = [8, 192], strides = [1, 1]} : vector<8x256xf32> to vector<8x192xf32>
    %44 = arith.negf %43 : vector<8x192xf32>
    %45 = math.exp %44 : vector<8x192xf32>
    %cst_22 = arith.constant 1.000000e+00 : f32
    %46 = vector.broadcast %cst_22 : f32 to vector<8x192xf32>
    %47 = arith.addf %46, %45 : vector<8x192xf32>
    %48 = arith.divf %46, %47 : vector<8x192xf32>
    %49 = vector.extract_strided_slice %42 {offsets = [0, 192], sizes = [8, 64], strides = [1, 1]} : vector<8x256xf32> to vector<8x64xf32>
    %50 = math.tanh %49 : vector<8x64xf32>
    %51 = vector.extract_strided_slice %48 {offsets = [0, 0], sizes = [8, 64], strides = [1, 1]} : vector<8x192xf32> to vector<8x64xf32>
    %52 = vector.extract_strided_slice %48 {offsets = [0, 64], sizes = [8, 64], strides = [1, 1]} : vector<8x192xf32> to vector<8x64xf32>
    %53 = vector.extract_strided_slice %48 {offsets = [0, 128], sizes = [8, 64], strides = [1, 1]} : vector<8x192xf32> to vector<8x64xf32>
    %54 = arith.mulf %52, %12 : vector<8x64xf32>
    %55 = arith.mulf %51, %50 : vector<8x64xf32>
    %56 = arith.addf %54, %55 : vector<8x64xf32>
    %57 = math.tanh %56 : vector<8x64xf32>
    %58 = arith.mulf %53, %57 : vector<8x64xf32>
    %59 = tpu.concatenate %37, %58 in 1 : vector<8x64xf32>, vector<8x64xf32> -> vector<8x128xf32>
    %60 = vector.broadcast %7 : vector<1x64xf32> to vector<8x64xf32>
    %61 = arith.mulf %58, %60 : vector<8x64xf32>
    %cst_23 = arith.constant dense<0.000000e+00> : vector<8xf32>
    %62 = vector.multi_reduction <add>, %61, %cst_23 [1] : vector<8x64xf32> to vector<8xf32>
    %63 = vector.shape_cast %62 : vector<8xf32> to vector<8x1xf32>
    %64 = vector.broadcast %8 : vector<1x1xf32> to vector<8x1xf32>
    %65 = arith.addf %63, %64 : vector<8x1xf32>
    %66 = vector.broadcast %c0_i32 : i32 to vector<1x128xi32>
    %67 = arith.cmpi eq, %9, %66 : vector<1x128xi32>
    %68 = vector.shape_cast %67 : vector<1x128xi1> to vector<1x128xi1>
    %69 = vector.broadcast %68 : vector<1x128xi1> to vector<8x128xi1>
    %70 = vector.shape_cast %65 : vector<8x1xf32> to vector<8x1xf32>
    %71 = vector.broadcast %70 : vector<8x1xf32> to vector<8x128xf32>
    %72 = arith.select %69, %71, %14 : vector<8x128xi1>, vector<8x128xf32>
    %c1_i32 = arith.constant 1 : i32
    %73 = arith.index_cast %c1_i32 : i32 to index
    %c0_24 = arith.constant 0 : index
    %c0_25 = arith.constant 0 : index
    %74 = vector.load %arg0[%73, %c0_24, %c0_25] : memref<8x8x256xf32, #tpu.memory_space<vmem>>, vector<1x8x256xf32>
    %75 = vector.shape_cast %74 : vector<1x8x256xf32> to vector<8x256xf32>
    %c0_26 = arith.constant 0 : index
    %c0_27 = arith.constant 0 : index
    %76 = vector.load %arg1[%c0_26, %c0_27] : memref<128x512xf32, #tpu.memory_space<vmem>>, vector<128x512xf32>
    %cst_28 = arith.constant dense<0.000000e+00> : vector<8x512xf32>
    %77 = tpu.matmul %59, %76, %cst_28 {dimension_numbers = #tpu.dot_dimension_numbers<[1], [0], [0], [1], [0, 0, 1, 1], [], []>} : vector<8x128xf32>, vector<128x512xf32>, vector<8x512xf32> -> vector<8x512xf32>
    %78 = vector.extract_strided_slice %77 {offsets = [0, 0], sizes = [8, 256], strides = [1, 1]} : vector<8x512xf32> to vector<8x256xf32>
    %79 = arith.addf %75, %78 : vector<8x256xf32>
    %80 = vector.extract_strided_slice %79 {offsets = [0, 0], sizes = [8, 192], strides = [1, 1]} : vector<8x256xf32> to vector<8x192xf32>
    %81 = arith.negf %80 : vector<8x192xf32>
    %82 = math.exp %81 : vector<8x192xf32>
    %cst_29 = arith.constant 1.000000e+00 : f32
    %83 = vector.broadcast %cst_29 : f32 to vector<8x192xf32>
    %84 = arith.addf %83, %82 : vector<8x192xf32>
    %85 = arith.divf %83, %84 : vector<8x192xf32>
    %86 = vector.extract_strided_slice %79 {offsets = [0, 192], sizes = [8, 64], strides = [1, 1]} : vector<8x256xf32> to vector<8x64xf32>
    %87 = math.tanh %86 : vector<8x64xf32>
    %88 = vector.extract_strided_slice %85 {offsets = [0, 0], sizes = [8, 64], strides = [1, 1]} : vector<8x192xf32> to vector<8x64xf32>
    %89 = vector.extract_strided_slice %85 {offsets = [0, 64], sizes = [8, 64], strides = [1, 1]} : vector<8x192xf32> to vector<8x64xf32>
    %90 = vector.extract_strided_slice %85 {offsets = [0, 128], sizes = [8, 64], strides = [1, 1]} : vector<8x192xf32> to vector<8x64xf32>
    %91 = arith.mulf %89, %35 : vector<8x64xf32>
    %92 = arith.mulf %88, %87 : vector<8x64xf32>
    %93 = arith.addf %91, %92 : vector<8x64xf32>
    %94 = math.tanh %93 : vector<8x64xf32>
    %95 = arith.mulf %90, %94 : vector<8x64xf32>
    %c0_30 = arith.constant 0 : index
    %c0_31 = arith.constant 0 : index
    %96 = vector.load %arg2[%c0_30, %c0_31] : memref<64x256xf32, #tpu.memory_space<vmem>>, vector<64x256xf32>
    %cst_32 = arith.constant dense<0.000000e+00> : vector<8x256xf32>
    %97 = tpu.matmul %95, %96, %cst_32 {dimension_numbers = #tpu.dot_dimension_numbers<[1], [0], [0], [1], [0, 0, 1, 1], [], []>} : vector<8x64xf32>, vector<64x256xf32>, vector<8x256xf32> -> vector<8x256xf32>
    %98 = vector.extract_strided_slice %77 {offsets = [0, 256], sizes = [8, 256], strides = [1, 1]} : vector<8x512xf32> to vector<8x256xf32>
    %99 = arith.addf %97, %98 : vector<8x256xf32>
    %100 = arith.addf %99, %6 : vector<8x256xf32>
    %101 = vector.extract_strided_slice %100 {offsets = [0, 0], sizes = [8, 192], strides = [1, 1]} : vector<8x256xf32> to vector<8x192xf32>
    %102 = arith.negf %101 : vector<8x192xf32>
    %103 = math.exp %102 : vector<8x192xf32>
    %cst_33 = arith.constant 1.000000e+00 : f32
    %104 = vector.broadcast %cst_33 : f32 to vector<8x192xf32>
    %105 = arith.addf %104, %103 : vector<8x192xf32>
    %106 = arith.divf %104, %105 : vector<8x192xf32>
    %107 = vector.extract_strided_slice %100 {offsets = [0, 192], sizes = [8, 64], strides = [1, 1]} : vector<8x256xf32> to vector<8x64xf32>
    %108 = math.tanh %107 : vector<8x64xf32>
    %109 = vector.extract_strided_slice %106 {offsets = [0, 0], sizes = [8, 64], strides = [1, 1]} : vector<8x192xf32> to vector<8x64xf32>
    %110 = vector.extract_strided_slice %106 {offsets = [0, 64], sizes = [8, 64], strides = [1, 1]} : vector<8x192xf32> to vector<8x64xf32>
    %111 = vector.extract_strided_slice %106 {offsets = [0, 128], sizes = [8, 64], strides = [1, 1]} : vector<8x192xf32> to vector<8x64xf32>
    %112 = arith.mulf %110, %56 : vector<8x64xf32>
    %113 = arith.mulf %109, %108 : vector<8x64xf32>
    %114 = arith.addf %112, %113 : vector<8x64xf32>
    %115 = math.tanh %114 : vector<8x64xf32>
    %116 = arith.mulf %111, %115 : vector<8x64xf32>
    %117 = tpu.concatenate %95, %116 in 1 : vector<8x64xf32>, vector<8x64xf32> -> vector<8x128xf32>
    %118 = vector.broadcast %7 : vector<1x64xf32> to vector<8x64xf32>
    %119 = arith.mulf %116, %118 : vector<8x64xf32>
    %cst_34 = arith.constant dense<0.000000e+00> : vector<8xf32>
    %120 = vector.multi_reduction <add>, %119, %cst_34 [1] : vector<8x64xf32> to vector<8xf32>
    %121 = vector.shape_cast %120 : vector<8xf32> to vector<8x1xf32>
    %122 = vector.broadcast %8 : vector<1x1xf32> to vector<8x1xf32>
    %123 = arith.addf %121, %122 : vector<8x1xf32>
    %124 = vector.broadcast %c1_i32 : i32 to vector<1x128xi32>
    %125 = arith.cmpi eq, %9, %124 : vector<1x128xi32>
    %126 = vector.shape_cast %125 : vector<1x128xi1> to vector<1x128xi1>
    %127 = vector.broadcast %126 : vector<1x128xi1> to vector<8x128xi1>
    %128 = vector.shape_cast %123 : vector<8x1xf32> to vector<8x1xf32>
    %129 = vector.broadcast %128 : vector<8x1xf32> to vector<8x128xf32>
    %130 = arith.select %127, %129, %72 : vector<8x128xi1>, vector<8x128xf32>
    %c2_i32 = arith.constant 2 : i32
    %131 = arith.index_cast %c2_i32 : i32 to index
    %c0_35 = arith.constant 0 : index
    %c0_36 = arith.constant 0 : index
    %132 = vector.load %arg0[%131, %c0_35, %c0_36] : memref<8x8x256xf32, #tpu.memory_space<vmem>>, vector<1x8x256xf32>
    %133 = vector.shape_cast %132 : vector<1x8x256xf32> to vector<8x256xf32>
    %c0_37 = arith.constant 0 : index
    %c0_38 = arith.constant 0 : index
    %134 = vector.load %arg1[%c0_37, %c0_38] : memref<128x512xf32, #tpu.memory_space<vmem>>, vector<128x512xf32>
    %cst_39 = arith.constant dense<0.000000e+00> : vector<8x512xf32>
    %135 = tpu.matmul %117, %134, %cst_39 {dimension_numbers = #tpu.dot_dimension_numbers<[1], [0], [0], [1], [0, 0, 1, 1], [], []>} : vector<8x128xf32>, vector<128x512xf32>, vector<8x512xf32> -> vector<8x512xf32>
    %136 = vector.extract_strided_slice %135 {offsets = [0, 0], sizes = [8, 256], strides = [1, 1]} : vector<8x512xf32> to vector<8x256xf32>
    %137 = arith.addf %133, %136 : vector<8x256xf32>
    %138 = vector.extract_strided_slice %137 {offsets = [0, 0], sizes = [8, 192], strides = [1, 1]} : vector<8x256xf32> to vector<8x192xf32>
    %139 = arith.negf %138 : vector<8x192xf32>
    %140 = math.exp %139 : vector<8x192xf32>
    %cst_40 = arith.constant 1.000000e+00 : f32
    %141 = vector.broadcast %cst_40 : f32 to vector<8x192xf32>
    %142 = arith.addf %141, %140 : vector<8x192xf32>
    %143 = arith.divf %141, %142 : vector<8x192xf32>
    %144 = vector.extract_strided_slice %137 {offsets = [0, 192], sizes = [8, 64], strides = [1, 1]} : vector<8x256xf32> to vector<8x64xf32>
    %145 = math.tanh %144 : vector<8x64xf32>
    %146 = vector.extract_strided_slice %143 {offsets = [0, 0], sizes = [8, 64], strides = [1, 1]} : vector<8x192xf32> to vector<8x64xf32>
    %147 = vector.extract_strided_slice %143 {offsets = [0, 64], sizes = [8, 64], strides = [1, 1]} : vector<8x192xf32> to vector<8x64xf32>
    %148 = vector.extract_strided_slice %143 {offsets = [0, 128], sizes = [8, 64], strides = [1, 1]} : vector<8x192xf32> to vector<8x64xf32>
    %149 = arith.mulf %147, %93 : vector<8x64xf32>
    %150 = arith.mulf %146, %145 : vector<8x64xf32>
    %151 = arith.addf %149, %150 : vector<8x64xf32>
    %152 = math.tanh %151 : vector<8x64xf32>
    %153 = arith.mulf %148, %152 : vector<8x64xf32>
    %c0_41 = arith.constant 0 : index
    %c0_42 = arith.constant 0 : index
    %154 = vector.load %arg2[%c0_41, %c0_42] : memref<64x256xf32, #tpu.memory_space<vmem>>, vector<64x256xf32>
    %cst_43 = arith.constant dense<0.000000e+00> : vector<8x256xf32>
    %155 = tpu.matmul %153, %154, %cst_43 {dimension_numbers = #tpu.dot_dimension_numbers<[1], [0], [0], [1], [0, 0, 1, 1], [], []>} : vector<8x64xf32>, vector<64x256xf32>, vector<8x256xf32> -> vector<8x256xf32>
    %156 = vector.extract_strided_slice %135 {offsets = [0, 256], sizes = [8, 256], strides = [1, 1]} : vector<8x512xf32> to vector<8x256xf32>
    %157 = arith.addf %155, %156 : vector<8x256xf32>
    %158 = arith.addf %157, %6 : vector<8x256xf32>
    %159 = vector.extract_strided_slice %158 {offsets = [0, 0], sizes = [8, 192], strides = [1, 1]} : vector<8x256xf32> to vector<8x192xf32>
    %160 = arith.negf %159 : vector<8x192xf32>
    %161 = math.exp %160 : vector<8x192xf32>
    %cst_44 = arith.constant 1.000000e+00 : f32
    %162 = vector.broadcast %cst_44 : f32 to vector<8x192xf32>
    %163 = arith.addf %162, %161 : vector<8x192xf32>
    %164 = arith.divf %162, %163 : vector<8x192xf32>
    %165 = vector.extract_strided_slice %158 {offsets = [0, 192], sizes = [8, 64], strides = [1, 1]} : vector<8x256xf32> to vector<8x64xf32>
    %166 = math.tanh %165 : vector<8x64xf32>
    %167 = vector.extract_strided_slice %164 {offsets = [0, 0], sizes = [8, 64], strides = [1, 1]} : vector<8x192xf32> to vector<8x64xf32>
    %168 = vector.extract_strided_slice %164 {offsets = [0, 64], sizes = [8, 64], strides = [1, 1]} : vector<8x192xf32> to vector<8x64xf32>
    %169 = vector.extract_strided_slice %164 {offsets = [0, 128], sizes = [8, 64], strides = [1, 1]} : vector<8x192xf32> to vector<8x64xf32>
    %170 = arith.mulf %168, %114 : vector<8x64xf32>
    %171 = arith.mulf %167, %166 : vector<8x64xf32>
    %172 = arith.addf %170, %171 : vector<8x64xf32>
    %173 = math.tanh %172 : vector<8x64xf32>
    %174 = arith.mulf %169, %173 : vector<8x64xf32>
    %175 = tpu.concatenate %153, %174 in 1 : vector<8x64xf32>, vector<8x64xf32> -> vector<8x128xf32>
    %176 = vector.broadcast %7 : vector<1x64xf32> to vector<8x64xf32>
    %177 = arith.mulf %174, %176 : vector<8x64xf32>
    %cst_45 = arith.constant dense<0.000000e+00> : vector<8xf32>
    %178 = vector.multi_reduction <add>, %177, %cst_45 [1] : vector<8x64xf32> to vector<8xf32>
    %179 = vector.shape_cast %178 : vector<8xf32> to vector<8x1xf32>
    %180 = vector.broadcast %8 : vector<1x1xf32> to vector<8x1xf32>
    %181 = arith.addf %179, %180 : vector<8x1xf32>
    %182 = vector.broadcast %c2_i32 : i32 to vector<1x128xi32>
    %183 = arith.cmpi eq, %9, %182 : vector<1x128xi32>
    %184 = vector.shape_cast %183 : vector<1x128xi1> to vector<1x128xi1>
    %185 = vector.broadcast %184 : vector<1x128xi1> to vector<8x128xi1>
    %186 = vector.shape_cast %181 : vector<8x1xf32> to vector<8x1xf32>
    %187 = vector.broadcast %186 : vector<8x1xf32> to vector<8x128xf32>
    %188 = arith.select %185, %187, %130 : vector<8x128xi1>, vector<8x128xf32>
    %c3_i32 = arith.constant 3 : i32
    %189 = arith.index_cast %c3_i32 : i32 to index
    %c0_46 = arith.constant 0 : index
    %c0_47 = arith.constant 0 : index
    %190 = vector.load %arg0[%189, %c0_46, %c0_47] : memref<8x8x256xf32, #tpu.memory_space<vmem>>, vector<1x8x256xf32>
    %191 = vector.shape_cast %190 : vector<1x8x256xf32> to vector<8x256xf32>
    %c0_48 = arith.constant 0 : index
    %c0_49 = arith.constant 0 : index
    %192 = vector.load %arg1[%c0_48, %c0_49] : memref<128x512xf32, #tpu.memory_space<vmem>>, vector<128x512xf32>
    %cst_50 = arith.constant dense<0.000000e+00> : vector<8x512xf32>
    %193 = tpu.matmul %175, %192, %cst_50 {dimension_numbers = #tpu.dot_dimension_numbers<[1], [0], [0], [1], [0, 0, 1, 1], [], []>} : vector<8x128xf32>, vector<128x512xf32>, vector<8x512xf32> -> vector<8x512xf32>
    %194 = vector.extract_strided_slice %193 {offsets = [0, 0], sizes = [8, 256], strides = [1, 1]} : vector<8x512xf32> to vector<8x256xf32>
    %195 = arith.addf %191, %194 : vector<8x256xf32>
    %196 = vector.extract_strided_slice %195 {offsets = [0, 0], sizes = [8, 192], strides = [1, 1]} : vector<8x256xf32> to vector<8x192xf32>
    %197 = arith.negf %196 : vector<8x192xf32>
    %198 = math.exp %197 : vector<8x192xf32>
    %cst_51 = arith.constant 1.000000e+00 : f32
    %199 = vector.broadcast %cst_51 : f32 to vector<8x192xf32>
    %200 = arith.addf %199, %198 : vector<8x192xf32>
    %201 = arith.divf %199, %200 : vector<8x192xf32>
    %202 = vector.extract_strided_slice %195 {offsets = [0, 192], sizes = [8, 64], strides = [1, 1]} : vector<8x256xf32> to vector<8x64xf32>
    %203 = math.tanh %202 : vector<8x64xf32>
    %204 = vector.extract_strided_slice %201 {offsets = [0, 0], sizes = [8, 64], strides = [1, 1]} : vector<8x192xf32> to vector<8x64xf32>
    %205 = vector.extract_strided_slice %201 {offsets = [0, 64], sizes = [8, 64], strides = [1, 1]} : vector<8x192xf32> to vector<8x64xf32>
    %206 = vector.extract_strided_slice %201 {offsets = [0, 128], sizes = [8, 64], strides = [1, 1]} : vector<8x192xf32> to vector<8x64xf32>
    %207 = arith.mulf %205, %151 : vector<8x64xf32>
    %208 = arith.mulf %204, %203 : vector<8x64xf32>
    %209 = arith.addf %207, %208 : vector<8x64xf32>
    %210 = math.tanh %209 : vector<8x64xf32>
    %211 = arith.mulf %206, %210 : vector<8x64xf32>
    %c0_52 = arith.constant 0 : index
    %c0_53 = arith.constant 0 : index
    %212 = vector.load %arg2[%c0_52, %c0_53] : memref<64x256xf32, #tpu.memory_space<vmem>>, vector<64x256xf32>
    %cst_54 = arith.constant dense<0.000000e+00> : vector<8x256xf32>
    %213 = tpu.matmul %211, %212, %cst_54 {dimension_numbers = #tpu.dot_dimension_numbers<[1], [0], [0], [1], [0, 0, 1, 1], [], []>} : vector<8x64xf32>, vector<64x256xf32>, vector<8x256xf32> -> vector<8x256xf32>
    %214 = vector.extract_strided_slice %193 {offsets = [0, 256], sizes = [8, 256], strides = [1, 1]} : vector<8x512xf32> to vector<8x256xf32>
    %215 = arith.addf %213, %214 : vector<8x256xf32>
    %216 = arith.addf %215, %6 : vector<8x256xf32>
    %217 = vector.extract_strided_slice %216 {offsets = [0, 0], sizes = [8, 192], strides = [1, 1]} : vector<8x256xf32> to vector<8x192xf32>
    %218 = arith.negf %217 : vector<8x192xf32>
    %219 = math.exp %218 : vector<8x192xf32>
    %cst_55 = arith.constant 1.000000e+00 : f32
    %220 = vector.broadcast %cst_55 : f32 to vector<8x192xf32>
    %221 = arith.addf %220, %219 : vector<8x192xf32>
    %222 = arith.divf %220, %221 : vector<8x192xf32>
    %223 = vector.extract_strided_slice %216 {offsets = [0, 192], sizes = [8, 64], strides = [1, 1]} : vector<8x256xf32> to vector<8x64xf32>
    %224 = math.tanh %223 : vector<8x64xf32>
    %225 = vector.extract_strided_slice %222 {offsets = [0, 0], sizes = [8, 64], strides = [1, 1]} : vector<8x192xf32> to vector<8x64xf32>
    %226 = vector.extract_strided_slice %222 {offsets = [0, 64], sizes = [8, 64], strides = [1, 1]} : vector<8x192xf32> to vector<8x64xf32>
    %227 = vector.extract_strided_slice %222 {offsets = [0, 128], sizes = [8, 64], strides = [1, 1]} : vector<8x192xf32> to vector<8x64xf32>
    %228 = arith.mulf %226, %172 : vector<8x64xf32>
    %229 = arith.mulf %225, %224 : vector<8x64xf32>
    %230 = arith.addf %228, %229 : vector<8x64xf32>
    %231 = math.tanh %230 : vector<8x64xf32>
    %232 = arith.mulf %227, %231 : vector<8x64xf32>
    %233 = tpu.concatenate %211, %232 in 1 : vector<8x64xf32>, vector<8x64xf32> -> vector<8x128xf32>
    %234 = vector.broadcast %7 : vector<1x64xf32> to vector<8x64xf32>
    %235 = arith.mulf %232, %234 : vector<8x64xf32>
    %cst_56 = arith.constant dense<0.000000e+00> : vector<8xf32>
    %236 = vector.multi_reduction <add>, %235, %cst_56 [1] : vector<8x64xf32> to vector<8xf32>
    %237 = vector.shape_cast %236 : vector<8xf32> to vector<8x1xf32>
    %238 = vector.broadcast %8 : vector<1x1xf32> to vector<8x1xf32>
    %239 = arith.addf %237, %238 : vector<8x1xf32>
    %240 = vector.broadcast %c3_i32 : i32 to vector<1x128xi32>
    %241 = arith.cmpi eq, %9, %240 : vector<1x128xi32>
    %242 = vector.shape_cast %241 : vector<1x128xi1> to vector<1x128xi1>
    %243 = vector.broadcast %242 : vector<1x128xi1> to vector<8x128xi1>
    %244 = vector.shape_cast %239 : vector<8x1xf32> to vector<8x1xf32>
    %245 = vector.broadcast %244 : vector<8x1xf32> to vector<8x128xf32>
    %246 = arith.select %243, %245, %188 : vector<8x128xi1>, vector<8x128xf32>
    %c4_i32 = arith.constant 4 : i32
    %247 = arith.index_cast %c4_i32 : i32 to index
    %c0_57 = arith.constant 0 : index
    %c0_58 = arith.constant 0 : index
    %248 = vector.load %arg0[%247, %c0_57, %c0_58] : memref<8x8x256xf32, #tpu.memory_space<vmem>>, vector<1x8x256xf32>
    %249 = vector.shape_cast %248 : vector<1x8x256xf32> to vector<8x256xf32>
    %c0_59 = arith.constant 0 : index
    %c0_60 = arith.constant 0 : index
    %250 = vector.load %arg1[%c0_59, %c0_60] : memref<128x512xf32, #tpu.memory_space<vmem>>, vector<128x512xf32>
    %cst_61 = arith.constant dense<0.000000e+00> : vector<8x512xf32>
    %251 = tpu.matmul %233, %250, %cst_61 {dimension_numbers = #tpu.dot_dimension_numbers<[1], [0], [0], [1], [0, 0, 1, 1], [], []>} : vector<8x128xf32>, vector<128x512xf32>, vector<8x512xf32> -> vector<8x512xf32>
    %252 = vector.extract_strided_slice %251 {offsets = [0, 0], sizes = [8, 256], strides = [1, 1]} : vector<8x512xf32> to vector<8x256xf32>
    %253 = arith.addf %249, %252 : vector<8x256xf32>
    %254 = vector.extract_strided_slice %253 {offsets = [0, 0], sizes = [8, 192], strides = [1, 1]} : vector<8x256xf32> to vector<8x192xf32>
    %255 = arith.negf %254 : vector<8x192xf32>
    %256 = math.exp %255 : vector<8x192xf32>
    %cst_62 = arith.constant 1.000000e+00 : f32
    %257 = vector.broadcast %cst_62 : f32 to vector<8x192xf32>
    %258 = arith.addf %257, %256 : vector<8x192xf32>
    %259 = arith.divf %257, %258 : vector<8x192xf32>
    %260 = vector.extract_strided_slice %253 {offsets = [0, 192], sizes = [8, 64], strides = [1, 1]} : vector<8x256xf32> to vector<8x64xf32>
    %261 = math.tanh %260 : vector<8x64xf32>
    %262 = vector.extract_strided_slice %259 {offsets = [0, 0], sizes = [8, 64], strides = [1, 1]} : vector<8x192xf32> to vector<8x64xf32>
    %263 = vector.extract_strided_slice %259 {offsets = [0, 64], sizes = [8, 64], strides = [1, 1]} : vector<8x192xf32> to vector<8x64xf32>
    %264 = vector.extract_strided_slice %259 {offsets = [0, 128], sizes = [8, 64], strides = [1, 1]} : vector<8x192xf32> to vector<8x64xf32>
    %265 = arith.mulf %263, %209 : vector<8x64xf32>
    %266 = arith.mulf %262, %261 : vector<8x64xf32>
    %267 = arith.addf %265, %266 : vector<8x64xf32>
    %268 = math.tanh %267 : vector<8x64xf32>
    %269 = arith.mulf %264, %268 : vector<8x64xf32>
    %c0_63 = arith.constant 0 : index
    %c0_64 = arith.constant 0 : index
    %270 = vector.load %arg2[%c0_63, %c0_64] : memref<64x256xf32, #tpu.memory_space<vmem>>, vector<64x256xf32>
    %cst_65 = arith.constant dense<0.000000e+00> : vector<8x256xf32>
    %271 = tpu.matmul %269, %270, %cst_65 {dimension_numbers = #tpu.dot_dimension_numbers<[1], [0], [0], [1], [0, 0, 1, 1], [], []>} : vector<8x64xf32>, vector<64x256xf32>, vector<8x256xf32> -> vector<8x256xf32>
    %272 = vector.extract_strided_slice %251 {offsets = [0, 256], sizes = [8, 256], strides = [1, 1]} : vector<8x512xf32> to vector<8x256xf32>
    %273 = arith.addf %271, %272 : vector<8x256xf32>
    %274 = arith.addf %273, %6 : vector<8x256xf32>
    %275 = vector.extract_strided_slice %274 {offsets = [0, 0], sizes = [8, 192], strides = [1, 1]} : vector<8x256xf32> to vector<8x192xf32>
    %276 = arith.negf %275 : vector<8x192xf32>
    %277 = math.exp %276 : vector<8x192xf32>
    %cst_66 = arith.constant 1.000000e+00 : f32
    %278 = vector.broadcast %cst_66 : f32 to vector<8x192xf32>
    %279 = arith.addf %278, %277 : vector<8x192xf32>
    %280 = arith.divf %278, %279 : vector<8x192xf32>
    %281 = vector.extract_strided_slice %274 {offsets = [0, 192], sizes = [8, 64], strides = [1, 1]} : vector<8x256xf32> to vector<8x64xf32>
    %282 = math.tanh %281 : vector<8x64xf32>
    %283 = vector.extract_strided_slice %280 {offsets = [0, 0], sizes = [8, 64], strides = [1, 1]} : vector<8x192xf32> to vector<8x64xf32>
    %284 = vector.extract_strided_slice %280 {offsets = [0, 64], sizes = [8, 64], strides = [1, 1]} : vector<8x192xf32> to vector<8x64xf32>
    %285 = vector.extract_strided_slice %280 {offsets = [0, 128], sizes = [8, 64], strides = [1, 1]} : vector<8x192xf32> to vector<8x64xf32>
    %286 = arith.mulf %284, %230 : vector<8x64xf32>
    %287 = arith.mulf %283, %282 : vector<8x64xf32>
    %288 = arith.addf %286, %287 : vector<8x64xf32>
    %289 = math.tanh %288 : vector<8x64xf32>
    %290 = arith.mulf %285, %289 : vector<8x64xf32>
    %291 = tpu.concatenate %269, %290 in 1 : vector<8x64xf32>, vector<8x64xf32> -> vector<8x128xf32>
    %292 = vector.broadcast %7 : vector<1x64xf32> to vector<8x64xf32>
    %293 = arith.mulf %290, %292 : vector<8x64xf32>
    %cst_67 = arith.constant dense<0.000000e+00> : vector<8xf32>
    %294 = vector.multi_reduction <add>, %293, %cst_67 [1] : vector<8x64xf32> to vector<8xf32>
    %295 = vector.shape_cast %294 : vector<8xf32> to vector<8x1xf32>
    %296 = vector.broadcast %8 : vector<1x1xf32> to vector<8x1xf32>
    %297 = arith.addf %295, %296 : vector<8x1xf32>
    %298 = vector.broadcast %c4_i32 : i32 to vector<1x128xi32>
    %299 = arith.cmpi eq, %9, %298 : vector<1x128xi32>
    %300 = vector.shape_cast %299 : vector<1x128xi1> to vector<1x128xi1>
    %301 = vector.broadcast %300 : vector<1x128xi1> to vector<8x128xi1>
    %302 = vector.shape_cast %297 : vector<8x1xf32> to vector<8x1xf32>
    %303 = vector.broadcast %302 : vector<8x1xf32> to vector<8x128xf32>
    %304 = arith.select %301, %303, %246 : vector<8x128xi1>, vector<8x128xf32>
    %c5_i32 = arith.constant 5 : i32
    %305 = arith.index_cast %c5_i32 : i32 to index
    %c0_68 = arith.constant 0 : index
    %c0_69 = arith.constant 0 : index
    %306 = vector.load %arg0[%305, %c0_68, %c0_69] : memref<8x8x256xf32, #tpu.memory_space<vmem>>, vector<1x8x256xf32>
    %307 = vector.shape_cast %306 : vector<1x8x256xf32> to vector<8x256xf32>
    %c0_70 = arith.constant 0 : index
    %c0_71 = arith.constant 0 : index
    %308 = vector.load %arg1[%c0_70, %c0_71] : memref<128x512xf32, #tpu.memory_space<vmem>>, vector<128x512xf32>
    %cst_72 = arith.constant dense<0.000000e+00> : vector<8x512xf32>
    %309 = tpu.matmul %291, %308, %cst_72 {dimension_numbers = #tpu.dot_dimension_numbers<[1], [0], [0], [1], [0, 0, 1, 1], [], []>} : vector<8x128xf32>, vector<128x512xf32>, vector<8x512xf32> -> vector<8x512xf32>
    %310 = vector.extract_strided_slice %309 {offsets = [0, 0], sizes = [8, 256], strides = [1, 1]} : vector<8x512xf32> to vector<8x256xf32>
    %311 = arith.addf %307, %310 : vector<8x256xf32>
    %312 = vector.extract_strided_slice %311 {offsets = [0, 0], sizes = [8, 192], strides = [1, 1]} : vector<8x256xf32> to vector<8x192xf32>
    %313 = arith.negf %312 : vector<8x192xf32>
    %314 = math.exp %313 : vector<8x192xf32>
    %cst_73 = arith.constant 1.000000e+00 : f32
    %315 = vector.broadcast %cst_73 : f32 to vector<8x192xf32>
    %316 = arith.addf %315, %314 : vector<8x192xf32>
    %317 = arith.divf %315, %316 : vector<8x192xf32>
    %318 = vector.extract_strided_slice %311 {offsets = [0, 192], sizes = [8, 64], strides = [1, 1]} : vector<8x256xf32> to vector<8x64xf32>
    %319 = math.tanh %318 : vector<8x64xf32>
    %320 = vector.extract_strided_slice %317 {offsets = [0, 0], sizes = [8, 64], strides = [1, 1]} : vector<8x192xf32> to vector<8x64xf32>
    %321 = vector.extract_strided_slice %317 {offsets = [0, 64], sizes = [8, 64], strides = [1, 1]} : vector<8x192xf32> to vector<8x64xf32>
    %322 = vector.extract_strided_slice %317 {offsets = [0, 128], sizes = [8, 64], strides = [1, 1]} : vector<8x192xf32> to vector<8x64xf32>
    %323 = arith.mulf %321, %267 : vector<8x64xf32>
    %324 = arith.mulf %320, %319 : vector<8x64xf32>
    %325 = arith.addf %323, %324 : vector<8x64xf32>
    %326 = math.tanh %325 : vector<8x64xf32>
    %327 = arith.mulf %322, %326 : vector<8x64xf32>
    %c0_74 = arith.constant 0 : index
    %c0_75 = arith.constant 0 : index
    %328 = vector.load %arg2[%c0_74, %c0_75] : memref<64x256xf32, #tpu.memory_space<vmem>>, vector<64x256xf32>
    %cst_76 = arith.constant dense<0.000000e+00> : vector<8x256xf32>
    %329 = tpu.matmul %327, %328, %cst_76 {dimension_numbers = #tpu.dot_dimension_numbers<[1], [0], [0], [1], [0, 0, 1, 1], [], []>} : vector<8x64xf32>, vector<64x256xf32>, vector<8x256xf32> -> vector<8x256xf32>
    %330 = vector.extract_strided_slice %309 {offsets = [0, 256], sizes = [8, 256], strides = [1, 1]} : vector<8x512xf32> to vector<8x256xf32>
    %331 = arith.addf %329, %330 : vector<8x256xf32>
    %332 = arith.addf %331, %6 : vector<8x256xf32>
    %333 = vector.extract_strided_slice %332 {offsets = [0, 0], sizes = [8, 192], strides = [1, 1]} : vector<8x256xf32> to vector<8x192xf32>
    %334 = arith.negf %333 : vector<8x192xf32>
    %335 = math.exp %334 : vector<8x192xf32>
    %cst_77 = arith.constant 1.000000e+00 : f32
    %336 = vector.broadcast %cst_77 : f32 to vector<8x192xf32>
    %337 = arith.addf %336, %335 : vector<8x192xf32>
    %338 = arith.divf %336, %337 : vector<8x192xf32>
    %339 = vector.extract_strided_slice %332 {offsets = [0, 192], sizes = [8, 64], strides = [1, 1]} : vector<8x256xf32> to vector<8x64xf32>
    %340 = math.tanh %339 : vector<8x64xf32>
    %341 = vector.extract_strided_slice %338 {offsets = [0, 0], sizes = [8, 64], strides = [1, 1]} : vector<8x192xf32> to vector<8x64xf32>
    %342 = vector.extract_strided_slice %338 {offsets = [0, 64], sizes = [8, 64], strides = [1, 1]} : vector<8x192xf32> to vector<8x64xf32>
    %343 = vector.extract_strided_slice %338 {offsets = [0, 128], sizes = [8, 64], strides = [1, 1]} : vector<8x192xf32> to vector<8x64xf32>
    %344 = arith.mulf %342, %288 : vector<8x64xf32>
    %345 = arith.mulf %341, %340 : vector<8x64xf32>
    %346 = arith.addf %344, %345 : vector<8x64xf32>
    %347 = math.tanh %346 : vector<8x64xf32>
    %348 = arith.mulf %343, %347 : vector<8x64xf32>
    %349 = tpu.concatenate %327, %348 in 1 : vector<8x64xf32>, vector<8x64xf32> -> vector<8x128xf32>
    %350 = vector.broadcast %7 : vector<1x64xf32> to vector<8x64xf32>
    %351 = arith.mulf %348, %350 : vector<8x64xf32>
    %cst_78 = arith.constant dense<0.000000e+00> : vector<8xf32>
    %352 = vector.multi_reduction <add>, %351, %cst_78 [1] : vector<8x64xf32> to vector<8xf32>
    %353 = vector.shape_cast %352 : vector<8xf32> to vector<8x1xf32>
    %354 = vector.broadcast %8 : vector<1x1xf32> to vector<8x1xf32>
    %355 = arith.addf %353, %354 : vector<8x1xf32>
    %356 = vector.broadcast %c5_i32 : i32 to vector<1x128xi32>
    %357 = arith.cmpi eq, %9, %356 : vector<1x128xi32>
    %358 = vector.shape_cast %357 : vector<1x128xi1> to vector<1x128xi1>
    %359 = vector.broadcast %358 : vector<1x128xi1> to vector<8x128xi1>
    %360 = vector.shape_cast %355 : vector<8x1xf32> to vector<8x1xf32>
    %361 = vector.broadcast %360 : vector<8x1xf32> to vector<8x128xf32>
    %362 = arith.select %359, %361, %304 : vector<8x128xi1>, vector<8x128xf32>
    %c6_i32 = arith.constant 6 : i32
    %363 = arith.index_cast %c6_i32 : i32 to index
    %c0_79 = arith.constant 0 : index
    %c0_80 = arith.constant 0 : index
    %364 = vector.load %arg0[%363, %c0_79, %c0_80] : memref<8x8x256xf32, #tpu.memory_space<vmem>>, vector<1x8x256xf32>
    %365 = vector.shape_cast %364 : vector<1x8x256xf32> to vector<8x256xf32>
    %c0_81 = arith.constant 0 : index
    %c0_82 = arith.constant 0 : index
    %366 = vector.load %arg1[%c0_81, %c0_82] : memref<128x512xf32, #tpu.memory_space<vmem>>, vector<128x512xf32>
    %cst_83 = arith.constant dense<0.000000e+00> : vector<8x512xf32>
    %367 = tpu.matmul %349, %366, %cst_83 {dimension_numbers = #tpu.dot_dimension_numbers<[1], [0], [0], [1], [0, 0, 1, 1], [], []>} : vector<8x128xf32>, vector<128x512xf32>, vector<8x512xf32> -> vector<8x512xf32>
    %368 = vector.extract_strided_slice %367 {offsets = [0, 0], sizes = [8, 256], strides = [1, 1]} : vector<8x512xf32> to vector<8x256xf32>
    %369 = arith.addf %365, %368 : vector<8x256xf32>
    %370 = vector.extract_strided_slice %369 {offsets = [0, 0], sizes = [8, 192], strides = [1, 1]} : vector<8x256xf32> to vector<8x192xf32>
    %371 = arith.negf %370 : vector<8x192xf32>
    %372 = math.exp %371 : vector<8x192xf32>
    %cst_84 = arith.constant 1.000000e+00 : f32
    %373 = vector.broadcast %cst_84 : f32 to vector<8x192xf32>
    %374 = arith.addf %373, %372 : vector<8x192xf32>
    %375 = arith.divf %373, %374 : vector<8x192xf32>
    %376 = vector.extract_strided_slice %369 {offsets = [0, 192], sizes = [8, 64], strides = [1, 1]} : vector<8x256xf32> to vector<8x64xf32>
    %377 = math.tanh %376 : vector<8x64xf32>
    %378 = vector.extract_strided_slice %375 {offsets = [0, 0], sizes = [8, 64], strides = [1, 1]} : vector<8x192xf32> to vector<8x64xf32>
    %379 = vector.extract_strided_slice %375 {offsets = [0, 64], sizes = [8, 64], strides = [1, 1]} : vector<8x192xf32> to vector<8x64xf32>
    %380 = vector.extract_strided_slice %375 {offsets = [0, 128], sizes = [8, 64], strides = [1, 1]} : vector<8x192xf32> to vector<8x64xf32>
    %381 = arith.mulf %379, %325 : vector<8x64xf32>
    %382 = arith.mulf %378, %377 : vector<8x64xf32>
    %383 = arith.addf %381, %382 : vector<8x64xf32>
    %384 = math.tanh %383 : vector<8x64xf32>
    %385 = arith.mulf %380, %384 : vector<8x64xf32>
    %c0_85 = arith.constant 0 : index
    %c0_86 = arith.constant 0 : index
    %386 = vector.load %arg2[%c0_85, %c0_86] : memref<64x256xf32, #tpu.memory_space<vmem>>, vector<64x256xf32>
    %cst_87 = arith.constant dense<0.000000e+00> : vector<8x256xf32>
    %387 = tpu.matmul %385, %386, %cst_87 {dimension_numbers = #tpu.dot_dimension_numbers<[1], [0], [0], [1], [0, 0, 1, 1], [], []>} : vector<8x64xf32>, vector<64x256xf32>, vector<8x256xf32> -> vector<8x256xf32>
    %388 = vector.extract_strided_slice %367 {offsets = [0, 256], sizes = [8, 256], strides = [1, 1]} : vector<8x512xf32> to vector<8x256xf32>
    %389 = arith.addf %387, %388 : vector<8x256xf32>
    %390 = arith.addf %389, %6 : vector<8x256xf32>
    %391 = vector.extract_strided_slice %390 {offsets = [0, 0], sizes = [8, 192], strides = [1, 1]} : vector<8x256xf32> to vector<8x192xf32>
    %392 = arith.negf %391 : vector<8x192xf32>
    %393 = math.exp %392 : vector<8x192xf32>
    %cst_88 = arith.constant 1.000000e+00 : f32
    %394 = vector.broadcast %cst_88 : f32 to vector<8x192xf32>
    %395 = arith.addf %394, %393 : vector<8x192xf32>
    %396 = arith.divf %394, %395 : vector<8x192xf32>
    %397 = vector.extract_strided_slice %390 {offsets = [0, 192], sizes = [8, 64], strides = [1, 1]} : vector<8x256xf32> to vector<8x64xf32>
    %398 = math.tanh %397 : vector<8x64xf32>
    %399 = vector.extract_strided_slice %396 {offsets = [0, 0], sizes = [8, 64], strides = [1, 1]} : vector<8x192xf32> to vector<8x64xf32>
    %400 = vector.extract_strided_slice %396 {offsets = [0, 64], sizes = [8, 64], strides = [1, 1]} : vector<8x192xf32> to vector<8x64xf32>
    %401 = vector.extract_strided_slice %396 {offsets = [0, 128], sizes = [8, 64], strides = [1, 1]} : vector<8x192xf32> to vector<8x64xf32>
    %402 = arith.mulf %400, %346 : vector<8x64xf32>
    %403 = arith.mulf %399, %398 : vector<8x64xf32>
    %404 = arith.addf %402, %403 : vector<8x64xf32>
    %405 = math.tanh %404 : vector<8x64xf32>
    %406 = arith.mulf %401, %405 : vector<8x64xf32>
    %407 = tpu.concatenate %385, %406 in 1 : vector<8x64xf32>, vector<8x64xf32> -> vector<8x128xf32>
    %408 = vector.broadcast %7 : vector<1x64xf32> to vector<8x64xf32>
    %409 = arith.mulf %406, %408 : vector<8x64xf32>
    %cst_89 = arith.constant dense<0.000000e+00> : vector<8xf32>
    %410 = vector.multi_reduction <add>, %409, %cst_89 [1] : vector<8x64xf32> to vector<8xf32>
    %411 = vector.shape_cast %410 : vector<8xf32> to vector<8x1xf32>
    %412 = vector.broadcast %8 : vector<1x1xf32> to vector<8x1xf32>
    %413 = arith.addf %411, %412 : vector<8x1xf32>
    %414 = vector.broadcast %c6_i32 : i32 to vector<1x128xi32>
    %415 = arith.cmpi eq, %9, %414 : vector<1x128xi32>
    %416 = vector.shape_cast %415 : vector<1x128xi1> to vector<1x128xi1>
    %417 = vector.broadcast %416 : vector<1x128xi1> to vector<8x128xi1>
    %418 = vector.shape_cast %413 : vector<8x1xf32> to vector<8x1xf32>
    %419 = vector.broadcast %418 : vector<8x1xf32> to vector<8x128xf32>
    %420 = arith.select %417, %419, %362 : vector<8x128xi1>, vector<8x128xf32>
    %c7_i32 = arith.constant 7 : i32
    %421 = arith.index_cast %c7_i32 : i32 to index
    %c0_90 = arith.constant 0 : index
    %c0_91 = arith.constant 0 : index
    %422 = vector.load %arg0[%421, %c0_90, %c0_91] : memref<8x8x256xf32, #tpu.memory_space<vmem>>, vector<1x8x256xf32>
    %423 = vector.shape_cast %422 : vector<1x8x256xf32> to vector<8x256xf32>
    %c0_92 = arith.constant 0 : index
    %c0_93 = arith.constant 0 : index
    %424 = vector.load %arg1[%c0_92, %c0_93] : memref<128x512xf32, #tpu.memory_space<vmem>>, vector<128x512xf32>
    %cst_94 = arith.constant dense<0.000000e+00> : vector<8x512xf32>
    %425 = tpu.matmul %407, %424, %cst_94 {dimension_numbers = #tpu.dot_dimension_numbers<[1], [0], [0], [1], [0, 0, 1, 1], [], []>} : vector<8x128xf32>, vector<128x512xf32>, vector<8x512xf32> -> vector<8x512xf32>
    %426 = vector.extract_strided_slice %425 {offsets = [0, 0], sizes = [8, 256], strides = [1, 1]} : vector<8x512xf32> to vector<8x256xf32>
    %427 = arith.addf %423, %426 : vector<8x256xf32>
    %428 = vector.extract_strided_slice %427 {offsets = [0, 0], sizes = [8, 192], strides = [1, 1]} : vector<8x256xf32> to vector<8x192xf32>
    %429 = arith.negf %428 : vector<8x192xf32>
    %430 = math.exp %429 : vector<8x192xf32>
    %cst_95 = arith.constant 1.000000e+00 : f32
    %431 = vector.broadcast %cst_95 : f32 to vector<8x192xf32>
    %432 = arith.addf %431, %430 : vector<8x192xf32>
    %433 = arith.divf %431, %432 : vector<8x192xf32>
    %434 = vector.extract_strided_slice %427 {offsets = [0, 192], sizes = [8, 64], strides = [1, 1]} : vector<8x256xf32> to vector<8x64xf32>
    %435 = math.tanh %434 : vector<8x64xf32>
    %436 = vector.extract_strided_slice %433 {offsets = [0, 0], sizes = [8, 64], strides = [1, 1]} : vector<8x192xf32> to vector<8x64xf32>
    %437 = vector.extract_strided_slice %433 {offsets = [0, 64], sizes = [8, 64], strides = [1, 1]} : vector<8x192xf32> to vector<8x64xf32>
    %438 = vector.extract_strided_slice %433 {offsets = [0, 128], sizes = [8, 64], strides = [1, 1]} : vector<8x192xf32> to vector<8x64xf32>
    %439 = arith.mulf %437, %383 : vector<8x64xf32>
    %440 = arith.mulf %436, %435 : vector<8x64xf32>
    %441 = arith.addf %439, %440 : vector<8x64xf32>
    %442 = math.tanh %441 : vector<8x64xf32>
    %443 = arith.mulf %438, %442 : vector<8x64xf32>
    %c0_96 = arith.constant 0 : index
    %c0_97 = arith.constant 0 : index
    %444 = vector.load %arg2[%c0_96, %c0_97] : memref<64x256xf32, #tpu.memory_space<vmem>>, vector<64x256xf32>
    %cst_98 = arith.constant dense<0.000000e+00> : vector<8x256xf32>
    %445 = tpu.matmul %443, %444, %cst_98 {dimension_numbers = #tpu.dot_dimension_numbers<[1], [0], [0], [1], [0, 0, 1, 1], [], []>} : vector<8x64xf32>, vector<64x256xf32>, vector<8x256xf32> -> vector<8x256xf32>
    %446 = vector.extract_strided_slice %425 {offsets = [0, 256], sizes = [8, 256], strides = [1, 1]} : vector<8x512xf32> to vector<8x256xf32>
    %447 = arith.addf %445, %446 : vector<8x256xf32>
    %448 = arith.addf %447, %6 : vector<8x256xf32>
    %449 = vector.extract_strided_slice %448 {offsets = [0, 0], sizes = [8, 192], strides = [1, 1]} : vector<8x256xf32> to vector<8x192xf32>
    %450 = arith.negf %449 : vector<8x192xf32>
    %451 = math.exp %450 : vector<8x192xf32>
    %cst_99 = arith.constant 1.000000e+00 : f32
    %452 = vector.broadcast %cst_99 : f32 to vector<8x192xf32>
    %453 = arith.addf %452, %451 : vector<8x192xf32>
    %454 = arith.divf %452, %453 : vector<8x192xf32>
    %455 = vector.extract_strided_slice %448 {offsets = [0, 192], sizes = [8, 64], strides = [1, 1]} : vector<8x256xf32> to vector<8x64xf32>
    %456 = math.tanh %455 : vector<8x64xf32>
    %457 = vector.extract_strided_slice %454 {offsets = [0, 0], sizes = [8, 64], strides = [1, 1]} : vector<8x192xf32> to vector<8x64xf32>
    %458 = vector.extract_strided_slice %454 {offsets = [0, 64], sizes = [8, 64], strides = [1, 1]} : vector<8x192xf32> to vector<8x64xf32>
    %459 = vector.extract_strided_slice %454 {offsets = [0, 128], sizes = [8, 64], strides = [1, 1]} : vector<8x192xf32> to vector<8x64xf32>
    %460 = arith.mulf %458, %404 : vector<8x64xf32>
    %461 = arith.mulf %457, %456 : vector<8x64xf32>
    %462 = arith.addf %460, %461 : vector<8x64xf32>
    %463 = math.tanh %462 : vector<8x64xf32>
    %464 = arith.mulf %459, %463 : vector<8x64xf32>
    %465 = tpu.concatenate %443, %464 in 1 : vector<8x64xf32>, vector<8x64xf32> -> vector<8x128xf32>
    %466 = vector.broadcast %7 : vector<1x64xf32> to vector<8x64xf32>
    %467 = arith.mulf %464, %466 : vector<8x64xf32>
    %cst_100 = arith.constant dense<0.000000e+00> : vector<8xf32>
    %468 = vector.multi_reduction <add>, %467, %cst_100 [1] : vector<8x64xf32> to vector<8xf32>
    %469 = vector.shape_cast %468 : vector<8xf32> to vector<8x1xf32>
    %470 = vector.broadcast %8 : vector<1x1xf32> to vector<8x1xf32>
    %471 = arith.addf %469, %470 : vector<8x1xf32>
    %472 = vector.broadcast %c7_i32 : i32 to vector<1x128xi32>
    %473 = arith.cmpi eq, %9, %472 : vector<1x128xi32>
    %474 = vector.shape_cast %473 : vector<1x128xi1> to vector<1x128xi1>
    %475 = vector.broadcast %474 : vector<1x128xi1> to vector<8x128xi1>
    %476 = vector.shape_cast %471 : vector<8x1xf32> to vector<8x1xf32>
    %477 = vector.broadcast %476 : vector<8x1xf32> to vector<8x128xf32>
    %478 = arith.select %475, %477, %420 : vector<8x128xi1>, vector<8x128xf32>
    %c8_i32 = arith.constant 8 : i32
    %c8_i32_101 = arith.constant 8 : i32
    %479 = vector.broadcast %471 : vector<8x1xf32> to vector<8x256xf32>
    %480 = vector.broadcast %0 : vector<1x256xf32> to vector<8x256xf32>
    %481 = arith.mulf %479, %480 : vector<8x256xf32>
    %482 = arith.addf %481, %3 : vector<8x256xf32>
    %c0_102 = arith.constant 0 : index
    %c0_103 = arith.constant 0 : index
    %483 = vector.load %arg1[%c0_102, %c0_103] : memref<128x512xf32, #tpu.memory_space<vmem>>, vector<128x512xf32>
    %cst_104 = arith.constant dense<0.000000e+00> : vector<8x512xf32>
    %484 = tpu.matmul %465, %483, %cst_104 {dimension_numbers = #tpu.dot_dimension_numbers<[1], [0], [0], [1], [0, 0, 1, 1], [], []>} : vector<8x128xf32>, vector<128x512xf32>, vector<8x512xf32> -> vector<8x512xf32>
    %485 = vector.extract_strided_slice %484 {offsets = [0, 0], sizes = [8, 256], strides = [1, 1]} : vector<8x512xf32> to vector<8x256xf32>
    %486 = arith.addf %482, %485 : vector<8x256xf32>
    %487 = vector.extract_strided_slice %486 {offsets = [0, 0], sizes = [8, 192], strides = [1, 1]} : vector<8x256xf32> to vector<8x192xf32>
    %488 = arith.negf %487 : vector<8x192xf32>
    %489 = math.exp %488 : vector<8x192xf32>
    %cst_105 = arith.constant 1.000000e+00 : f32
    %490 = vector.broadcast %cst_105 : f32 to vector<8x192xf32>
    %491 = arith.addf %490, %489 : vector<8x192xf32>
    %492 = arith.divf %490, %491 : vector<8x192xf32>
    %493 = vector.extract_strided_slice %486 {offsets = [0, 192], sizes = [8, 64], strides = [1, 1]} : vector<8x256xf32> to vector<8x64xf32>
    %494 = math.tanh %493 : vector<8x64xf32>
    %495 = vector.extract_strided_slice %492 {offsets = [0, 0], sizes = [8, 64], strides = [1, 1]} : vector<8x192xf32> to vector<8x64xf32>
    %496 = vector.extract_strided_slice %492 {offsets = [0, 64], sizes = [8, 64], strides = [1, 1]} : vector<8x192xf32> to vector<8x64xf32>
    %497 = vector.extract_strided_slice %492 {offsets = [0, 128], sizes = [8, 64], strides = [1, 1]} : vector<8x192xf32> to vector<8x64xf32>
    %498 = arith.mulf %496, %441 : vector<8x64xf32>
    %499 = arith.mulf %495, %494 : vector<8x64xf32>
    %500 = arith.addf %498, %499 : vector<8x64xf32>
    %501 = math.tanh %500 : vector<8x64xf32>
    %502 = arith.mulf %497, %501 : vector<8x64xf32>
    %c0_106 = arith.constant 0 : index
    %c0_107 = arith.constant 0 : index
    %503 = vector.load %arg2[%c0_106, %c0_107] : memref<64x256xf32, #tpu.memory_space<vmem>>, vector<64x256xf32>
    %cst_108 = arith.constant dense<0.000000e+00> : vector<8x256xf32>
    %504 = tpu.matmul %502, %503, %cst_108 {dimension_numbers = #tpu.dot_dimension_numbers<[1], [0], [0], [1], [0, 0, 1, 1], [], []>} : vector<8x64xf32>, vector<64x256xf32>, vector<8x256xf32> -> vector<8x256xf32>
    %505 = vector.extract_strided_slice %484 {offsets = [0, 256], sizes = [8, 256], strides = [1, 1]} : vector<8x512xf32> to vector<8x256xf32>
    %506 = arith.addf %504, %505 : vector<8x256xf32>
    %507 = arith.addf %506, %6 : vector<8x256xf32>
    %508 = vector.extract_strided_slice %507 {offsets = [0, 0], sizes = [8, 192], strides = [1, 1]} : vector<8x256xf32> to vector<8x192xf32>
    %509 = arith.negf %508 : vector<8x192xf32>
    %510 = math.exp %509 : vector<8x192xf32>
    %cst_109 = arith.constant 1.000000e+00 : f32
    %511 = vector.broadcast %cst_109 : f32 to vector<8x192xf32>
    %512 = arith.addf %511, %510 : vector<8x192xf32>
    %513 = arith.divf %511, %512 : vector<8x192xf32>
    %514 = vector.extract_strided_slice %507 {offsets = [0, 192], sizes = [8, 64], strides = [1, 1]} : vector<8x256xf32> to vector<8x64xf32>
    %515 = math.tanh %514 : vector<8x64xf32>
    %516 = vector.extract_strided_slice %513 {offsets = [0, 0], sizes = [8, 64], strides = [1, 1]} : vector<8x192xf32> to vector<8x64xf32>
    %517 = vector.extract_strided_slice %513 {offsets = [0, 64], sizes = [8, 64], strides = [1, 1]} : vector<8x192xf32> to vector<8x64xf32>
    %518 = vector.extract_strided_slice %513 {offsets = [0, 128], sizes = [8, 64], strides = [1, 1]} : vector<8x192xf32> to vector<8x64xf32>
    %519 = arith.mulf %517, %462 : vector<8x64xf32>
    %520 = arith.mulf %516, %515 : vector<8x64xf32>
    %521 = arith.addf %519, %520 : vector<8x64xf32>
    %522 = math.tanh %521 : vector<8x64xf32>
    %523 = arith.mulf %518, %522 : vector<8x64xf32>
    %524 = tpu.concatenate %502, %523 in 1 : vector<8x64xf32>, vector<8x64xf32> -> vector<8x128xf32>
    %525 = vector.broadcast %7 : vector<1x64xf32> to vector<8x64xf32>
    %526 = arith.mulf %523, %525 : vector<8x64xf32>
    %cst_110 = arith.constant dense<0.000000e+00> : vector<8xf32>
    %527 = vector.multi_reduction <add>, %526, %cst_110 [1] : vector<8x64xf32> to vector<8xf32>
    %528 = vector.shape_cast %527 : vector<8xf32> to vector<8x1xf32>
    %529 = vector.broadcast %8 : vector<1x1xf32> to vector<8x1xf32>
    %530 = arith.addf %528, %529 : vector<8x1xf32>
    %531 = vector.broadcast %c8_i32_101 : i32 to vector<1x128xi32>
    %532 = arith.cmpi eq, %9, %531 : vector<1x128xi32>
    %533 = vector.shape_cast %532 : vector<1x128xi1> to vector<1x128xi1>
    %534 = vector.broadcast %533 : vector<1x128xi1> to vector<8x128xi1>
    %535 = vector.shape_cast %530 : vector<8x1xf32> to vector<8x1xf32>
    %536 = vector.broadcast %535 : vector<8x1xf32> to vector<8x128xf32>
    %537 = arith.select %534, %536, %478 : vector<8x128xi1>, vector<8x128xf32>
    %c9_i32 = arith.constant 9 : i32
    %538 = vector.broadcast %530 : vector<8x1xf32> to vector<8x256xf32>
    %539 = vector.broadcast %0 : vector<1x256xf32> to vector<8x256xf32>
    %540 = arith.mulf %538, %539 : vector<8x256xf32>
    %541 = arith.addf %540, %3 : vector<8x256xf32>
    %c0_111 = arith.constant 0 : index
    %c0_112 = arith.constant 0 : index
    %542 = vector.load %arg1[%c0_111, %c0_112] : memref<128x512xf32, #tpu.memory_space<vmem>>, vector<128x512xf32>
    %cst_113 = arith.constant dense<0.000000e+00> : vector<8x512xf32>
    %543 = tpu.matmul %524, %542, %cst_113 {dimension_numbers = #tpu.dot_dimension_numbers<[1], [0], [0], [1], [0, 0, 1, 1], [], []>} : vector<8x128xf32>, vector<128x512xf32>, vector<8x512xf32> -> vector<8x512xf32>
    %544 = vector.extract_strided_slice %543 {offsets = [0, 0], sizes = [8, 256], strides = [1, 1]} : vector<8x512xf32> to vector<8x256xf32>
    %545 = arith.addf %541, %544 : vector<8x256xf32>
    %546 = vector.extract_strided_slice %545 {offsets = [0, 0], sizes = [8, 192], strides = [1, 1]} : vector<8x256xf32> to vector<8x192xf32>
    %547 = arith.negf %546 : vector<8x192xf32>
    %548 = math.exp %547 : vector<8x192xf32>
    %cst_114 = arith.constant 1.000000e+00 : f32
    %549 = vector.broadcast %cst_114 : f32 to vector<8x192xf32>
    %550 = arith.addf %549, %548 : vector<8x192xf32>
    %551 = arith.divf %549, %550 : vector<8x192xf32>
    %552 = vector.extract_strided_slice %545 {offsets = [0, 192], sizes = [8, 64], strides = [1, 1]} : vector<8x256xf32> to vector<8x64xf32>
    %553 = math.tanh %552 : vector<8x64xf32>
    %554 = vector.extract_strided_slice %551 {offsets = [0, 0], sizes = [8, 64], strides = [1, 1]} : vector<8x192xf32> to vector<8x64xf32>
    %555 = vector.extract_strided_slice %551 {offsets = [0, 64], sizes = [8, 64], strides = [1, 1]} : vector<8x192xf32> to vector<8x64xf32>
    %556 = vector.extract_strided_slice %551 {offsets = [0, 128], sizes = [8, 64], strides = [1, 1]} : vector<8x192xf32> to vector<8x64xf32>
    %557 = arith.mulf %555, %500 : vector<8x64xf32>
    %558 = arith.mulf %554, %553 : vector<8x64xf32>
    %559 = arith.addf %557, %558 : vector<8x64xf32>
    %560 = math.tanh %559 : vector<8x64xf32>
    %561 = arith.mulf %556, %560 : vector<8x64xf32>
    %c0_115 = arith.constant 0 : index
    %c0_116 = arith.constant 0 : index
    %562 = vector.load %arg2[%c0_115, %c0_116] : memref<64x256xf32, #tpu.memory_space<vmem>>, vector<64x256xf32>
    %cst_117 = arith.constant dense<0.000000e+00> : vector<8x256xf32>
    %563 = tpu.matmul %561, %562, %cst_117 {dimension_numbers = #tpu.dot_dimension_numbers<[1], [0], [0], [1], [0, 0, 1, 1], [], []>} : vector<8x64xf32>, vector<64x256xf32>, vector<8x256xf32> -> vector<8x256xf32>
    %564 = vector.extract_strided_slice %543 {offsets = [0, 256], sizes = [8, 256], strides = [1, 1]} : vector<8x512xf32> to vector<8x256xf32>
    %565 = arith.addf %563, %564 : vector<8x256xf32>
    %566 = arith.addf %565, %6 : vector<8x256xf32>
    %567 = vector.extract_strided_slice %566 {offsets = [0, 0], sizes = [8, 192], strides = [1, 1]} : vector<8x256xf32> to vector<8x192xf32>
    %568 = arith.negf %567 : vector<8x192xf32>
    %569 = math.exp %568 : vector<8x192xf32>
    %cst_118 = arith.constant 1.000000e+00 : f32
    %570 = vector.broadcast %cst_118 : f32 to vector<8x192xf32>
    %571 = arith.addf %570, %569 : vector<8x192xf32>
    %572 = arith.divf %570, %571 : vector<8x192xf32>
    %573 = vector.extract_strided_slice %566 {offsets = [0, 192], sizes = [8, 64], strides = [1, 1]} : vector<8x256xf32> to vector<8x64xf32>
    %574 = math.tanh %573 : vector<8x64xf32>
    %575 = vector.extract_strided_slice %572 {offsets = [0, 0], sizes = [8, 64], strides = [1, 1]} : vector<8x192xf32> to vector<8x64xf32>
    %576 = vector.extract_strided_slice %572 {offsets = [0, 64], sizes = [8, 64], strides = [1, 1]} : vector<8x192xf32> to vector<8x64xf32>
    %577 = vector.extract_strided_slice %572 {offsets = [0, 128], sizes = [8, 64], strides = [1, 1]} : vector<8x192xf32> to vector<8x64xf32>
    %578 = arith.mulf %576, %521 : vector<8x64xf32>
    %579 = arith.mulf %575, %574 : vector<8x64xf32>
    %580 = arith.addf %578, %579 : vector<8x64xf32>
    %581 = math.tanh %580 : vector<8x64xf32>
    %582 = arith.mulf %577, %581 : vector<8x64xf32>
    %583 = tpu.concatenate %561, %582 in 1 : vector<8x64xf32>, vector<8x64xf32> -> vector<8x128xf32>
    %584 = vector.broadcast %7 : vector<1x64xf32> to vector<8x64xf32>
    %585 = arith.mulf %582, %584 : vector<8x64xf32>
    %cst_119 = arith.constant dense<0.000000e+00> : vector<8xf32>
    %586 = vector.multi_reduction <add>, %585, %cst_119 [1] : vector<8x64xf32> to vector<8xf32>
    %587 = vector.shape_cast %586 : vector<8xf32> to vector<8x1xf32>
    %588 = vector.broadcast %8 : vector<1x1xf32> to vector<8x1xf32>
    %589 = arith.addf %587, %588 : vector<8x1xf32>
    %590 = vector.broadcast %c9_i32 : i32 to vector<1x128xi32>
    %591 = arith.cmpi eq, %9, %590 : vector<1x128xi32>
    %592 = vector.shape_cast %591 : vector<1x128xi1> to vector<1x128xi1>
    %593 = vector.broadcast %592 : vector<1x128xi1> to vector<8x128xi1>
    %594 = vector.shape_cast %589 : vector<8x1xf32> to vector<8x1xf32>
    %595 = vector.broadcast %594 : vector<8x1xf32> to vector<8x128xf32>
    %596 = arith.select %593, %595, %537 : vector<8x128xi1>, vector<8x128xf32>
    %c10_i32 = arith.constant 10 : i32
    %597 = vector.broadcast %589 : vector<8x1xf32> to vector<8x256xf32>
    %598 = vector.broadcast %0 : vector<1x256xf32> to vector<8x256xf32>
    %599 = arith.mulf %597, %598 : vector<8x256xf32>
    %600 = arith.addf %599, %3 : vector<8x256xf32>
    %c0_120 = arith.constant 0 : index
    %c0_121 = arith.constant 0 : index
    %601 = vector.load %arg1[%c0_120, %c0_121] : memref<128x512xf32, #tpu.memory_space<vmem>>, vector<128x512xf32>
    %cst_122 = arith.constant dense<0.000000e+00> : vector<8x512xf32>
    %602 = tpu.matmul %583, %601, %cst_122 {dimension_numbers = #tpu.dot_dimension_numbers<[1], [0], [0], [1], [0, 0, 1, 1], [], []>} : vector<8x128xf32>, vector<128x512xf32>, vector<8x512xf32> -> vector<8x512xf32>
    %603 = vector.extract_strided_slice %602 {offsets = [0, 0], sizes = [8, 256], strides = [1, 1]} : vector<8x512xf32> to vector<8x256xf32>
    %604 = arith.addf %600, %603 : vector<8x256xf32>
    %605 = vector.extract_strided_slice %604 {offsets = [0, 0], sizes = [8, 192], strides = [1, 1]} : vector<8x256xf32> to vector<8x192xf32>
    %606 = arith.negf %605 : vector<8x192xf32>
    %607 = math.exp %606 : vector<8x192xf32>
    %cst_123 = arith.constant 1.000000e+00 : f32
    %608 = vector.broadcast %cst_123 : f32 to vector<8x192xf32>
    %609 = arith.addf %608, %607 : vector<8x192xf32>
    %610 = arith.divf %608, %609 : vector<8x192xf32>
    %611 = vector.extract_strided_slice %604 {offsets = [0, 192], sizes = [8, 64], strides = [1, 1]} : vector<8x256xf32> to vector<8x64xf32>
    %612 = math.tanh %611 : vector<8x64xf32>
    %613 = vector.extract_strided_slice %610 {offsets = [0, 0], sizes = [8, 64], strides = [1, 1]} : vector<8x192xf32> to vector<8x64xf32>
    %614 = vector.extract_strided_slice %610 {offsets = [0, 64], sizes = [8, 64], strides = [1, 1]} : vector<8x192xf32> to vector<8x64xf32>
    %615 = vector.extract_strided_slice %610 {offsets = [0, 128], sizes = [8, 64], strides = [1, 1]} : vector<8x192xf32> to vector<8x64xf32>
    %616 = arith.mulf %614, %559 : vector<8x64xf32>
    %617 = arith.mulf %613, %612 : vector<8x64xf32>
    %618 = arith.addf %616, %617 : vector<8x64xf32>
    %619 = math.tanh %618 : vector<8x64xf32>
    %620 = arith.mulf %615, %619 : vector<8x64xf32>
    %c0_124 = arith.constant 0 : index
    %c0_125 = arith.constant 0 : index
    %621 = vector.load %arg2[%c0_124, %c0_125] : memref<64x256xf32, #tpu.memory_space<vmem>>, vector<64x256xf32>
    %cst_126 = arith.constant dense<0.000000e+00> : vector<8x256xf32>
    %622 = tpu.matmul %620, %621, %cst_126 {dimension_numbers = #tpu.dot_dimension_numbers<[1], [0], [0], [1], [0, 0, 1, 1], [], []>} : vector<8x64xf32>, vector<64x256xf32>, vector<8x256xf32> -> vector<8x256xf32>
    %623 = vector.extract_strided_slice %602 {offsets = [0, 256], sizes = [8, 256], strides = [1, 1]} : vector<8x512xf32> to vector<8x256xf32>
    %624 = arith.addf %622, %623 : vector<8x256xf32>
    %625 = arith.addf %624, %6 : vector<8x256xf32>
    %626 = vector.extract_strided_slice %625 {offsets = [0, 0], sizes = [8, 192], strides = [1, 1]} : vector<8x256xf32> to vector<8x192xf32>
    %627 = arith.negf %626 : vector<8x192xf32>
    %628 = math.exp %627 : vector<8x192xf32>
    %cst_127 = arith.constant 1.000000e+00 : f32
    %629 = vector.broadcast %cst_127 : f32 to vector<8x192xf32>
    %630 = arith.addf %629, %628 : vector<8x192xf32>
    %631 = arith.divf %629, %630 : vector<8x192xf32>
    %632 = vector.extract_strided_slice %625 {offsets = [0, 192], sizes = [8, 64], strides = [1, 1]} : vector<8x256xf32> to vector<8x64xf32>
    %633 = math.tanh %632 : vector<8x64xf32>
    %634 = vector.extract_strided_slice %631 {offsets = [0, 0], sizes = [8, 64], strides = [1, 1]} : vector<8x192xf32> to vector<8x64xf32>
    %635 = vector.extract_strided_slice %631 {offsets = [0, 64], sizes = [8, 64], strides = [1, 1]} : vector<8x192xf32> to vector<8x64xf32>
    %636 = vector.extract_strided_slice %631 {offsets = [0, 128], sizes = [8, 64], strides = [1, 1]} : vector<8x192xf32> to vector<8x64xf32>
    %637 = arith.mulf %635, %580 : vector<8x64xf32>
    %638 = arith.mulf %634, %633 : vector<8x64xf32>
    %639 = arith.addf %637, %638 : vector<8x64xf32>
    %640 = math.tanh %639 : vector<8x64xf32>
    %641 = arith.mulf %636, %640 : vector<8x64xf32>
    %642 = tpu.concatenate %620, %641 in 1 : vector<8x64xf32>, vector<8x64xf32> -> vector<8x128xf32>
    %643 = vector.broadcast %7 : vector<1x64xf32> to vector<8x64xf32>
    %644 = arith.mulf %641, %643 : vector<8x64xf32>
    %cst_128 = arith.constant dense<0.000000e+00> : vector<8xf32>
    %645 = vector.multi_reduction <add>, %644, %cst_128 [1] : vector<8x64xf32> to vector<8xf32>
    %646 = vector.shape_cast %645 : vector<8xf32> to vector<8x1xf32>
    %647 = vector.broadcast %8 : vector<1x1xf32> to vector<8x1xf32>
    %648 = arith.addf %646, %647 : vector<8x1xf32>
    %649 = vector.broadcast %c10_i32 : i32 to vector<1x128xi32>
    %650 = arith.cmpi eq, %9, %649 : vector<1x128xi32>
    %651 = vector.shape_cast %650 : vector<1x128xi1> to vector<1x128xi1>
    %652 = vector.broadcast %651 : vector<1x128xi1> to vector<8x128xi1>
    %653 = vector.shape_cast %648 : vector<8x1xf32> to vector<8x1xf32>
    %654 = vector.broadcast %653 : vector<8x1xf32> to vector<8x128xf32>
    %655 = arith.select %652, %654, %596 : vector<8x128xi1>, vector<8x128xf32>
    %c11_i32 = arith.constant 11 : i32
    %656 = vector.broadcast %648 : vector<8x1xf32> to vector<8x256xf32>
    %657 = vector.broadcast %0 : vector<1x256xf32> to vector<8x256xf32>
    %658 = arith.mulf %656, %657 : vector<8x256xf32>
    %659 = arith.addf %658, %3 : vector<8x256xf32>
    %c0_129 = arith.constant 0 : index
    %c0_130 = arith.constant 0 : index
    %660 = vector.load %arg1[%c0_129, %c0_130] : memref<128x512xf32, #tpu.memory_space<vmem>>, vector<128x512xf32>
    %cst_131 = arith.constant dense<0.000000e+00> : vector<8x512xf32>
    %661 = tpu.matmul %642, %660, %cst_131 {dimension_numbers = #tpu.dot_dimension_numbers<[1], [0], [0], [1], [0, 0, 1, 1], [], []>} : vector<8x128xf32>, vector<128x512xf32>, vector<8x512xf32> -> vector<8x512xf32>
    %662 = vector.extract_strided_slice %661 {offsets = [0, 0], sizes = [8, 256], strides = [1, 1]} : vector<8x512xf32> to vector<8x256xf32>
    %663 = arith.addf %659, %662 : vector<8x256xf32>
    %664 = vector.extract_strided_slice %663 {offsets = [0, 0], sizes = [8, 192], strides = [1, 1]} : vector<8x256xf32> to vector<8x192xf32>
    %665 = arith.negf %664 : vector<8x192xf32>
    %666 = math.exp %665 : vector<8x192xf32>
    %cst_132 = arith.constant 1.000000e+00 : f32
    %667 = vector.broadcast %cst_132 : f32 to vector<8x192xf32>
    %668 = arith.addf %667, %666 : vector<8x192xf32>
    %669 = arith.divf %667, %668 : vector<8x192xf32>
    %670 = vector.extract_strided_slice %663 {offsets = [0, 192], sizes = [8, 64], strides = [1, 1]} : vector<8x256xf32> to vector<8x64xf32>
    %671 = math.tanh %670 : vector<8x64xf32>
    %672 = vector.extract_strided_slice %669 {offsets = [0, 0], sizes = [8, 64], strides = [1, 1]} : vector<8x192xf32> to vector<8x64xf32>
    %673 = vector.extract_strided_slice %669 {offsets = [0, 64], sizes = [8, 64], strides = [1, 1]} : vector<8x192xf32> to vector<8x64xf32>
    %674 = vector.extract_strided_slice %669 {offsets = [0, 128], sizes = [8, 64], strides = [1, 1]} : vector<8x192xf32> to vector<8x64xf32>
    %675 = arith.mulf %673, %618 : vector<8x64xf32>
    %676 = arith.mulf %672, %671 : vector<8x64xf32>
    %677 = arith.addf %675, %676 : vector<8x64xf32>
    %678 = math.tanh %677 : vector<8x64xf32>
    %679 = arith.mulf %674, %678 : vector<8x64xf32>
    %c0_133 = arith.constant 0 : index
    %c0_134 = arith.constant 0 : index
    %680 = vector.load %arg2[%c0_133, %c0_134] : memref<64x256xf32, #tpu.memory_space<vmem>>, vector<64x256xf32>
    %cst_135 = arith.constant dense<0.000000e+00> : vector<8x256xf32>
    %681 = tpu.matmul %679, %680, %cst_135 {dimension_numbers = #tpu.dot_dimension_numbers<[1], [0], [0], [1], [0, 0, 1, 1], [], []>} : vector<8x64xf32>, vector<64x256xf32>, vector<8x256xf32> -> vector<8x256xf32>
    %682 = vector.extract_strided_slice %661 {offsets = [0, 256], sizes = [8, 256], strides = [1, 1]} : vector<8x512xf32> to vector<8x256xf32>
    %683 = arith.addf %681, %682 : vector<8x256xf32>
    %684 = arith.addf %683, %6 : vector<8x256xf32>
    %685 = vector.extract_strided_slice %684 {offsets = [0, 0], sizes = [8, 192], strides = [1, 1]} : vector<8x256xf32> to vector<8x192xf32>
    %686 = arith.negf %685 : vector<8x192xf32>
    %687 = math.exp %686 : vector<8x192xf32>
    %cst_136 = arith.constant 1.000000e+00 : f32
    %688 = vector.broadcast %cst_136 : f32 to vector<8x192xf32>
    %689 = arith.addf %688, %687 : vector<8x192xf32>
    %690 = arith.divf %688, %689 : vector<8x192xf32>
    %691 = vector.extract_strided_slice %684 {offsets = [0, 192], sizes = [8, 64], strides = [1, 1]} : vector<8x256xf32> to vector<8x64xf32>
    %692 = math.tanh %691 : vector<8x64xf32>
    %693 = vector.extract_strided_slice %690 {offsets = [0, 0], sizes = [8, 64], strides = [1, 1]} : vector<8x192xf32> to vector<8x64xf32>
    %694 = vector.extract_strided_slice %690 {offsets = [0, 64], sizes = [8, 64], strides = [1, 1]} : vector<8x192xf32> to vector<8x64xf32>
    %695 = vector.extract_strided_slice %690 {offsets = [0, 128], sizes = [8, 64], strides = [1, 1]} : vector<8x192xf32> to vector<8x64xf32>
    %696 = arith.mulf %694, %639 : vector<8x64xf32>
    %697 = arith.mulf %693, %692 : vector<8x64xf32>
    %698 = arith.addf %696, %697 : vector<8x64xf32>
    %699 = math.tanh %698 : vector<8x64xf32>
    %700 = arith.mulf %695, %699 : vector<8x64xf32>
    %701 = tpu.concatenate %679, %700 in 1 : vector<8x64xf32>, vector<8x64xf32> -> vector<8x128xf32>
    %702 = vector.broadcast %7 : vector<1x64xf32> to vector<8x64xf32>
    %703 = arith.mulf %700, %702 : vector<8x64xf32>
    %cst_137 = arith.constant dense<0.000000e+00> : vector<8xf32>
    %704 = vector.multi_reduction <add>, %703, %cst_137 [1] : vector<8x64xf32> to vector<8xf32>
    %705 = vector.shape_cast %704 : vector<8xf32> to vector<8x1xf32>
    %706 = vector.broadcast %8 : vector<1x1xf32> to vector<8x1xf32>
    %707 = arith.addf %705, %706 : vector<8x1xf32>
    %708 = vector.broadcast %c11_i32 : i32 to vector<1x128xi32>
    %709 = arith.cmpi eq, %9, %708 : vector<1x128xi32>
    %710 = vector.shape_cast %709 : vector<1x128xi1> to vector<1x128xi1>
    %711 = vector.broadcast %710 : vector<1x128xi1> to vector<8x128xi1>
    %712 = vector.shape_cast %707 : vector<8x1xf32> to vector<8x1xf32>
    %713 = vector.broadcast %712 : vector<8x1xf32> to vector<8x128xf32>
    %714 = arith.select %711, %713, %655 : vector<8x128xi1>, vector<8x128xf32>
    %c4_i32_138 = arith.constant 4 : i32
    %c0_139 = arith.constant 0 : index
    %c0_140 = arith.constant 0 : index
    %715 = vector.load %arg8[%c0_139, %c0_140] : memref<8x128xf32, #tpu.memory_space<vmem>>, vector<8x128xf32>
    tpu.vector_store %arg8[%c0_139, %c0_140], %714 {strides = array<i32>} : memref<8x128xf32, #tpu.memory_space<vmem>>, vector<8x128xf32>,
    return
  }
}

</mosaic_0001>

<llo_original>
// kernel: mul.11
$region0: #{mul.11}
  %s0 = inlined_call_operand.vmem [shape: f32[4,64,1], index: 0, kind: input, shape index: {}]
  %s1 = inlined_call_operand.vmem [shape: f32[256], index: 1, kind: output, shape index: {}]
  $region1: #{mul.11} parent=0
    #allocation0 [shape = 'u8[4096]{0}', space=vmem, size = 0x1000, scoped, tag = 'scoped mem for output reshape']
    #allocation1 [shape = 'u8[4096]{0}', space=vmem, size = 0x1000, scoped, tag = 'scoped mem for input reshape']
    %s3 = sshllo.u32 0, 4
    %v4 = vld [vmem:[%s0] sm:%s3]
    %5 = vst [vmem:[#allocation1] sm:%s3] %v4
    %s6 = smov 3
    %v7 = vld [vmem:[#allocation1] ss:$2 sm:%s6]
    %vm8 = vcmask 523264
    %9 = vst.msk [vmem:[#allocation0] sm:$0x3] %vm8, %v7
    %s10 = scalar_lea.vmem [#allocation1], 1
    %s11 = smov 3
    %v12 = vld [vmem:[%s10] ss:$2 sm:%s11]
    %13 = vrot.lane.b32.xlu0 %v12, 64
    %v14 = vpop.permute.xlu0 %13
    %vm15 = vcmask 1048064
    %16 = vst.msk [vmem:[#allocation0] sm:$0x3] %vm15, %v14
    %s18 = sshllo.u32 0, 2
    %v20 = vld [vmem:[#allocation0] sm:%s18]
    %s21 = sshllo.u32 0, 2
    %22 = vst [vmem:[%s1] sm:%s21] %v20

// kernel: sequence_forward.1
$region0: #{sequence_forward.1}
  #allocation0 [shape = 'u32[]', space=smem, size = 0x4, offset = 0x4, fixed_abs, tag = 'smem constant byte address 0x4 - core index']
  #allocation1 [shape = 'u32[144,128]{1,0:T(1,128)}', space=vmem, size = 0x12000, scoped, tag = 'internal scratch']
  #allocation2 [shape = 'f32[1,1]{1,0:T(1,128)S(1)}', space=vmem, size = 0x200, scoped, tag = 'scoped memory for sequence_forward.1']
  %s0 = inlined_call_operand.vmem [shape: f32[8,8,256], index: 0, kind: input, shape index: {}]
  %s1 = inlined_call_operand.vmem [shape: f32[128,512], index: 1, kind: input, shape index: {}]
  %s2 = inlined_call_operand.vmem [shape: f32[64,256], index: 2, kind: input, shape index: {}]
  %s3 = inlined_call_operand.vmem [shape: f32[1,256], index: 3, kind: input, shape index: {}]
  %s4 = inlined_call_operand.vmem [shape: f32[1,256], index: 4, kind: input, shape index: {}]
  %s5 = inlined_call_operand.vmem [shape: f32[1,256], index: 5, kind: input, shape index: {}]
  %s6 = inlined_call_operand.vmem [shape: f32[1,64], index: 6, kind: input, shape index: {}]
  %s7 = inlined_call_operand.<no memory space> [shape: f32[1,1], index: 7, kind: input, shape index: {}]
  %s8 = inlined_call_operand.vmem [shape: f32[8,128], index: 8, kind: output, shape index: {}]
  %s9 = sld [smem:[#allocation0]]
  $region42: #{sequence_forward.1} parent=0
    _
  %s11 = ssub.s32 1, %s9
  %s12 = scalar_select 0, %s11, %s9
  %v13 = vstv %s7
  %14 = vst [vmem:[#allocation2] sm:$0x1] %v13
  // Predicated region
  $region2: #{sequence_forward.1} parent=0 // pred_check
    _
  $region3: #{sequence_forward.1} parent=0 // pred_check_branch
    %16 = sbr.rel (0) target = $region5
  $region4: #{sequence_forward.1} parent=0 // pred_region
    _
  $region5: #{sequence_forward.1} parent=0 // pred_fallthru
    _
  // Predicated region
  $region6: #{sequence_forward.1} parent=0 // pred_check
    _
  $region7: #{sequence_forward.1} parent=0 // pred_check_branch
    %18 = sbr.rel (0) target = $region9
  $region8: #{sequence_forward.1} parent=0 // pred_region
    _
  $region9: #{sequence_forward.1} parent=0 // pred_fallthru
    _
  // Predicated region
  $region10: #{sequence_forward.1} parent=0 // pred_check
    _
  $region11: #{sequence_forward.1} parent=0 // pred_check_branch
    %20 = sbr.rel (0) target = $region13
  $region12: #{sequence_forward.1} parent=0 // pred_region
    _
  $region13: #{sequence_forward.1} parent=0 // pred_fallthru
    _
  // Predicated region
  $region14: #{sequence_forward.1} parent=0 // pred_check
    _
  $region15: #{sequence_forward.1} parent=0 // pred_check_branch
    %22 = sbr.rel (0) target = $region17
  $region16: #{sequence_forward.1} parent=0 // pred_region
    _
  $region17: #{sequence_forward.1} parent=0 // pred_fallthru
    _
  // Predicated region
  $region18: #{sequence_forward.1} parent=0 // pred_check
    _
  $region19: #{sequence_forward.1} parent=0 // pred_check_branch
    %24 = sbr.rel (0) target = $region21
  $region20: #{sequence_forward.1} parent=0 // pred_region
    _
  $region21: #{sequence_forward.1} parent=0 // pred_fallthru
    _
  // Predicated region
  $region22: #{sequence_forward.1} parent=0 // pred_check
    _
  $region23: #{sequence_forward.1} parent=0 // pred_check_branch
    %26 = sbr.rel (0) target = $region25
  $region24: #{sequence_forward.1} parent=0 // pred_region
    _
  $region25: #{sequence_forward.1} parent=0 // pred_fallthru
    _
  // Predicated region
  $region26: #{sequence_forward.1} parent=0 // pred_check
    _
  $region27: #{sequence_forward.1} parent=0 // pred_check_branch
    %28 = sbr.rel (0) target = $region29
  $region28: #{sequence_forward.1} parent=0 // pred_region
    _
  $region29: #{sequence_forward.1} parent=0 // pred_fallthru
    _
  // Predicated region
  $region30: #{sequence_forward.1} parent=0 // pred_check
    _
  $region31: #{sequence_forward.1} parent=0 // pred_check_branch
    %30 = sbr.rel (0) target = $region33
  $region32: #{sequence_forward.1} parent=0 // pred_region
    _
  $region33: #{sequence_forward.1} parent=0 // pred_fallthru
    _
  %v31 = vld [vmem:[%s3] sm:$0x3]
  %v32 = vld [vmem:[%s4] sm:$0x3]
  %v34 = vlaneseq
  %v35 = vshrl.u32 %v34, 7
  %v36 = vsub.s32 0, %v35
  %v37 = vrot.slane %v32, %v36
  %v38 = vlaneseq
  %v39 = vshrl.u32 %v38, 7
  %v40 = vsub.s32 1, %v39
  %v41 = vrot.slane %v32, %v40
  %v44 = vld [vmem:[%s5] sm:$0x3]
  %v46 = vlaneseq
  %v47 = vshrl.u32 %v46, 7
  %v48 = vsub.s32 0, %v47
  %v49 = vrot.slane %v44, %v48
  %v50 = vlaneseq
  %v51 = vshrl.u32 %v50, 7
  %v52 = vsub.s32 1, %v51
  %v53 = vrot.slane %v44, %v52
  %v56 = vld [vmem:[%s6] sm:$0x1]
  %v57 = vld [vmem:[#allocation2] sm:$0x1]
  %v58 = vlaneseq
  %v59 = vand.u32 %v58, 127
  %v60 = vld [vmem:[%s0] sm:$0xff]
  %v61 = vld [vmem:[%s0 + $0x8] sm:$0xff]
  %v62 = vld [vmem:[%s1] sm:$0xff]
  %v63 = vld [vmem:[%s1 + $0x8] sm:$0xff]
  %v64 = vld [vmem:[%s1 + $0x10] sm:$0xff]
  %v65 = vld [vmem:[%s1 + $0x18] sm:$0xff]
  %v66 = vld [vmem:[%s1 + $0x20] sm:$0xff]
  %v67 = vld [vmem:[%s1 + $0x28] sm:$0xff]
  %v68 = vld [vmem:[%s1 + $0x30] sm:$0xff]
  %v69 = vld [vmem:[%s1 + $0x38] sm:$0xff]
  %v70 = vld [vmem:[%s1 + $0x40] sm:$0xff]
  %v71 = vld [vmem:[%s1 + $0x48] sm:$0xff]
  %v72 = vld [vmem:[%s1 + $0x50] sm:$0xff]
  %v73 = vld [vmem:[%s1 + $0x58] sm:$0xff]
  %v74 = vld [vmem:[%s1 + $0x60] sm:$0xff]
  %v75 = vld [vmem:[%s1 + $0x68] sm:$0xff]
  %v76 = vld [vmem:[%s1 + $0x70] sm:$0xff]
  %v77 = vld [vmem:[%s1 + $0x78] sm:$0xff]
  %v78 = vld [vmem:[%s1 + $0x80] sm:$0xff]
  %v79 = vld [vmem:[%s1 + $0x88] sm:$0xff]
  %v80 = vld [vmem:[%s1 + $0x90] sm:$0xff]
  %v81 = vld [vmem:[%s1 + $0x98] sm:$0xff]
  %v82 = vld [vmem:[%s1 + $0xa0] sm:$0xff]
  %v83 = vld [vmem:[%s1 + $0xa8] sm:$0xff]
  %v84 = vld [vmem:[%s1 + $0xb0] sm:$0xff]
  %v85 = vld [vmem:[%s1 + $0xb8] sm:$0xff]
  %v86 = vld [vmem:[%s1 + $0xc0] sm:$0xff]
  %v87 = vld [vmem:[%s1 + $0xc8] sm:$0xff]
  %v88 = vld [vmem:[%s1 + $0xd0] sm:$0xff]
  %v89 = vld [vmem:[%s1 + $0xd8] sm:$0xff]
  %v90 = vld [vmem:[%s1 + $0xe0] sm:$0xff]
  %v91 = vld [vmem:[%s1 + $0xe8] sm:$0xff]
  %v92 = vld [vmem:[%s1 + $0xf0] sm:$0xff]
  %v93 = vld [vmem:[%s1 + $0xf8] sm:$0xff]
  %v94 = vld [vmem:[%s1 + $0x100] sm:$0xff]
  %v95 = vld [vmem:[%s1 + $0x108] sm:$0xff]
  %v96 = vld [vmem:[%s1 + $0x110] sm:$0xff]
  %v97 = vld [vmem:[%s1 + $0x118] sm:$0xff]
  %v98 = vld [vmem:[%s1 + $0x120] sm:$0xff]
  %v99 = vld [vmem:[%s1 + $0x128] sm:$0xff]
  %v100 = vld [vmem:[%s1 + $0x130] sm:$0xff]
  %v101 = vld [vmem:[%s1 + $0x138] sm:$0xff]
  %v102 = vld [vmem:[%s1 + $0x140] sm:$0xff]
  %v103 = vld [vmem:[%s1 + $0x148] sm:$0xff]
  %v104 = vld [vmem:[%s1 + $0x150] sm:$0xff]
  %v105 = vld [vmem:[%s1 + $0x158] sm:$0xff]
  %v106 = vld [vmem:[%s1 + $0x160] sm:$0xff]
  %v107 = vld [vmem:[%s1 + $0x168] sm:$0xff]
  %v108 = vld [vmem:[%s1 + $0x170] sm:$0xff]
  %v109 = vld [vmem:[%s1 + $0x178] sm:$0xff]
  %v110 = vld [vmem:[%s1 + $0x180] sm:$0xff]
  %v111 = vld [vmem:[%s1 + $0x188] sm:$0xff]
  %v112 = vld [vmem:[%s1 + $0x190] sm:$0xff]
  %v113 = vld [vmem:[%s1 + $0x198] sm:$0xff]
  %v114 = vld [vmem:[%s1 + $0x1a0] sm:$0xff]
  %v115 = vld [vmem:[%s1 + $0x1a8] sm:$0xff]
  %v116 = vld [vmem:[%s1 + $0x1b0] sm:$0xff]
  %v117 = vld [vmem:[%s1 + $0x1b8] sm:$0xff]
  %v118 = vld [vmem:[%s1 + $0x1c0] sm:$0xff]
  %v119 = vld [vmem:[%s1 + $0x1c8] sm:$0xff]
  %v120 = vld [vmem:[%s1 + $0x1d0] sm:$0xff]
  %v121 = vld [vmem:[%s1 + $0x1d8] sm:$0xff]
  %v122 = vld [vmem:[%s1 + $0x1e0] sm:$0xff]
  %v123 = vld [vmem:[%s1 + $0x1e8] sm:$0xff]
  %v124 = vld [vmem:[%s1 + $0x1f0] sm:$0xff]
  %v125 = vld [vmem:[%s1 + $0x1f8] sm:$0xff]
  %126 = vmatprep.subr.mxu0 %v63
  %127 = vmatpush1.msra.mxu0 %v62
  %128 = vmatprep.subr.mxu0 %v67
  %129 = vmatpush1.msra.mxu0 %v66
  %130 = vmatprep.subr.mxu0 %v71
  %131 = vmatpush1.msra.mxu0 %v70
  %132 = vmatprep.subr.mxu0 %v75
  %133 = vmatpush1.msra.mxu0 %v74
  %134 = vmatprep.subr.mxu0 %v79
  %135 = vmatpush1.msra.mxu0 %v78
  %136 = vmatprep.subr.mxu0 %v83
  %137 = vmatpush1.msra.mxu0 %v82
  %138 = vmatprep.subr.mxu0 %v87
  %139 = vmatpush1.msra.mxu0 %v86
  %140 = vmatprep.subr.mxu0 %v91
  %141 = vmatpush1.msra.mxu0 %v90
  %142 = vmatprep.subr.mxu0 %v95
  %143 = vmatpush1.msra.mxu0 %v94
  %144 = vmatprep.subr.mxu0 %v99
  %145 = vmatpush1.msra.mxu0 %v98
  %146 = vmatprep.subr.mxu0 %v103
  %147 = vmatpush1.msra.mxu0 %v102
  %148 = vmatprep.subr.mxu0 %v107
  %149 = vmatpush1.msra.mxu0 %v106
  %150 = vmatprep.subr.mxu0 %v111
  %151 = vmatpush1.msra.mxu0 %v110
  %152 = vmatprep.subr.mxu0 %v115
  %153 = vmatpush1.msra.mxu0 %v114
  %154 = vmatprep.subr.mxu0 %v119
  %155 = vmatpush1.msra.mxu0 %v118
  %156 = vmatprep.subr.mxu0 %v123
  %157 = vmatpush1.msra.mxu0 %v122
  %158 = vmatprep.subr.mxu0 0.0
  %159 = vmatpush1.msra.mxu0 0.0
  %160 = vmatprep.subr.mxu0 0.0
  %161 = vmatpush1.msra.mxu0 0.0
  %162 = vmatprep.subr.mxu0 0.0
  %163 = vmatpush1.msra.mxu0 0.0
  %164 = vmatprep.subr.mxu0 0.0
  %165 = vmatpush1.msra.mxu0 0.0
  %166 = vmatprep.subr.mxu0 0.0
  %167 = vmatpush1.msra.mxu0 0.0
  %168 = vmatprep.subr.mxu0 0.0
  %169 = vmatpush1.msra.mxu0 0.0
  %170 = vmatprep.subr.mxu0 0.0
  %171 = vmatpush1.msra.mxu0 0.0
  %172 = vmatprep.subr.mxu0 0.0
  %173 = vmatpush1.msra.mxu0 0.0
  %174 = vmatprep.subr.mxu0 0.0
  %175 = vmatpush1.msra.mxu0 0.0
  %176 = vmatprep.subr.mxu0 0.0
  %177 = vmatpush1.msra.mxu0 0.0
  %178 = vmatprep.subr.mxu0 0.0
  %179 = vmatpush1.msra.mxu0 0.0
  %180 = vmatprep.subr.mxu0 0.0
  %181 = vmatpush1.msra.mxu0 0.0
  %182 = vmatprep.subr.mxu0 0.0
  %183 = vmatpush1.msra.mxu0 0.0
  %184 = vmatprep.subr.mxu0 0.0
  %185 = vmatpush1.msra.mxu0 0.0
  %186 = vmatprep.subr.mxu0 0.0
  %187 = vmatpush1.msra.mxu0 0.0
  %188 = vmatprep.subr.mxu0 0.0
  %189 = vmatpush1.msra.mxu0 0.0
  %190 = vmatprep.mubr.f32.mxu0 0.0
  %191 = vmatmul.mubr.f32.gmra.mrb[0].mxu0 0.0
  %v192 = vpop.f32.mrb[0].mxu0
  %v193 = vadd.f32 0.0, %v192
  %v194 = vpop.f32.mrb[0].mxu0
  %v195 = vadd.f32 0.0, %v194
  %196 = vdwg.mxu0
  %197 = vmatprep.subr.mxu0 %v65
  %198 = vmatpush1.msra.mxu0 %v64
  %199 = vmatprep.subr.mxu0 %v69
  %200 = vmatpush1.msra.mxu0 %v68
  %201 = vmatprep.subr.mxu0 %v73
  %202 = vmatpush1.msra.mxu0 %v72
  %203 = vmatprep.subr.mxu0 %v77
  %204 = vmatpush1.msra.mxu0 %v76
  %205 = vmatprep.subr.mxu0 %v81
  %206 = vmatpush1.msra.mxu0 %v80
  %207 = vmatprep.subr.mxu0 %v85
  %208 = vmatpush1.msra.mxu0 %v84
  %209 = vmatprep.subr.mxu0 %v89
  %210 = vmatpush1.msra.mxu0 %v88
  %211 = vmatprep.subr.mxu0 %v93
  %212 = vmatpush1.msra.mxu0 %v92
  %213 = vmatprep.subr.mxu0 %v97
  %214 = vmatpush1.msra.mxu0 %v96
  %215 = vmatprep.subr.mxu0 %v101
  %216 = vmatpush1.msra.mxu0 %v100
  %217 = vmatprep.subr.mxu0 %v105
  %218 = vmatpush1.msra.mxu0 %v104
  %219 = vmatprep.subr.mxu0 %v109
  %220 = vmatpush1.msra.mxu0 %v108
  %221 = vmatprep.subr.mxu0 %v113
  %222 = vmatpush1.msra.mxu0 %v112
  %223 = vmatprep.subr.mxu0 %v117
  %224 = vmatpush1.msra.mxu0 %v116
  %225 = vmatprep.subr.mxu0 %v121
  %226 = vmatpush1.msra.mxu0 %v120
  %227 = vmatprep.subr.mxu0 %v125
  %228 = vmatpush1.msra.mxu0 %v124
  %229 = vmatprep.subr.mxu0 0.0
  %230 = vmatpush1.msra.mxu0 0.0
  %231 = vmatprep.subr.mxu0 0.0
  %232 = vmatpush1.msra.mxu0 0.0
  %233 = vmatprep.subr.mxu0 0.0
  %234 = vmatpush1.msra.mxu0 0.0
  %235 = vmatprep.subr.mxu0 0.0
  %236 = vmatpush1.msra.mxu0 0.0
  %237 = vmatprep.subr.mxu0 0.0
  %238 = vmatpush1.msra.mxu0 0.0
  %239 = vmatprep.subr.mxu0 0.0
  %240 = vmatpush1.msra.mxu0 0.0
  %241 = vmatprep.subr.mxu0 0.0
  %242 = vmatpush1.msra.mxu0 0.0
  %243 = vmatprep.subr.mxu0 0.0
  %244 = vmatpush1.msra.mxu0 0.0
  %245 = vmatprep.subr.mxu0 0.0
  %246 = vmatpush1.msra.mxu0 0.0
  %247 = vmatprep.subr.mxu0 0.0
  %248 = vmatpush1.msra.mxu0 0.0
  %249 = vmatprep.subr.mxu0 0.0
  %250 = vmatpush1.msra.mxu0 0.0
  %251 = vmatprep.subr.mxu0 0.0
  %252 = vmatpush1.msra.mxu0 0.0
  %253 = vmatprep.subr.mxu0 0.0
  %254 = vmatpush1.msra.mxu0 0.0
  %255 = vmatprep.subr.mxu0 0.0
  %256 = vmatpush1.msra.mxu0 0.0
  %257 = vmatprep.subr.mxu0 0.0
  %258 = vmatpush1.msra.mxu0 0.0
  %259 = vmatprep.subr.mxu0 0.0
  %260 = vmatpush1.msra.mxu0 0.0
  %261 = vmatprep.mubr.f32.mxu0 0.0
  %262 = vmatmul.mubr.f32.gmra.mrb[0].mxu0 0.0
  %v263 = vpop.f32.mrb[0].mxu0
  %v264 = vadd.f32 0.0, %v263
  %v265 = vpop.f32.mrb[0].mxu0
  %v266 = vadd.f32 0.0, %v265
  %267 = vdwg.mxu0
  %v268 = vadd.f32 %v60, %v193
  %v269 = vadd.f32 %v61, %v195
  %v270 = vxor.u32 %v268, 2147483648
  %v271 = vxor.u32 %v269, 2147483648
  %v272 = vmul.f32 %v270, 1.442695
  %v273 = vpow.pop %v272
  %v274 = vmul.f32 %v271, 1.442695
  %v275 = vpow.pop %v274
  %v276 = vadd.f32 %v273, 1.0
  %v277 = vadd.f32 %v275, 1.0
  %v278 = vrcp.pop %v276
  %v279 = vmul.f32 1.0, %v278
  %v280 = vrcp.pop %v277
  %v281 = vmul.f32 1.0, %v280
  %v282 = vtanh.pop %v269
  %v283 = vmul.f32 %v279, 0.0
  %285 = vrot.lane.b32.xlu0 %v282, 64
  %v286 = vpop.permute.xlu0 %285
  %v288 = vmul.f32 %v279, %v286
  %290 = vrot.lane.b32.xlu0 %v288, 64
  %v291 = vpop.permute.xlu0 %290
  %v293 = vadd.f32 %v283, %v291
  %v294 = vtanh.pop %v293
  %296 = vrot.lane.b32.xlu0 %v294, 64
  %v297 = vpop.permute.xlu0 %296
  %v299 = vmul.f32 %v281, %v297
  %v300 = vld [vmem:[%s2] sm:$0xff]
  %v301 = vld [vmem:[%s2 + $0x8] sm:$0xff]
  %v302 = vld [vmem:[%s2 + $0x10] sm:$0xff]
  %v303 = vld [vmem:[%s2 + $0x18] sm:$0xff]
  %v304 = vld [vmem:[%s2 + $0x20] sm:$0xff]
  %v305 = vld [vmem:[%s2 + $0x28] sm:$0xff]
  %v306 = vld [vmem:[%s2 + $0x30] sm:$0xff]
  %v307 = vld [vmem:[%s2 + $0x38] sm:$0xff]
  %v308 = vld [vmem:[%s2 + $0x40] sm:$0xff]
  %v309 = vld [vmem:[%s2 + $0x48] sm:$0xff]
  %v310 = vld [vmem:[%s2 + $0x50] sm:$0xff]
  %v311 = vld [vmem:[%s2 + $0x58] sm:$0xff]
  %v312 = vld [vmem:[%s2 + $0x60] sm:$0xff]
  %v313 = vld [vmem:[%s2 + $0x68] sm:$0xff]
  %v314 = vld [vmem:[%s2 + $0x70] sm:$0xff]
  %v315 = vld [vmem:[%s2 + $0x78] sm:$0xff]
  %vm316 = vcmask 523264
  %v318 = vsel %vm316, %v299, 0
  %320 = vmatprep.subr.mxu0 %v301
  %321 = vmatpush1.msra.mxu0 %v300
  %322 = vmatprep.subr.mxu0 %v303
  %323 = vmatpush1.msra.mxu0 %v302
  %324 = vmatprep.subr.mxu0 %v305
  %325 = vmatpush1.msra.mxu0 %v304
  %326 = vmatprep.subr.mxu0 %v307
  %327 = vmatpush1.msra.mxu0 %v306
  %328 = vmatprep.subr.mxu0 %v309
  %329 = vmatpush1.msra.mxu0 %v308
  %330 = vmatprep.subr.mxu0 %v311
  %331 = vmatpush1.msra.mxu0 %v310
  %332 = vmatprep.subr.mxu0 %v313
  %333 = vmatpush1.msra.mxu0 %v312
  %334 = vmatprep.subr.mxu0 %v315
  %335 = vmatpush1.msra.mxu0 %v314
  %336 = vmatprep.subr.mxu0 0.0
  %337 = vmatpush1.msra.mxu0 0.0
  %338 = vmatprep.subr.mxu0 0.0
  %339 = vmatpush1.msra.mxu0 0.0
  %340 = vmatprep.subr.mxu0 0.0
  %341 = vmatpush1.msra.mxu0 0.0
  %342 = vmatprep.subr.mxu0 0.0
  %343 = vmatpush1.msra.mxu0 0.0
  %344 = vmatprep.subr.mxu0 0.0
  %345 = vmatpush1.msra.mxu0 0.0
  %346 = vmatprep.subr.mxu0 0.0
  %347 = vmatpush1.msra.mxu0 0.0
  %348 = vmatprep.subr.mxu0 0.0
  %349 = vmatpush1.msra.mxu0 0.0
  %350 = vmatprep.subr.mxu0 0.0
  %351 = vmatpush1.msra.mxu0 0.0
  %352 = vmatprep.subr.mxu0 0.0
  %353 = vmatpush1.msra.mxu0 0.0
  %354 = vmatprep.subr.mxu0 0.0
  %355 = vmatpush1.msra.mxu0 0.0
  %356 = vmatprep.subr.mxu0 0.0
  %357 = vmatpush1.msra.mxu0 0.0
  %358 = vmatprep.subr.mxu0 0.0
  %359 = vmatpush1.msra.mxu0 0.0
  %360 = vmatprep.subr.mxu0 0.0
  %361 = vmatpush1.msra.mxu0 0.0
  %362 = vmatprep.subr.mxu0 0.0
  %363 = vmatpush1.msra.mxu0 0.0
  %364 = vmatprep.subr.mxu0 0.0
  %365 = vmatpush1.msra.mxu0 0.0
  %366 = vmatprep.subr.mxu0 0.0
  %367 = vmatpush1.msra.mxu0 0.0
  %368 = vmatprep.subr.mxu0 0.0
  %369 = vmatpush1.msra.mxu0 0.0
  %370 = vmatprep.subr.mxu0 0.0
  %371 = vmatpush1.msra.mxu0 0.0
  %372 = vmatprep.subr.mxu0 0.0
  %373 = vmatpush1.msra.mxu0 0.0
  %374 = vmatprep.subr.mxu0 0.0
  %375 = vmatpush1.msra.mxu0 0.0
  %376 = vmatprep.subr.mxu0 0.0
  %377 = vmatpush1.msra.mxu0 0.0
  %378 = vmatprep.subr.mxu0 0.0
  %379 = vmatpush1.msra.mxu0 0.0
  %380 = vmatprep.subr.mxu0 0.0
  %381 = vmatpush1.msra.mxu0 0.0
  %382 = vmatprep.subr.mxu0 0.0
  %383 = vmatpush1.msra.mxu0 0.0
  %384 = vmatprep.mubr.f32.mxu0 0.0
  %385 = vmatmul.mubr.f32.gmra.mrb[0].mxu0 %v318
  %v386 = vpop.f32.mrb[0].mxu0
  %v387 = vadd.f32 %v264, %v386
  %v388 = vpop.f32.mrb[0].mxu0
  %v389 = vadd.f32 %v266, %v388
  %390 = vdwg.mxu0
  %v391 = vadd.f32 %v387, %v49
  %v392 = vadd.f32 %v389, %v53
  %v393 = vxor.u32 %v391, 2147483648
  %v394 = vxor.u32 %v392, 2147483648
  %v395 = vmul.f32 %v393, 1.442695
  %v396 = vpow.pop %v395
  %v397 = vmul.f32 %v394, 1.442695
  %v398 = vpow.pop %v397
  %v399 = vadd.f32 %v396, 1.0
  %v400 = vadd.f32 %v398, 1.0
  %v401 = vrcp.pop %v399
  %v402 = vmul.f32 1.0, %v401
  %v403 = vrcp.pop %v400
  %v404 = vmul.f32 1.0, %v403
  %v405 = vtanh.pop %v392
  %v406 = vmul.f32 %v402, 0.0
  %408 = vrot.lane.b32.xlu0 %v405, 64
  %v409 = vpop.permute.xlu0 %408
  %v411 = vmul.f32 %v402, %v409
  %413 = vrot.lane.b32.xlu0 %v411, 64
  %v414 = vpop.permute.xlu0 %413
  %v416 = vadd.f32 %v406, %v414
  %v417 = vtanh.pop %v416
  %419 = vrot.lane.b32.xlu0 %v417, 64
  %v420 = vpop.permute.xlu0 %419
  %v422 = vmul.f32 %v404, %v420
  %424 = vrot.lane.b32.xlu0 %v422, 64
  %v425 = vpop.permute.xlu0 %424
  %v427 = vsel %vm316, %v299, %v425
  %v429 = vlaneseq
  %v430 = vshrl.u32 %v429, 7
  %v431 = vsub.s32 0, %v430
  %v432 = vrot.slane %v56, %v431
  %v434 = vmul.f32 %v422, %v432
  %v435 = vsel %vm316, %v434, 0.0
  %436 = vadd.xlane.f32.xlu0 %v435
  %v437 = vpop.xlane.xlu0 %436
  %v439 = vlaneseq
  %v440 = vshrl.u32 %v439, 7
  %v441 = vsub.s32 0, %v440
  %v442 = vrot.slane %v57, %v441
  %v444 = vadd.f32 %v437, %v442
  %vm445 = vcmp.eq.s32.totalorder %v59, 0
  %v446 = vsel %vm445, 1, 0
  %vm447 = vcmp.eq.s32.totalorder %v446, 1
  %449 = vset.pattern.permute.xlu0 0
  %450 = vperm.xlu0 %449, %v444
  %v451 = vpop.permute.xlu0 %450
  %v453 = vsel %vm447, %v451, 0.0
  %s454 = scalar_lea.vmem %s0, 16
  %v455 = vld [vmem:[%s454] sm:$0xff]
  %v456 = vld [vmem:[%s454 + $0x8] sm:$0xff]
  %457 = vmatprep.subr.mxu0 %v63
  %458 = vmatpush1.msra.mxu0 %v62
  %459 = vmatprep.subr.mxu0 %v67
  %460 = vmatpush1.msra.mxu0 %v66
  %461 = vmatprep.subr.mxu0 %v71
  %462 = vmatpush1.msra.mxu0 %v70
  %463 = vmatprep.subr.mxu0 %v75
  %464 = vmatpush1.msra.mxu0 %v74
  %465 = vmatprep.subr.mxu0 %v79
  %466 = vmatpush1.msra.mxu0 %v78
  %467 = vmatprep.subr.mxu0 %v83
  %468 = vmatpush1.msra.mxu0 %v82
  %469 = vmatprep.subr.mxu0 %v87
  %470 = vmatpush1.msra.mxu0 %v86
  %471 = vmatprep.subr.mxu0 %v91
  %472 = vmatpush1.msra.mxu0 %v90
  %473 = vmatprep.subr.mxu0 %v95
  %474 = vmatpush1.msra.mxu0 %v94
  %475 = vmatprep.subr.mxu0 %v99
  %476 = vmatpush1.msra.mxu0 %v98
  %477 = vmatprep.subr.mxu0 %v103
  %478 = vmatpush1.msra.mxu0 %v102
  %479 = vmatprep.subr.mxu0 %v107
  %480 = vmatpush1.msra.mxu0 %v106
  %481 = vmatprep.subr.mxu0 %v111
  %482 = vmatpush1.msra.mxu0 %v110
  %483 = vmatprep.subr.mxu0 %v115
  %484 = vmatpush1.msra.mxu0 %v114
  %485 = vmatprep.subr.mxu0 %v119
  %486 = vmatpush1.msra.mxu0 %v118
  %487 = vmatprep.subr.mxu0 %v123
  %488 = vmatpush1.msra.mxu0 %v122
  %489 = vmatprep.subr.mxu0 0.0
  %490 = vmatpush1.msra.mxu0 0.0
  %491 = vmatprep.subr.mxu0 0.0
  %492 = vmatpush1.msra.mxu0 0.0
  %493 = vmatprep.subr.mxu0 0.0
  %494 = vmatpush1.msra.mxu0 0.0
  %495 = vmatprep.subr.mxu0 0.0
  %496 = vmatpush1.msra.mxu0 0.0
  %497 = vmatprep.subr.mxu0 0.0
  %498 = vmatpush1.msra.mxu0 0.0
  %499 = vmatprep.subr.mxu0 0.0
  %500 = vmatpush1.msra.mxu0 0.0
  %501 = vmatprep.subr.mxu0 0.0
  %502 = vmatpush1.msra.mxu0 0.0
  %503 = vmatprep.subr.mxu0 0.0
  %504 = vmatpush1.msra.mxu0 0.0
  %505 = vmatprep.subr.mxu0 0.0
  %506 = vmatpush1.msra.mxu0 0.0
  %507 = vmatprep.subr.mxu0 0.0
  %508 = vmatpush1.msra.mxu0 0.0
  %509 = vmatprep.subr.mxu0 0.0
  %510 = vmatpush1.msra.mxu0 0.0
  %511 = vmatprep.subr.mxu0 0.0
  %512 = vmatpush1.msra.mxu0 0.0
  %513 = vmatprep.subr.mxu0 0.0
  %514 = vmatpush1.msra.mxu0 0.0
  %515 = vmatprep.subr.mxu0 0.0
  %516 = vmatpush1.msra.mxu0 0.0
  %517 = vmatprep.subr.mxu0 0.0
  %518 = vmatpush1.msra.mxu0 0.0
  %519 = vmatprep.subr.mxu0 0.0
  %520 = vmatpush1.msra.mxu0 0.0
  %521 = vmatprep.mubr.f32.mxu0 0.0
  %522 = vmatmul.mubr.f32.gmra.mrb[0].mxu0 %v427
  %v523 = vpop.f32.mrb[0].mxu0
  %v524 = vadd.f32 0.0, %v523
  %v525 = vpop.f32.mrb[0].mxu0
  %v526 = vadd.f32 0.0, %v525
  %527 = vdwg.mxu0
  %528 = vmatprep.subr.mxu0 %v65
  %529 = vmatpush1.msra.mxu0 %v64
  %530 = vmatprep.subr.mxu0 %v69
  %531 = vmatpush1.msra.mxu0 %v68
  %532 = vmatprep.subr.mxu0 %v73
  %533 = vmatpush1.msra.mxu0 %v72
  %534 = vmatprep.subr.mxu0 %v77
  %535 = vmatpush1.msra.mxu0 %v76
  %536 = vmatprep.subr.mxu0 %v81
  %537 = vmatpush1.msra.mxu0 %v80
  %538 = vmatprep.subr.mxu0 %v85
  %539 = vmatpush1.msra.mxu0 %v84
  %540 = vmatprep.subr.mxu0 %v89
  %541 = vmatpush1.msra.mxu0 %v88
  %542 = vmatprep.subr.mxu0 %v93
  %543 = vmatpush1.msra.mxu0 %v92
  %544 = vmatprep.subr.mxu0 %v97
  %545 = vmatpush1.msra.mxu0 %v96
  %546 = vmatprep.subr.mxu0 %v101
  %547 = vmatpush1.msra.mxu0 %v100
  %548 = vmatprep.subr.mxu0 %v105
  %549 = vmatpush1.msra.mxu0 %v104
  %550 = vmatprep.subr.mxu0 %v109
  %551 = vmatpush1.msra.mxu0 %v108
  %552 = vmatprep.subr.mxu0 %v113
  %553 = vmatpush1.msra.mxu0 %v112
  %554 = vmatprep.subr.mxu0 %v117
  %555 = vmatpush1.msra.mxu0 %v116
  %556 = vmatprep.subr.mxu0 %v121
  %557 = vmatpush1.msra.mxu0 %v120
  %558 = vmatprep.subr.mxu0 %v125
  %559 = vmatpush1.msra.mxu0 %v124
  %560 = vmatprep.subr.mxu0 0.0
  %561 = vmatpush1.msra.mxu0 0.0
  %562 = vmatprep.subr.mxu0 0.0
  %563 = vmatpush1.msra.mxu0 0.0
  %564 = vmatprep.subr.mxu0 0.0
  %565 = vmatpush1.msra.mxu0 0.0
  %566 = vmatprep.subr.mxu0 0.0
  %567 = vmatpush1.msra.mxu0 0.0
  %568 = vmatprep.subr.mxu0 0.0
  %569 = vmatpush1.msra.mxu0 0.0
  %570 = vmatprep.subr.mxu0 0.0
  %571 = vmatpush1.msra.mxu0 0.0
  %572 = vmatprep.subr.mxu0 0.0
  %573 = vmatpush1.msra.mxu0 0.0
  %574 = vmatprep.subr.mxu0 0.0
  %575 = vmatpush1.msra.mxu0 0.0
  %576 = vmatprep.subr.mxu0 0.0
  %577 = vmatpush1.msra.mxu0 0.0
  %578 = vmatprep.subr.mxu0 0.0
  %579 = vmatpush1.msra.mxu0 0.0
  %580 = vmatprep.subr.mxu0 0.0
  %581 = vmatpush1.msra.mxu0 0.0
  %582 = vmatprep.subr.mxu0 0.0
  %583 = vmatpush1.msra.mxu0 0.0
  %584 = vmatprep.subr.mxu0 0.0
  %585 = vmatpush1.msra.mxu0 0.0
  %586 = vmatprep.subr.mxu0 0.0
  %587 = vmatpush1.msra.mxu0 0.0
  %588 = vmatprep.subr.mxu0 0.0
  %589 = vmatpush1.msra.mxu0 0.0
  %590 = vmatprep.subr.mxu0 0.0
  %591 = vmatpush1.msra.mxu0 0.0
  %592 = vmatprep.mubr.f32.mxu0 0.0
  %593 = vmatmul.mubr.f32.gmra.mrb[0].mxu0 %v427
  %v594 = vpop.f32.mrb[0].mxu0
  %v595 = vadd.f32 0.0, %v594
  %v596 = vpop.f32.mrb[0].mxu0
  %v597 = vadd.f32 0.0, %v596
  %598 = vdwg.mxu0
  %v599 = vadd.f32 %v455, %v524
  %v600 = vadd.f32 %v456, %v526
  %v601 = vxor.u32 %v599, 2147483648
  %v602 = vxor.u32 %v600, 2147483648
  %v603 = vmul.f32 %v601, 1.442695
  %v604 = vpow.pop %v603
  %v605 = vmul.f32 %v602, 1.442695
  %v606 = vpow.pop %v605
  %v607 = vadd.f32 %v604, 1.0
  %v608 = vadd.f32 %v606, 1.0
  %v609 = vrcp.pop %v607
  %v610 = vmul.f32 1.0, %v609
  %v611 = vrcp.pop %v608
  %v612 = vmul.f32 1.0, %v611
  %v613 = vtanh.pop %v600
  %v614 = vmul.f32 %v610, %v293
  %616 = vrot.lane.b32.xlu0 %v613, 64
  %v617 = vpop.permute.xlu0 %616
  %v619 = vmul.f32 %v610, %v617
  %621 = vrot.lane.b32.xlu0 %v619, 64
  %v622 = vpop.permute.xlu0 %621
  %v624 = vadd.f32 %v614, %v622
  %v625 = vtanh.pop %v624
  %627 = vrot.lane.b32.xlu0 %v625, 64
  %v628 = vpop.permute.xlu0 %627
  %v630 = vmul.f32 %v612, %v628
  %v632 = vsel %vm316, %v630, 0
  %634 = vmatprep.subr.mxu0 %v301
  %635 = vmatpush1.msra.mxu0 %v300
  %636 = vmatprep.subr.mxu0 %v303
  %637 = vmatpush1.msra.mxu0 %v302
  %638 = vmatprep.subr.mxu0 %v305
  %639 = vmatpush1.msra.mxu0 %v304
  %640 = vmatprep.subr.mxu0 %v307
  %641 = vmatpush1.msra.mxu0 %v306
  %642 = vmatprep.subr.mxu0 %v309
  %643 = vmatpush1.msra.mxu0 %v308
  %644 = vmatprep.subr.mxu0 %v311
  %645 = vmatpush1.msra.mxu0 %v310
  %646 = vmatprep.subr.mxu0 %v313
  %647 = vmatpush1.msra.mxu0 %v312
  %648 = vmatprep.subr.mxu0 %v315
  %649 = vmatpush1.msra.mxu0 %v314
  %650 = vmatprep.subr.mxu0 0.0
  %651 = vmatpush1.msra.mxu0 0.0
  %652 = vmatprep.subr.mxu0 0.0
  %653 = vmatpush1.msra.mxu0 0.0
  %654 = vmatprep.subr.mxu0 0.0
  %655 = vmatpush1.msra.mxu0 0.0
  %656 = vmatprep.subr.mxu0 0.0
  %657 = vmatpush1.msra.mxu0 0.0
  %658 = vmatprep.subr.mxu0 0.0
  %659 = vmatpush1.msra.mxu0 0.0
  %660 = vmatprep.subr.mxu0 0.0
  %661 = vmatpush1.msra.mxu0 0.0
  %662 = vmatprep.subr.mxu0 0.0
  %663 = vmatpush1.msra.mxu0 0.0
  %664 = vmatprep.subr.mxu0 0.0
  %665 = vmatpush1.msra.mxu0 0.0
  %666 = vmatprep.subr.mxu0 0.0
  %667 = vmatpush1.msra.mxu0 0.0
  %668 = vmatprep.subr.mxu0 0.0
  %669 = vmatpush1.msra.mxu0 0.0
  %670 = vmatprep.subr.mxu0 0.0
  %671 = vmatpush1.msra.mxu0 0.0
  %672 = vmatprep.subr.mxu0 0.0
  %673 = vmatpush1.msra.mxu0 0.0
  %674 = vmatprep.subr.mxu0 0.0
  %675 = vmatpush1.msra.mxu0 0.0
  %676 = vmatprep.subr.mxu0 0.0
  %677 = vmatpush1.msra.mxu0 0.0
  %678 = vmatprep.subr.mxu0 0.0
  %679 = vmatpush1.msra.mxu0 0.0
  %680 = vmatprep.subr.mxu0 0.0
  %681 = vmatpush1.msra.mxu0 0.0
  %682 = vmatprep.subr.mxu0 0.0
  %683 = vmatpush1.msra.mxu0 0.0
  %684 = vmatprep.subr.mxu0 0.0
  %685 = vmatpush1.msra.mxu0 0.0
  %686 = vmatprep.subr.mxu0 0.0
  %687 = vmatpush1.msra.mxu0 0.0
  %688 = vmatprep.subr.mxu0 0.0
  %689 = vmatpush1.msra.mxu0 0.0
  %690 = vmatprep.subr.mxu0 0.0
  %691 = vmatpush1.msra.mxu0 0.0
  %692 = vmatprep.subr.mxu0 0.0
  %693 = vmatpush1.msra.mxu0 0.0
  %694 = vmatprep.subr.mxu0 0.0
  %695 = vmatpush1.msra.mxu0 0.0
  %696 = vmatprep.subr.mxu0 0.0
  %697 = vmatpush1.msra.mxu0 0.0
  %698 = vmatprep.mubr.f32.mxu0 0.0
  %699 = vmatmul.mubr.f32.gmra.mrb[0].mxu0 %v632
  %v700 = vpop.f32.mrb[0].mxu0
  %v701 = vadd.f32 %v595, %v700
  %v702 = vpop.f32.mrb[0].mxu0
  %v703 = vadd.f32 %v597, %v702
  %704 = vdwg.mxu0
  %v705 = vadd.f32 %v701, %v49
  %v706 = vadd.f32 %v703, %v53
  %v707 = vxor.u32 %v705, 2147483648
  %v708 = vxor.u32 %v706, 2147483648
  %v709 = vmul.f32 %v707, 1.442695
  %v710 = vpow.pop %v709
  %v711 = vmul.f32 %v708, 1.442695
  %v712 = vpow.pop %v711
  %v713 = vadd.f32 %v710, 1.0
  %v714 = vadd.f32 %v712, 1.0
  %v715 = vrcp.pop %v713
  %v716 = vmul.f32 1.0, %v715
  %v717 = vrcp.pop %v714
  %v718 = vmul.f32 1.0, %v717
  %v719 = vtanh.pop %v706
  %v720 = vmul.f32 %v716, %v416
  %722 = vrot.lane.b32.xlu0 %v719, 64
  %v723 = vpop.permute.xlu0 %722
  %v725 = vmul.f32 %v716, %v723
  %727 = vrot.lane.b32.xlu0 %v725, 64
  %v728 = vpop.permute.xlu0 %727
  %v730 = vadd.f32 %v720, %v728
  %v731 = vtanh.pop %v730
  %733 = vrot.lane.b32.xlu0 %v731, 64
  %v734 = vpop.permute.xlu0 %733
  %v736 = vmul.f32 %v718, %v734
  %738 = vrot.lane.b32.xlu0 %v736, 64
  %v739 = vpop.permute.xlu0 %738
  %v741 = vsel %vm316, %v630, %v739
  %v742 = vmul.f32 %v736, %v432
  %v743 = vsel %vm316, %v742, 0.0
  %744 = vadd.xlane.f32.xlu0 %v743
  %v745 = vpop.xlane.xlu0 %744
  %v746 = vadd.f32 %v745, %v442
  %vm747 = vcmp.eq.s32.totalorder %v59, 1
  %v748 = vsel %vm747, 1, 0
  %vm749 = vcmp.eq.s32.totalorder %v748, 1
  %751 = vset.pattern.permute.xlu0 0
  %752 = vperm.xlu0 %751, %v746
  %v753 = vpop.permute.xlu0 %752
  %v755 = vsel %vm749, %v753, %v453
  %s756 = scalar_lea.vmem %s0, 32
  %v757 = vld [vmem:[%s756] sm:$0xff]
  %v758 = vld [vmem:[%s756 + $0x8] sm:$0xff]
  %759 = vmatprep.subr.mxu0 %v63
  %760 = vmatpush1.msra.mxu0 %v62
  %761 = vmatprep.subr.mxu0 %v67
  %762 = vmatpush1.msra.mxu0 %v66
  %763 = vmatprep.subr.mxu0 %v71
  %764 = vmatpush1.msra.mxu0 %v70
  %765 = vmatprep.subr.mxu0 %v75
  %766 = vmatpush1.msra.mxu0 %v74
  %767 = vmatprep.subr.mxu0 %v79
  %768 = vmatpush1.msra.mxu0 %v78
  %769 = vmatprep.subr.mxu0 %v83
  %770 = vmatpush1.msra.mxu0 %v82
  %771 = vmatprep.subr.mxu0 %v87
  %772 = vmatpush1.msra.mxu0 %v86
  %773 = vmatprep.subr.mxu0 %v91
  %774 = vmatpush1.msra.mxu0 %v90
  %775 = vmatprep.subr.mxu0 %v95
  %776 = vmatpush1.msra.mxu0 %v94
  %777 = vmatprep.subr.mxu0 %v99
  %778 = vmatpush1.msra.mxu0 %v98
  %779 = vmatprep.subr.mxu0 %v103
  %780 = vmatpush1.msra.mxu0 %v102
  %781 = vmatprep.subr.mxu0 %v107
  %782 = vmatpush1.msra.mxu0 %v106
  %783 = vmatprep.subr.mxu0 %v111
  %784 = vmatpush1.msra.mxu0 %v110
  %785 = vmatprep.subr.mxu0 %v115
  %786 = vmatpush1.msra.mxu0 %v114
  %787 = vmatprep.subr.mxu0 %v119
  %788 = vmatpush1.msra.mxu0 %v118
  %789 = vmatprep.subr.mxu0 %v123
  %790 = vmatpush1.msra.mxu0 %v122
  %791 = vmatprep.subr.mxu0 0.0
  %792 = vmatpush1.msra.mxu0 0.0
  %793 = vmatprep.subr.mxu0 0.0
  %794 = vmatpush1.msra.mxu0 0.0
  %795 = vmatprep.subr.mxu0 0.0
  %796 = vmatpush1.msra.mxu0 0.0
  %797 = vmatprep.subr.mxu0 0.0
  %798 = vmatpush1.msra.mxu0 0.0
  %799 = vmatprep.subr.mxu0 0.0
  %800 = vmatpush1.msra.mxu0 0.0
  %801 = vmatprep.subr.mxu0 0.0
  %802 = vmatpush1.msra.mxu0 0.0
  %803 = vmatprep.subr.mxu0 0.0
  %804 = vmatpush1.msra.mxu0 0.0
  %805 = vmatprep.subr.mxu0 0.0
  %806 = vmatpush1.msra.mxu0 0.0
  %807 = vmatprep.subr.mxu0 0.0
  %808 = vmatpush1.msra.mxu0 0.0
  %809 = vmatprep.subr.mxu0 0.0
  %810 = vmatpush1.msra.mxu0 0.0
  %811 = vmatprep.subr.mxu0 0.0
  %812 = vmatpush1.msra.mxu0 0.0
  %813 = vmatprep.subr.mxu0 0.0
  %814 = vmatpush1.msra.mxu0 0.0
  %815 = vmatprep.subr.mxu0 0.0
  %816 = vmatpush1.msra.mxu0 0.0
  %817 = vmatprep.subr.mxu0 0.0
  %818 = vmatpush1.msra.mxu0 0.0
  %819 = vmatprep.subr.mxu0 0.0
  %820 = vmatpush1.msra.mxu0 0.0
  %821 = vmatprep.subr.mxu0 0.0
  %822 = vmatpush1.msra.mxu0 0.0
  %823 = vmatprep.mubr.f32.mxu0 0.0
  %824 = vmatmul.mubr.f32.gmra.mrb[0].mxu0 %v741
  %v825 = vpop.f32.mrb[0].mxu0
  %v826 = vadd.f32 0.0, %v825
  %v827 = vpop.f32.mrb[0].mxu0
  %v828 = vadd.f32 0.0, %v827
  %829 = vdwg.mxu0
  %830 = vmatprep.subr.mxu0 %v65
  %831 = vmatpush1.msra.mxu0 %v64
  %832 = vmatprep.subr.mxu0 %v69
  %833 = vmatpush1.msra.mxu0 %v68
  %834 = vmatprep.subr.mxu0 %v73
  %835 = vmatpush1.msra.mxu0 %v72
  %836 = vmatprep.subr.mxu0 %v77
  %837 = vmatpush1.msra.mxu0 %v76
  %838 = vmatprep.subr.mxu0 %v81
  %839 = vmatpush1.msra.mxu0 %v80
  %840 = vmatprep.subr.mxu0 %v85
  %841 = vmatpush1.msra.mxu0 %v84
  %842 = vmatprep.subr.mxu0 %v89
  %843 = vmatpush1.msra.mxu0 %v88
  %844 = vmatprep.subr.mxu0 %v93
  %845 = vmatpush1.msra.mxu0 %v92
  %846 = vmatprep.subr.mxu0 %v97
  %847 = vmatpush1.msra.mxu0 %v96
  %848 = vmatprep.subr.mxu0 %v101
  %849 = vmatpush1.msra.mxu0 %v100
  %850 = vmatprep.subr.mxu0 %v105
  %851 = vmatpush1.msra.mxu0 %v104
  %852 = vmatprep.subr.mxu0 %v109
  %853 = vmatpush1.msra.mxu0 %v108
  %854 = vmatprep.subr.mxu0 %v113
  %855 = vmatpush1.msra.mxu0 %v112
  %856 = vmatprep.subr.mxu0 %v117
  %857 = vmatpush1.msra.mxu0 %v116
  %858 = vmatprep.subr.mxu0 %v121
  %859 = vmatpush1.msra.mxu0 %v120
  %860 = vmatprep.subr.mxu0 %v125
  %861 = vmatpush1.msra.mxu0 %v124
  %862 = vmatprep.subr.mxu0 0.0
  %863 = vmatpush1.msra.mxu0 0.0
  %864 = vmatprep.subr.mxu0 0.0
  %865 = vmatpush1.msra.mxu0 0.0
  %866 = vmatprep.subr.mxu0 0.0
  %867 = vmatpush1.msra.mxu0 0.0
  %868 = vmatprep.subr.mxu0 0.0
  %869 = vmatpush1.msra.mxu0 0.0
  %870 = vmatprep.subr.mxu0 0.0
  %871 = vmatpush1.msra.mxu0 0.0
  %872 = vmatprep.subr.mxu0 0.0
  %873 = vmatpush1.msra.mxu0 0.0
  %874 = vmatprep.subr.mxu0 0.0
  %875 = vmatpush1.msra.mxu0 0.0
  %876 = vmatprep.subr.mxu0 0.0
  %877 = vmatpush1.msra.mxu0 0.0
  %878 = vmatprep.subr.mxu0 0.0
  %879 = vmatpush1.msra.mxu0 0.0
  %880 = vmatprep.subr.mxu0 0.0
  %881 = vmatpush1.msra.mxu0 0.0
  %882 = vmatprep.subr.mxu0 0.0
  %883 = vmatpush1.msra.mxu0 0.0
  %884 = vmatprep.subr.mxu0 0.0
  %885 = vmatpush1.msra.mxu0 0.0
  %886 = vmatprep.subr.mxu0 0.0
  %887 = vmatpush1.msra.mxu0 0.0
  %888 = vmatprep.subr.mxu0 0.0
  %889 = vmatpush1.msra.mxu0 0.0
  %890 = vmatprep.subr.mxu0 0.0
  %891 = vmatpush1.msra.mxu0 0.0
  %892 = vmatprep.subr.mxu0 0.0
  %893 = vmatpush1.msra.mxu0 0.0
  %894 = vmatprep.mubr.f32.mxu0 0.0
  %895 = vmatmul.mubr.f32.gmra.mrb[0].mxu0 %v741
  %v896 = vpop.f32.mrb[0].mxu0
  %v897 = vadd.f32 0.0, %v896
  %v898 = vpop.f32.mrb[0].mxu0
  %v899 = vadd.f32 0.0, %v898
  %900 = vdwg.mxu0
  %v901 = vadd.f32 %v757, %v826
  %v902 = vadd.f32 %v758, %v828
  %v903 = vxor.u32 %v901, 2147483648
  %v904 = vxor.u32 %v902, 2147483648
  %v905 = vmul.f32 %v903, 1.442695
  %v906 = vpow.pop %v905
  %v907 = vmul.f32 %v904, 1.442695
  %v908 = vpow.pop %v907
  %v909 = vadd.f32 %v906, 1.0
  %v910 = vadd.f32 %v908, 1.0
  %v911 = vrcp.pop %v909
  %v912 = vmul.f32 1.0, %v911
  %v913 = vrcp.pop %v910
  %v914 = vmul.f32 1.0, %v913
  %v915 = vtanh.pop %v902
  %v916 = vmul.f32 %v912, %v624
  %918 = vrot.lane.b32.xlu0 %v915, 64
  %v919 = vpop.permute.xlu0 %918
  %v921 = vmul.f32 %v912, %v919
  %923 = vrot.lane.b32.xlu0 %v921, 64
  %v924 = vpop.permute.xlu0 %923
  %v926 = vadd.f32 %v916, %v924
  %v927 = vtanh.pop %v926
  %929 = vrot.lane.b32.xlu0 %v927, 64
  %v930 = vpop.permute.xlu0 %929
  %v932 = vmul.f32 %v914, %v930
  %v934 = vsel %vm316, %v932, 0
  %936 = vmatprep.subr.mxu0 %v301
  %937 = vmatpush1.msra.mxu0 %v300
  %938 = vmatprep.subr.mxu0 %v303
  %939 = vmatpush1.msra.mxu0 %v302
  %940 = vmatprep.subr.mxu0 %v305
  %941 = vmatpush1.msra.mxu0 %v304
  %942 = vmatprep.subr.mxu0 %v307
  %943 = vmatpush1.msra.mxu0 %v306
  %944 = vmatprep.subr.mxu0 %v309
  %945 = vmatpush1.msra.mxu0 %v308
  %946 = vmatprep.subr.mxu0 %v311
  %947 = vmatpush1.msra.mxu0 %v310
  %948 = vmatprep.subr.mxu0 %v313
  %949 = vmatpush1.msra.mxu0 %v312
  %950 = vmatprep.subr.mxu0 %v315
  %951 = vmatpush1.msra.mxu0 %v314
  %952 = vmatprep.subr.mxu0 0.0
  %953 = vmatpush1.msra.mxu0 0.0
  %954 = vmatprep.subr.mxu0 0.0
  %955 = vmatpush1.msra.mxu0 0.0
  %956 = vmatprep.subr.mxu0 0.0
  %957 = vmatpush1.msra.mxu0 0.0
  %958 = vmatprep.subr.mxu0 0.0
  %959 = vmatpush1.msra.mxu0 0.0
  %960 = vmatprep.subr.mxu0 0.0
  %961 = vmatpush1.msra.mxu0 0.0
  %962 = vmatprep.subr.mxu0 0.0
  %963 = vmatpush1.msra.mxu0 0.0
  %964 = vmatprep.subr.mxu0 0.0
  %965 = vmatpush1.msra.mxu0 0.0
  %966 = vmatprep.subr.mxu0 0.0
  %967 = vmatpush1.msra.mxu0 0.0
  %968 = vmatprep.subr.mxu0 0.0
  %969 = vmatpush1.msra.mxu0 0.0
  %970 = vmatprep.subr.mxu0 0.0
  %971 = vmatpush1.msra.mxu0 0.0
  %972 = vmatprep.subr.mxu0 0.0
  %973 = vmatpush1.msra.mxu0 0.0
  %974 = vmatprep.subr.mxu0 0.0
  %975 = vmatpush1.msra.mxu0 0.0
  %976 = vmatprep.subr.mxu0 0.0
  %977 = vmatpush1.msra.mxu0 0.0
  %978 = vmatprep.subr.mxu0 0.0
  %979 = vmatpush1.msra.mxu0 0.0
  %980 = vmatprep.subr.mxu0 0.0
  %981 = vmatpush1.msra.mxu0 0.0
  %982 = vmatprep.subr.mxu0 0.0
  %983 = vmatpush1.msra.mxu0 0.0
  %984 = vmatprep.subr.mxu0 0.0
  %985 = vmatpush1.msra.mxu0 0.0
  %986 = vmatprep.subr.mxu0 0.0
  %987 = vmatpush1.msra.mxu0 0.0
  %988 = vmatprep.subr.mxu0 0.0
  %989 = vmatpush1.msra.mxu0 0.0
  %990 = vmatprep.subr.mxu0 0.0
  %991 = vmatpush1.msra.mxu0 0.0
  %992 = vmatprep.subr.mxu0 0.0
  %993 = vmatpush1.msra.mxu0 0.0
  %994 = vmatprep.subr.mxu0 0.0
  %995 = vmatpush1.msra.mxu0 0.0
  %996 = vmatprep.subr.mxu0 0.0
  %997 = vmatpush1.msra.mxu0 0.0
  %998 = vmatprep.subr.mxu0 0.0
  %999 = vmatpush1.msra.mxu0 0.0
  %1000 = vmatprep.mubr.f32.mxu0 0.0
  %1001 = vmatmul.mubr.f32.gmra.mrb[0].mxu0 %v934
  %v1002 = vpop.f32.mrb[0].mxu0
  %v1003 = vadd.f32 %v897, %v1002
  %v1004 = vpop.f32.mrb[0].mxu0
  %v1005 = vadd.f32 %v899, %v1004
  %1006 = vdwg.mxu0
  %v1007 = vadd.f32 %v1003, %v49
  %v1008 = vadd.f32 %v1005, %v53
  %v1009 = vxor.u32 %v1007, 2147483648
  %v1010 = vxor.u32 %v1008, 2147483648
  %v1011 = vmul.f32 %v1009, 1.442695
  %v1012 = vpow.pop %v1011
  %v1013 = vmul.f32 %v1010, 1.442695
  %v1014 = vpow.pop %v1013
  %v1015 = vadd.f32 %v1012, 1.0
  %v1016 = vadd.f32 %v1014, 1.0
  %v1017 = vrcp.pop %v1015
  %v1018 = vmul.f32 1.0, %v1017
  %v1019 = vrcp.pop %v1016
  %v1020 = vmul.f32 1.0, %v1019
  %v1021 = vtanh.pop %v1008
  %v1022 = vmul.f32 %v1018, %v730
  %1024 = vrot.lane.b32.xlu0 %v1021, 64
  %v1025 = vpop.permute.xlu0 %1024
  %v1027 = vmul.f32 %v1018, %v1025
  %1029 = vrot.lane.b32.xlu0 %v1027, 64
  %v1030 = vpop.permute.xlu0 %1029
  %v1032 = vadd.f32 %v1022, %v1030
  %v1033 = vtanh.pop %v1032
  %1035 = vrot.lane.b32.xlu0 %v1033, 64
  %v1036 = vpop.permute.xlu0 %1035
  %v1038 = vmul.f32 %v1020, %v1036
  %1040 = vrot.lane.b32.xlu0 %v1038, 64
  %v1041 = vpop.permute.xlu0 %1040
  %v1043 = vsel %vm316, %v932, %v1041
  %v1044 = vmul.f32 %v1038, %v432
  %v1045 = vsel %vm316, %v1044, 0.0
  %1046 = vadd.xlane.f32.xlu0 %v1045
  %v1047 = vpop.xlane.xlu0 %1046
  %v1048 = vadd.f32 %v1047, %v442
  %vm1049 = vcmp.eq.s32.totalorder %v59, 2
  %v1050 = vsel %vm1049, 1, 0
  %vm1051 = vcmp.eq.s32.totalorder %v1050, 1
  %1053 = vset.pattern.permute.xlu0 0
  %1054 = vperm.xlu0 %1053, %v1048
  %v1055 = vpop.permute.xlu0 %1054
  %v1057 = vsel %vm1051, %v1055, %v755
  %s1058 = scalar_lea.vmem %s0, 48
  %v1059 = vld [vmem:[%s1058] sm:$0xff]
  %v1060 = vld [vmem:[%s1058 + $0x8] sm:$0xff]
  %1061 = vmatprep.subr.mxu0 %v63
  %1062 = vmatpush1.msra.mxu0 %v62
  %1063 = vmatprep.subr.mxu0 %v67
  %1064 = vmatpush1.msra.mxu0 %v66
  %1065 = vmatprep.subr.mxu0 %v71
  %1066 = vmatpush1.msra.mxu0 %v70
  %1067 = vmatprep.subr.mxu0 %v75
  %1068 = vmatpush1.msra.mxu0 %v74
  %1069 = vmatprep.subr.mxu0 %v79
  %1070 = vmatpush1.msra.mxu0 %v78
  %1071 = vmatprep.subr.mxu0 %v83
  %1072 = vmatpush1.msra.mxu0 %v82
  %1073 = vmatprep.subr.mxu0 %v87
  %1074 = vmatpush1.msra.mxu0 %v86
  %1075 = vmatprep.subr.mxu0 %v91
  %1076 = vmatpush1.msra.mxu0 %v90
  %1077 = vmatprep.subr.mxu0 %v95
  %1078 = vmatpush1.msra.mxu0 %v94
  %1079 = vmatprep.subr.mxu0 %v99
  %1080 = vmatpush1.msra.mxu0 %v98
  %1081 = vmatprep.subr.mxu0 %v103
  %1082 = vmatpush1.msra.mxu0 %v102
  %1083 = vmatprep.subr.mxu0 %v107
  %1084 = vmatpush1.msra.mxu0 %v106
  %1085 = vmatprep.subr.mxu0 %v111
  %1086 = vmatpush1.msra.mxu0 %v110
  %1087 = vmatprep.subr.mxu0 %v115
  %1088 = vmatpush1.msra.mxu0 %v114
  %1089 = vmatprep.subr.mxu0 %v119
  %1090 = vmatpush1.msra.mxu0 %v118
  %1091 = vmatprep.subr.mxu0 %v123
  %1092 = vmatpush1.msra.mxu0 %v122
  %1093 = vmatprep.subr.mxu0 0.0
  %1094 = vmatpush1.msra.mxu0 0.0
  %1095 = vmatprep.subr.mxu0 0.0
  %1096 = vmatpush1.msra.mxu0 0.0
  %1097 = vmatprep.subr.mxu0 0.0
  %1098 = vmatpush1.msra.mxu0 0.0
  %1099 = vmatprep.subr.mxu0 0.0
  %1100 = vmatpush1.msra.mxu0 0.0
  %1101 = vmatprep.subr.mxu0 0.0
  %1102 = vmatpush1.msra.mxu0 0.0
  %1103 = vmatprep.subr.mxu0 0.0
  %1104 = vmatpush1.msra.mxu0 0.0
  %1105 = vmatprep.subr.mxu0 0.0
  %1106 = vmatpush1.msra.mxu0 0.0
  %1107 = vmatprep.subr.mxu0 0.0
  %1108 = vmatpush1.msra.mxu0 0.0
  %1109 = vmatprep.subr.mxu0 0.0
  %1110 = vmatpush1.msra.mxu0 0.0
  %1111 = vmatprep.subr.mxu0 0.0
  %1112 = vmatpush1.msra.mxu0 0.0
  %1113 = vmatprep.subr.mxu0 0.0
  %1114 = vmatpush1.msra.mxu0 0.0
  %1115 = vmatprep.subr.mxu0 0.0
  %1116 = vmatpush1.msra.mxu0 0.0
  %1117 = vmatprep.subr.mxu0 0.0
  %1118 = vmatpush1.msra.mxu0 0.0
  %1119 = vmatprep.subr.mxu0 0.0
  %1120 = vmatpush1.msra.mxu0 0.0
  %1121 = vmatprep.subr.mxu0 0.0
  %1122 = vmatpush1.msra.mxu0 0.0
  %1123 = vmatprep.subr.mxu0 0.0
  %1124 = vmatpush1.msra.mxu0 0.0
  %1125 = vmatprep.mubr.f32.mxu0 0.0
  %1126 = vmatmul.mubr.f32.gmra.mrb[0].mxu0 %v1043
  %v1127 = vpop.f32.mrb[0].mxu0
  %v1128 = vadd.f32 0.0, %v1127
  %v1129 = vpop.f32.mrb[0].mxu0
  %v1130 = vadd.f32 0.0, %v1129
  %1131 = vdwg.mxu0
  %1132 = vmatprep.subr.mxu0 %v65
  %1133 = vmatpush1.msra.mxu0 %v64
  %1134 = vmatprep.subr.mxu0 %v69
  %1135 = vmatpush1.msra.mxu0 %v68
  %1136 = vmatprep.subr.mxu0 %v73
  %1137 = vmatpush1.msra.mxu0 %v72
  %1138 = vmatprep.subr.mxu0 %v77
  %1139 = vmatpush1.msra.mxu0 %v76
  %1140 = vmatprep.subr.mxu0 %v81
  %1141 = vmatpush1.msra.mxu0 %v80
  %1142 = vmatprep.subr.mxu0 %v85
  %1143 = vmatpush1.msra.mxu0 %v84
  %1144 = vmatprep.subr.mxu0 %v89
  %1145 = vmatpush1.msra.mxu0 %v88
  %1146 = vmatprep.subr.mxu0 %v93
  %1147 = vmatpush1.msra.mxu0 %v92
  %1148 = vmatprep.subr.mxu0 %v97
  %1149 = vmatpush1.msra.mxu0 %v96
  %1150 = vmatprep.subr.mxu0 %v101
  %1151 = vmatpush1.msra.mxu0 %v100
  %1152 = vmatprep.subr.mxu0 %v105
  %1153 = vmatpush1.msra.mxu0 %v104
  %1154 = vmatprep.subr.mxu0 %v109
  %1155 = vmatpush1.msra.mxu0 %v108
  %1156 = vmatprep.subr.mxu0 %v113
  %1157 = vmatpush1.msra.mxu0 %v112
  %1158 = vmatprep.subr.mxu0 %v117
  %1159 = vmatpush1.msra.mxu0 %v116
  %1160 = vmatprep.subr.mxu0 %v121
  %1161 = vmatpush1.msra.mxu0 %v120
  %1162 = vmatprep.subr.mxu0 %v125
  %1163 = vmatpush1.msra.mxu0 %v124
  %1164 = vmatprep.subr.mxu0 0.0
  %1165 = vmatpush1.msra.mxu0 0.0
  %1166 = vmatprep.subr.mxu0 0.0
  %1167 = vmatpush1.msra.mxu0 0.0
  %1168 = vmatprep.subr.mxu0 0.0
  %1169 = vmatpush1.msra.mxu0 0.0
  %1170 = vmatprep.subr.mxu0 0.0
  %1171 = vmatpush1.msra.mxu0 0.0
  %1172 = vmatprep.subr.mxu0 0.0
  %1173 = vmatpush1.msra.mxu0 0.0
  %1174 = vmatprep.subr.mxu0 0.0
  %1175 = vmatpush1.msra.mxu0 0.0
  %1176 = vmatprep.subr.mxu0 0.0
  %1177 = vmatpush1.msra.mxu0 0.0
  %1178 = vmatprep.subr.mxu0 0.0
  %1179 = vmatpush1.msra.mxu0 0.0
  %1180 = vmatprep.subr.mxu0 0.0
  %1181 = vmatpush1.msra.mxu0 0.0
  %1182 = vmatprep.subr.mxu0 0.0
  %1183 = vmatpush1.msra.mxu0 0.0
  %1184 = vmatprep.subr.mxu0 0.0
  %1185 = vmatpush1.msra.mxu0 0.0
  %1186 = vmatprep.subr.mxu0 0.0
  %1187 = vmatpush1.msra.mxu0 0.0
  %1188 = vmatprep.subr.mxu0 0.0
  %1189 = vmatpush1.msra.mxu0 0.0
  %1190 = vmatprep.subr.mxu0 0.0
  %1191 = vmatpush1.msra.mxu0 0.0
  %1192 = vmatprep.subr.mxu0 0.0
  %1193 = vmatpush1.msra.mxu0 0.0
  %1194 = vmatprep.subr.mxu0 0.0
  %1195 = vmatpush1.msra.mxu0 0.0
  %1196 = vmatprep.mubr.f32.mxu0 0.0
  %1197 = vmatmul.mubr.f32.gmra.mrb[0].mxu0 %v1043
  %v1198 = vpop.f32.mrb[0].mxu0
  %v1199 = vadd.f32 0.0, %v1198
  %v1200 = vpop.f32.mrb[0].mxu0
  %v1201 = vadd.f32 0.0, %v1200
  %1202 = vdwg.mxu0
  %v1203 = vadd.f32 %v1059, %v1128
  %v1204 = vadd.f32 %v1060, %v1130
  %v1205 = vxor.u32 %v1203, 2147483648
  %v1206 = vxor.u32 %v1204, 2147483648
  %v1207 = vmul.f32 %v1205, 1.442695
  %v1208 = vpow.pop %v1207
  %v1209 = vmul.f32 %v1206, 1.442695
  %v1210 = vpow.pop %v1209
  %v1211 = vadd.f32 %v1208, 1.0
  %v1212 = vadd.f32 %v1210, 1.0
  %v1213 = vrcp.pop %v1211
  %v1214 = vmul.f32 1.0, %v1213
  %v1215 = vrcp.pop %v1212
  %v1216 = vmul.f32 1.0, %v1215
  %v1217 = vtanh.pop %v1204
  %v1218 = vmul.f32 %v1214, %v926
  %1220 = vrot.lane.b32.xlu0 %v1217, 64
  %v1221 = vpop.permute.xlu0 %1220
  %v1223 = vmul.f32 %v1214, %v1221
  %1225 = vrot.lane.b32.xlu0 %v1223, 64
  %v1226 = vpop.permute.xlu0 %1225
  %v1228 = vadd.f32 %v1218, %v1226
  %v1229 = vtanh.pop %v1228
  %1231 = vrot.lane.b32.xlu0 %v1229, 64
  %v1232 = vpop.permute.xlu0 %1231
  %v1234 = vmul.f32 %v1216, %v1232
  %v1236 = vsel %vm316, %v1234, 0
  %1238 = vmatprep.subr.mxu0 %v301
  %1239 = vmatpush1.msra.mxu0 %v300
  %1240 = vmatprep.subr.mxu0 %v303
  %1241 = vmatpush1.msra.mxu0 %v302
  %1242 = vmatprep.subr.mxu0 %v305
  %1243 = vmatpush1.msra.mxu0 %v304
  %1244 = vmatprep.subr.mxu0 %v307
  %1245 = vmatpush1.msra.mxu0 %v306
  %1246 = vmatprep.subr.mxu0 %v309
  %1247 = vmatpush1.msra.mxu0 %v308
  %1248 = vmatprep.subr.mxu0 %v311
  %1249 = vmatpush1.msra.mxu0 %v310
  %1250 = vmatprep.subr.mxu0 %v313
  %1251 = vmatpush1.msra.mxu0 %v312
  %1252 = vmatprep.subr.mxu0 %v315
  %1253 = vmatpush1.msra.mxu0 %v314
  %1254 = vmatprep.subr.mxu0 0.0
  %1255 = vmatpush1.msra.mxu0 0.0
  %1256 = vmatprep.subr.mxu0 0.0
  %1257 = vmatpush1.msra.mxu0 0.0
  %1258 = vmatprep.subr.mxu0 0.0
  %1259 = vmatpush1.msra.mxu0 0.0
  %1260 = vmatprep.subr.mxu0 0.0
  %1261 = vmatpush1.msra.mxu0 0.0
  %1262 = vmatprep.subr.mxu0 0.0
  %1263 = vmatpush1.msra.mxu0 0.0
  %1264 = vmatprep.subr.mxu0 0.0
  %1265 = vmatpush1.msra.mxu0 0.0
  %1266 = vmatprep.subr.mxu0 0.0
  %1267 = vmatpush1.msra.mxu0 0.0
  %1268 = vmatprep.subr.mxu0 0.0
  %1269 = vmatpush1.msra.mxu0 0.0
  %1270 = vmatprep.subr.mxu0 0.0
  %1271 = vmatpush1.msra.mxu0 0.0
  %1272 = vmatprep.subr.mxu0 0.0
  %1273 = vmatpush1.msra.mxu0 0.0
  %1274 = vmatprep.subr.mxu0 0.0
  %1275 = vmatpush1.msra.mxu0 0.0
  %1276 = vmatprep.subr.mxu0 0.0
  %1277 = vmatpush1.msra.mxu0 0.0
  %1278 = vmatprep.subr.mxu0 0.0
  %1279 = vmatpush1.msra.mxu0 0.0
  %1280 = vmatprep.subr.mxu0 0.0
  %1281 = vmatpush1.msra.mxu0 0.0
  %1282 = vmatprep.subr.mxu0 0.0
  %1283 = vmatpush1.msra.mxu0 0.0
  %1284 = vmatprep.subr.mxu0 0.0
  %1285 = vmatpush1.msra.mxu0 0.0
  %1286 = vmatprep.subr.mxu0 0.0
  %1287 = vmatpush1.msra.mxu0 0.0
  %1288 = vmatprep.subr.mxu0 0.0
  %1289 = vmatpush1.msra.mxu0 0.0
  %1290 = vmatprep.subr.mxu0 0.0
  %1291 = vmatpush1.msra.mxu0 0.0
  %1292 = vmatprep.subr.mxu0 0.0
  %1293 = vmatpush1.msra.mxu0 0.0
  %1294 = vmatprep.subr.mxu0 0.0
  %1295 = vmatpush1.msra.mxu0 0.0
  %1296 = vmatprep.subr.mxu0 0.0
  %1297 = vmatpush1.msra.mxu0 0.0
  %1298 = vmatprep.subr.mxu0 0.0
  %1299 = vmatpush1.msra.mxu0 0.0
  %1300 = vmatprep.subr.mxu0 0.0
  %1301 = vmatpush1.msra.mxu0 0.0
  %1302 = vmatprep.mubr.f32.mxu0 0.0
  %1303 = vmatmul.mubr.f32.gmra.mrb[0].mxu0 %v1236
  %v1304 = vpop.f32.mrb[0].mxu0
  %v1305 = vadd.f32 %v1199, %v1304
  %v1306 = vpop.f32.mrb[0].mxu0
  %v1307 = vadd.f32 %v1201, %v1306
  %1308 = vdwg.mxu0
  %v1309 = vadd.f32 %v1305, %v49
  %v1310 = vadd.f32 %v1307, %v53
  %v1311 = vxor.u32 %v1309, 2147483648
  %v1312 = vxor.u32 %v1310, 2147483648
  %v1313 = vmul.f32 %v1311, 1.442695
  %v1314 = vpow.pop %v1313
  %v1315 = vmul.f32 %v1312, 1.442695
  %v1316 = vpow.pop %v1315
  %v1317 = vadd.f32 %v1314, 1.0
  %v1318 = vadd.f32 %v1316, 1.0
  %v1319 = vrcp.pop %v1317
  %v1320 = vmul.f32 1.0, %v1319
  %v1321 = vrcp.pop %v1318
  %v1322 = vmul.f32 1.0, %v1321
  %v1323 = vtanh.pop %v1310
  %v1324 = vmul.f32 %v1320, %v1032
  %1326 = vrot.lane.b32.xlu0 %v1323, 64
  %v1327 = vpop.permute.xlu0 %1326
  %v1329 = vmul.f32 %v1320, %v1327
  %1331 = vrot.lane.b32.xlu0 %v1329, 64
  %v1332 = vpop.permute.xlu0 %1331
  %v1334 = vadd.f32 %v1324, %v1332
  %v1335 = vtanh.pop %v1334
  %1337 = vrot.lane.b32.xlu0 %v1335, 64
  %v1338 = vpop.permute.xlu0 %1337
  %v1340 = vmul.f32 %v1322, %v1338
  %1342 = vrot.lane.b32.xlu0 %v1340, 64
  %v1343 = vpop.permute.xlu0 %1342
  %v1345 = vsel %vm316, %v1234, %v1343
  %v1346 = vmul.f32 %v1340, %v432
  %v1347 = vsel %vm316, %v1346, 0.0
  %1348 = vadd.xlane.f32.xlu0 %v1347
  %v1349 = vpop.xlane.xlu0 %1348
  %v1350 = vadd.f32 %v1349, %v442
  %vm1351 = vcmp.eq.s32.totalorder %v59, 3
  %v1352 = vsel %vm1351, 1, 0
  %vm1353 = vcmp.eq.s32.totalorder %v1352, 1
  %1355 = vset.pattern.permute.xlu0 0
  %1356 = vperm.xlu0 %1355, %v1350
  %v1357 = vpop.permute.xlu0 %1356
  %v1359 = vsel %vm1353, %v1357, %v1057
  %s1360 = scalar_lea.vmem %s0, 64
  %v1361 = vld [vmem:[%s1360] sm:$0xff]
  %v1362 = vld [vmem:[%s1360 + $0x8] sm:$0xff]
  %1363 = vmatprep.subr.mxu0 %v63
  %1364 = vmatpush1.msra.mxu0 %v62
  %1365 = vmatprep.subr.mxu0 %v67
  %1366 = vmatpush1.msra.mxu0 %v66
  %1367 = vmatprep.subr.mxu0 %v71
  %1368 = vmatpush1.msra.mxu0 %v70
  %1369 = vmatprep.subr.mxu0 %v75
  %1370 = vmatpush1.msra.mxu0 %v74
  %1371 = vmatprep.subr.mxu0 %v79
  %1372 = vmatpush1.msra.mxu0 %v78
  %1373 = vmatprep.subr.mxu0 %v83
  %1374 = vmatpush1.msra.mxu0 %v82
  %1375 = vmatprep.subr.mxu0 %v87
  %1376 = vmatpush1.msra.mxu0 %v86
  %1377 = vmatprep.subr.mxu0 %v91
  %1378 = vmatpush1.msra.mxu0 %v90
  %1379 = vmatprep.subr.mxu0 %v95
  %1380 = vmatpush1.msra.mxu0 %v94
  %1381 = vmatprep.subr.mxu0 %v99
  %1382 = vmatpush1.msra.mxu0 %v98
  %1383 = vmatprep.subr.mxu0 %v103
  %1384 = vmatpush1.msra.mxu0 %v102
  %1385 = vmatprep.subr.mxu0 %v107
  %1386 = vmatpush1.msra.mxu0 %v106
  %1387 = vmatprep.subr.mxu0 %v111
  %1388 = vmatpush1.msra.mxu0 %v110
  %1389 = vmatprep.subr.mxu0 %v115
  %1390 = vmatpush1.msra.mxu0 %v114
  %1391 = vmatprep.subr.mxu0 %v119
  %1392 = vmatpush1.msra.mxu0 %v118
  %1393 = vmatprep.subr.mxu0 %v123
  %1394 = vmatpush1.msra.mxu0 %v122
  %1395 = vmatprep.subr.mxu0 0.0
  %1396 = vmatpush1.msra.mxu0 0.0
  %1397 = vmatprep.subr.mxu0 0.0
  %1398 = vmatpush1.msra.mxu0 0.0
  %1399 = vmatprep.subr.mxu0 0.0
  %1400 = vmatpush1.msra.mxu0 0.0
  %1401 = vmatprep.subr.mxu0 0.0
  %1402 = vmatpush1.msra.mxu0 0.0
  %1403 = vmatprep.subr.mxu0 0.0
  %1404 = vmatpush1.msra.mxu0 0.0
  %1405 = vmatprep.subr.mxu0 0.0
  %1406 = vmatpush1.msra.mxu0 0.0
  %1407 = vmatprep.subr.mxu0 0.0
  %1408 = vmatpush1.msra.mxu0 0.0
  %1409 = vmatprep.subr.mxu0 0.0
  %1410 = vmatpush1.msra.mxu0 0.0
  %1411 = vmatprep.subr.mxu0 0.0
  %1412 = vmatpush1.msra.mxu0 0.0
  %1413 = vmatprep.subr.mxu0 0.0
  %1414 = vmatpush1.msra.mxu0 0.0
  %1415 = vmatprep.subr.mxu0 0.0
  %1416 = vmatpush1.msra.mxu0 0.0
  %1417 = vmatprep.subr.mxu0 0.0
  %1418 = vmatpush1.msra.mxu0 0.0
  %1419 = vmatprep.subr.mxu0 0.0
  %1420 = vmatpush1.msra.mxu0 0.0
  %1421 = vmatprep.subr.mxu0 0.0
  %1422 = vmatpush1.msra.mxu0 0.0
  %1423 = vmatprep.subr.mxu0 0.0
  %1424 = vmatpush1.msra.mxu0 0.0
  %1425 = vmatprep.subr.mxu0 0.0
  %1426 = vmatpush1.msra.mxu0 0.0
  %1427 = vmatprep.mubr.f32.mxu0 0.0
  %1428 = vmatmul.mubr.f32.gmra.mrb[0].mxu0 %v1345
  %v1429 = vpop.f32.mrb[0].mxu0
  %v1430 = vadd.f32 0.0, %v1429
  %v1431 = vpop.f32.mrb[0].mxu0
  %v1432 = vadd.f32 0.0, %v1431
  %1433 = vdwg.mxu0
  %1434 = vmatprep.subr.mxu0 %v65
  %1435 = vmatpush1.msra.mxu0 %v64
  %1436 = vmatprep.subr.mxu0 %v69
  %1437 = vmatpush1.msra.mxu0 %v68
  %1438 = vmatprep.subr.mxu0 %v73
  %1439 = vmatpush1.msra.mxu0 %v72
  %1440 = vmatprep.subr.mxu0 %v77
  %1441 = vmatpush1.msra.mxu0 %v76
  %1442 = vmatprep.subr.mxu0 %v81
  %1443 = vmatpush1.msra.mxu0 %v80
  %1444 = vmatprep.subr.mxu0 %v85
  %1445 = vmatpush1.msra.mxu0 %v84
  %1446 = vmatprep.subr.mxu0 %v89
  %1447 = vmatpush1.msra.mxu0 %v88
  %1448 = vmatprep.subr.mxu0 %v93
  %1449 = vmatpush1.msra.mxu0 %v92
  %1450 = vmatprep.subr.mxu0 %v97
  %1451 = vmatpush1.msra.mxu0 %v96
  %1452 = vmatprep.subr.mxu0 %v101
  %1453 = vmatpush1.msra.mxu0 %v100
  %1454 = vmatprep.subr.mxu0 %v105
  %1455 = vmatpush1.msra.mxu0 %v104
  %1456 = vmatprep.subr.mxu0 %v109
  %1457 = vmatpush1.msra.mxu0 %v108
  %1458 = vmatprep.subr.mxu0 %v113
  %1459 = vmatpush1.msra.mxu0 %v112
  %1460 = vmatprep.subr.mxu0 %v117
  %1461 = vmatpush1.msra.mxu0 %v116
  %1462 = vmatprep.subr.mxu0 %v121
  %1463 = vmatpush1.msra.mxu0 %v120
  %1464 = vmatprep.subr.mxu0 %v125
  %1465 = vmatpush1.msra.mxu0 %v124
  %1466 = vmatprep.subr.mxu0 0.0
  %1467 = vmatpush1.msra.mxu0 0.0
  %1468 = vmatprep.subr.mxu0 0.0
  %1469 = vmatpush1.msra.mxu0 0.0
  %1470 = vmatprep.subr.mxu0 0.0
  %1471 = vmatpush1.msra.mxu0 0.0
  %1472 = vmatprep.subr.mxu0 0.0
  %1473 = vmatpush1.msra.mxu0 0.0
  %1474 = vmatprep.subr.mxu0 0.0
  %1475 = vmatpush1.msra.mxu0 0.0
  %1476 = vmatprep.subr.mxu0 0.0
  %1477 = vmatpush1.msra.mxu0 0.0
  %1478 = vmatprep.subr.mxu0 0.0
  %1479 = vmatpush1.msra.mxu0 0.0
  %1480 = vmatprep.subr.mxu0 0.0
  %1481 = vmatpush1.msra.mxu0 0.0
  %1482 = vmatprep.subr.mxu0 0.0
  %1483 = vmatpush1.msra.mxu0 0.0
  %1484 = vmatprep.subr.mxu0 0.0
  %1485 = vmatpush1.msra.mxu0 0.0
  %1486 = vmatprep.subr.mxu0 0.0
  %1487 = vmatpush1.msra.mxu0 0.0
  %1488 = vmatprep.subr.mxu0 0.0
  %1489 = vmatpush1.msra.mxu0 0.0
  %1490 = vmatprep.subr.mxu0 0.0
  %1491 = vmatpush1.msra.mxu0 0.0
  %1492 = vmatprep.subr.mxu0 0.0
  %1493 = vmatpush1.msra.mxu0 0.0
  %1494 = vmatprep.subr.mxu0 0.0
  %1495 = vmatpush1.msra.mxu0 0.0
  %1496 = vmatprep.subr.mxu0 0.0
  %1497 = vmatpush1.msra.mxu0 0.0
  %1498 = vmatprep.mubr.f32.mxu0 0.0
  %1499 = vmatmul.mubr.f32.gmra.mrb[0].mxu0 %v1345
  %v1500 = vpop.f32.mrb[0].mxu0
  %v1501 = vadd.f32 0.0, %v1500
  %v1502 = vpop.f32.mrb[0].mxu0
  %v1503 = vadd.f32 0.0, %v1502
  %1504 = vdwg.mxu0
  %v1505 = vadd.f32 %v1361, %v1430
  %v1506 = vadd.f32 %v1362, %v1432
  %v1507 = vxor.u32 %v1505, 2147483648
  %v1508 = vxor.u32 %v1506, 2147483648
  %v1509 = vmul.f32 %v1507, 1.442695
  %v1510 = vpow.pop %v1509
  %v1511 = vmul.f32 %v1508, 1.442695
  %v1512 = vpow.pop %v1511
  %v1513 = vadd.f32 %v1510, 1.0
  %v1514 = vadd.f32 %v1512, 1.0
  %v1515 = vrcp.pop %v1513
  %v1516 = vmul.f32 1.0, %v1515
  %v1517 = vrcp.pop %v1514
  %v1518 = vmul.f32 1.0, %v1517
  %v1519 = vtanh.pop %v1506
  %v1520 = vmul.f32 %v1516, %v1228
  %1522 = vrot.lane.b32.xlu0 %v1519, 64
  %v1523 = vpop.permute.xlu0 %1522
  %v1525 = vmul.f32 %v1516, %v1523
  %1527 = vrot.lane.b32.xlu0 %v1525, 64
  %v1528 = vpop.permute.xlu0 %1527
  %v1530 = vadd.f32 %v1520, %v1528
  %v1531 = vtanh.pop %v1530
  %1533 = vrot.lane.b32.xlu0 %v1531, 64
  %v1534 = vpop.permute.xlu0 %1533
  %v1536 = vmul.f32 %v1518, %v1534
  %v1538 = vsel %vm316, %v1536, 0
  %1540 = vmatprep.subr.mxu0 %v301
  %1541 = vmatpush1.msra.mxu0 %v300
  %1542 = vmatprep.subr.mxu0 %v303
  %1543 = vmatpush1.msra.mxu0 %v302
  %1544 = vmatprep.subr.mxu0 %v305
  %1545 = vmatpush1.msra.mxu0 %v304
  %1546 = vmatprep.subr.mxu0 %v307
  %1547 = vmatpush1.msra.mxu0 %v306
  %1548 = vmatprep.subr.mxu0 %v309
  %1549 = vmatpush1.msra.mxu0 %v308
  %1550 = vmatprep.subr.mxu0 %v311
  %1551 = vmatpush1.msra.mxu0 %v310
  %1552 = vmatprep.subr.mxu0 %v313
  %1553 = vmatpush1.msra.mxu0 %v312
  %1554 = vmatprep.subr.mxu0 %v315
  %1555 = vmatpush1.msra.mxu0 %v314
  %1556 = vmatprep.subr.mxu0 0.0
  %1557 = vmatpush1.msra.mxu0 0.0
  %1558 = vmatprep.subr.mxu0 0.0
  %1559 = vmatpush1.msra.mxu0 0.0
  %1560 = vmatprep.subr.mxu0 0.0
  %1561 = vmatpush1.msra.mxu0 0.0
  %1562 = vmatprep.subr.mxu0 0.0
  %1563 = vmatpush1.msra.mxu0 0.0
  %1564 = vmatprep.subr.mxu0 0.0
  %1565 = vmatpush1.msra.mxu0 0.0
  %1566 = vmatprep.subr.mxu0 0.0
  %1567 = vmatpush1.msra.mxu0 0.0
  %1568 = vmatprep.subr.mxu0 0.0
  %1569 = vmatpush1.msra.mxu0 0.0
  %1570 = vmatprep.subr.mxu0 0.0
  %1571 = vmatpush1.msra.mxu0 0.0
  %1572 = vmatprep.subr.mxu0 0.0
  %1573 = vmatpush1.msra.mxu0 0.0
  %1574 = vmatprep.subr.mxu0 0.0
  %1575 = vmatpush1.msra.mxu0 0.0
  %1576 = vmatprep.subr.mxu0 0.0
  %1577 = vmatpush1.msra.mxu0 0.0
  %1578 = vmatprep.subr.mxu0 0.0
  %1579 = vmatpush1.msra.mxu0 0.0
  %1580 = vmatprep.subr.mxu0 0.0
  %1581 = vmatpush1.msra.mxu0 0.0
  %1582 = vmatprep.subr.mxu0 0.0
  %1583 = vmatpush1.msra.mxu0 0.0
  %1584 = vmatprep.subr.mxu0 0.0
  %1585 = vmatpush1.msra.mxu0 0.0
  %1586 = vmatprep.subr.mxu0 0.0
  %1587 = vmatpush1.msra.mxu0 0.0
  %1588 = vmatprep.subr.mxu0 0.0
  %1589 = vmatpush1.msra.mxu0 0.0
  %1590 = vmatprep.subr.mxu0 0.0
  %1591 = vmatpush1.msra.mxu0 0.0
  %1592 = vmatprep.subr.mxu0 0.0
  %1593 = vmatpush1.msra.mxu0 0.0
  %1594 = vmatprep.subr.mxu0 0.0
  %1595 = vmatpush1.msra.mxu0 0.0
  %1596 = vmatprep.subr.mxu0 0.0
  %1597 = vmatpush1.msra.mxu0 0.0
  %1598 = vmatprep.subr.mxu0 0.0
  %1599 = vmatpush1.msra.mxu0 0.0
  %1600 = vmatprep.subr.mxu0 0.0
  %1601 = vmatpush1.msra.mxu0 0.0
  %1602 = vmatprep.subr.mxu0 0.0
  %1603 = vmatpush1.msra.mxu0 0.0
  %1604 = vmatprep.mubr.f32.mxu0 0.0
  %1605 = vmatmul.mubr.f32.gmra.mrb[0].mxu0 %v1538
  %v1606 = vpop.f32.mrb[0].mxu0
  %v1607 = vadd.f32 %v1501, %v1606
  %v1608 = vpop.f32.mrb[0].mxu0
  %v1609 = vadd.f32 %v1503, %v1608
  %1610 = vdwg.mxu0
  %v1611 = vadd.f32 %v1607, %v49
  %v1612 = vadd.f32 %v1609, %v53
  %v1613 = vxor.u32 %v1611, 2147483648
  %v1614 = vxor.u32 %v1612, 2147483648
  %v1615 = vmul.f32 %v1613, 1.442695
  %v1616 = vpow.pop %v1615
  %v1617 = vmul.f32 %v1614, 1.442695
  %v1618 = vpow.pop %v1617
  %v1619 = vadd.f32 %v1616, 1.0
  %v1620 = vadd.f32 %v1618, 1.0
  %v1621 = vrcp.pop %v1619
  %v1622 = vmul.f32 1.0, %v1621
  %v1623 = vrcp.pop %v1620
  %v1624 = vmul.f32 1.0, %v1623
  %v1625 = vtanh.pop %v1612
  %v1626 = vmul.f32 %v1622, %v1334
  %1628 = vrot.lane.b32.xlu0 %v1625, 64
  %v1629 = vpop.permute.xlu0 %1628
  %v1631 = vmul.f32 %v1622, %v1629
  %1633 = vrot.lane.b32.xlu0 %v1631, 64
  %v1634 = vpop.permute.xlu0 %1633
  %v1636 = vadd.f32 %v1626, %v1634
  %v1637 = vtanh.pop %v1636
  %1639 = vrot.lane.b32.xlu0 %v1637, 64
  %v1640 = vpop.permute.xlu0 %1639
  %v1642 = vmul.f32 %v1624, %v1640
  %1644 = vrot.lane.b32.xlu0 %v1642, 64
  %v1645 = vpop.permute.xlu0 %1644
  %v1647 = vsel %vm316, %v1536, %v1645
  %v1648 = vmul.f32 %v1642, %v432
  %v1649 = vsel %vm316, %v1648, 0.0
  %1650 = vadd.xlane.f32.xlu0 %v1649
  %v1651 = vpop.xlane.xlu0 %1650
  %v1652 = vadd.f32 %v1651, %v442
  %vm1653 = vcmp.eq.s32.totalorder %v59, 4
  %v1654 = vsel %vm1653, 1, 0
  %vm1655 = vcmp.eq.s32.totalorder %v1654, 1
  %1657 = vset.pattern.permute.xlu0 0
  %1658 = vperm.xlu0 %1657, %v1652
  %v1659 = vpop.permute.xlu0 %1658
  %v1661 = vsel %vm1655, %v1659, %v1359
  %s1662 = scalar_lea.vmem %s0, 80
  %v1663 = vld [vmem:[%s1662] sm:$0xff]
  %v1664 = vld [vmem:[%s1662 + $0x8] sm:$0xff]
  %1665 = vmatprep.subr.mxu0 %v63
  %1666 = vmatpush1.msra.mxu0 %v62
  %1667 = vmatprep.subr.mxu0 %v67
  %1668 = vmatpush1.msra.mxu0 %v66
  %1669 = vmatprep.subr.mxu0 %v71
  %1670 = vmatpush1.msra.mxu0 %v70
  %1671 = vmatprep.subr.mxu0 %v75
  %1672 = vmatpush1.msra.mxu0 %v74
  %1673 = vmatprep.subr.mxu0 %v79
  %1674 = vmatpush1.msra.mxu0 %v78
  %1675 = vmatprep.subr.mxu0 %v83
  %1676 = vmatpush1.msra.mxu0 %v82
  %1677 = vmatprep.subr.mxu0 %v87
  %1678 = vmatpush1.msra.mxu0 %v86
  %1679 = vmatprep.subr.mxu0 %v91
  %1680 = vmatpush1.msra.mxu0 %v90
  %1681 = vmatprep.subr.mxu0 %v95
  %1682 = vmatpush1.msra.mxu0 %v94
  %1683 = vmatprep.subr.mxu0 %v99
  %1684 = vmatpush1.msra.mxu0 %v98
  %1685 = vmatprep.subr.mxu0 %v103
  %1686 = vmatpush1.msra.mxu0 %v102
  %1687 = vmatprep.subr.mxu0 %v107
  %1688 = vmatpush1.msra.mxu0 %v106
  %1689 = vmatprep.subr.mxu0 %v111
  %1690 = vmatpush1.msra.mxu0 %v110
  %1691 = vmatprep.subr.mxu0 %v115
  %1692 = vmatpush1.msra.mxu0 %v114
  %1693 = vmatprep.subr.mxu0 %v119
  %1694 = vmatpush1.msra.mxu0 %v118
  %1695 = vmatprep.subr.mxu0 %v123
  %1696 = vmatpush1.msra.mxu0 %v122
  %1697 = vmatprep.subr.mxu0 0.0
  %1698 = vmatpush1.msra.mxu0 0.0
  %1699 = vmatprep.subr.mxu0 0.0
  %1700 = vmatpush1.msra.mxu0 0.0
  %1701 = vmatprep.subr.mxu0 0.0
  %1702 = vmatpush1.msra.mxu0 0.0
  %1703 = vmatprep.subr.mxu0 0.0
  %1704 = vmatpush1.msra.mxu0 0.0
  %1705 = vmatprep.subr.mxu0 0.0
  %1706 = vmatpush1.msra.mxu0 0.0
  %1707 = vmatprep.subr.mxu0 0.0
  %1708 = vmatpush1.msra.mxu0 0.0
  %1709 = vmatprep.subr.mxu0 0.0
  %1710 = vmatpush1.msra.mxu0 0.0
  %1711 = vmatprep.subr.mxu0 0.0
  %1712 = vmatpush1.msra.mxu0 0.0
  %1713 = vmatprep.subr.mxu0 0.0
  %1714 = vmatpush1.msra.mxu0 0.0
  %1715 = vmatprep.subr.mxu0 0.0
  %1716 = vmatpush1.msra.mxu0 0.0
  %1717 = vmatprep.subr.mxu0 0.0
  %1718 = vmatpush1.msra.mxu0 0.0
  %1719 = vmatprep.subr.mxu0 0.0
  %1720 = vmatpush1.msra.mxu0 0.0
  %1721 = vmatprep.subr.mxu0 0.0
  %1722 = vmatpush1.msra.mxu0 0.0
  %1723 = vmatprep.subr.mxu0 0.0
  %1724 = vmatpush1.msra.mxu0 0.0
  %1725 = vmatprep.subr.mxu0 0.0
  %1726 = vmatpush1.msra.mxu0 0.0
  %1727 = vmatprep.subr.mxu0 0.0
  %1728 = vmatpush1.msra.mxu0 0.0
  %1729 = vmatprep.mubr.f32.mxu0 0.0
  %1730 = vmatmul.mubr.f32.gmra.mrb[0].mxu0 %v1647
  %v1731 = vpop.f32.mrb[0].mxu0
  %v1732 = vadd.f32 0.0, %v1731
  %v1733 = vpop.f32.mrb[0].mxu0
  %v1734 = vadd.f32 0.0, %v1733
  %1735 = vdwg.mxu0
  %1736 = vmatprep.subr.mxu0 %v65
  %1737 = vmatpush1.msra.mxu0 %v64
  %1738 = vmatprep.subr.mxu0 %v69
  %1739 = vmatpush1.msra.mxu0 %v68
  %1740 = vmatprep.subr.mxu0 %v73
  %1741 = vmatpush1.msra.mxu0 %v72
  %1742 = vmatprep.subr.mxu0 %v77
  %1743 = vmatpush1.msra.mxu0 %v76
  %1744 = vmatprep.subr.mxu0 %v81
  %1745 = vmatpush1.msra.mxu0 %v80
  %1746 = vmatprep.subr.mxu0 %v85
  %1747 = vmatpush1.msra.mxu0 %v84
  %1748 = vmatprep.subr.mxu0 %v89
  %1749 = vmatpush1.msra.mxu0 %v88
  %1750 = vmatprep.subr.mxu0 %v93
  %1751 = vmatpush1.msra.mxu0 %v92
  %1752 = vmatprep.subr.mxu0 %v97
  %1753 = vmatpush1.msra.mxu0 %v96
  %1754 = vmatprep.subr.mxu0 %v101
  %1755 = vmatpush1.msra.mxu0 %v100
  %1756 = vmatprep.subr.mxu0 %v105
  %1757 = vmatpush1.msra.mxu0 %v104
  %1758 = vmatprep.subr.mxu0 %v109
  %1759 = vmatpush1.msra.mxu0 %v108
  %1760 = vmatprep.subr.mxu0 %v113
  %1761 = vmatpush1.msra.mxu0 %v112
  %1762 = vmatprep.subr.mxu0 %v117
  %1763 = vmatpush1.msra.mxu0 %v116
  %1764 = vmatprep.subr.mxu0 %v121
  %1765 = vmatpush1.msra.mxu0 %v120
  %1766 = vmatprep.subr.mxu0 %v125
  %1767 = vmatpush1.msra.mxu0 %v124
  %1768 = vmatprep.subr.mxu0 0.0
  %1769 = vmatpush1.msra.mxu0 0.0
  %1770 = vmatprep.subr.mxu0 0.0
  %1771 = vmatpush1.msra.mxu0 0.0
  %1772 = vmatprep.subr.mxu0 0.0
  %1773 = vmatpush1.msra.mxu0 0.0
  %1774 = vmatprep.subr.mxu0 0.0
  %1775 = vmatpush1.msra.mxu0 0.0
  %1776 = vmatprep.subr.mxu0 0.0
  %1777 = vmatpush1.msra.mxu0 0.0
  %1778 = vmatprep.subr.mxu0 0.0
  %1779 = vmatpush1.msra.mxu0 0.0
  %1780 = vmatprep.subr.mxu0 0.0
  %1781 = vmatpush1.msra.mxu0 0.0
  %1782 = vmatprep.subr.mxu0 0.0
  %1783 = vmatpush1.msra.mxu0 0.0
  %1784 = vmatprep.subr.mxu0 0.0
  %1785 = vmatpush1.msra.mxu0 0.0
  %1786 = vmatprep.subr.mxu0 0.0
  %1787 = vmatpush1.msra.mxu0 0.0
  %1788 = vmatprep.subr.mxu0 0.0
  %1789 = vmatpush1.msra.mxu0 0.0
  %1790 = vmatprep.subr.mxu0 0.0
  %1791 = vmatpush1.msra.mxu0 0.0
  %1792 = vmatprep.subr.mxu0 0.0
  %1793 = vmatpush1.msra.mxu0 0.0
  %1794 = vmatprep.subr.mxu0 0.0
  %1795 = vmatpush1.msra.mxu0 0.0
  %1796 = vmatprep.subr.mxu0 0.0
  %1797 = vmatpush1.msra.mxu0 0.0
  %1798 = vmatprep.subr.mxu0 0.0
  %1799 = vmatpush1.msra.mxu0 0.0
  %1800 = vmatprep.mubr.f32.mxu0 0.0
  %1801 = vmatmul.mubr.f32.gmra.mrb[0].mxu0 %v1647
  %v1802 = vpop.f32.mrb[0].mxu0
  %v1803 = vadd.f32 0.0, %v1802
  %v1804 = vpop.f32.mrb[0].mxu0
  %v1805 = vadd.f32 0.0, %v1804
  %1806 = vdwg.mxu0
  %v1807 = vadd.f32 %v1663, %v1732
  %v1808 = vadd.f32 %v1664, %v1734
  %v1809 = vxor.u32 %v1807, 2147483648
  %v1810 = vxor.u32 %v1808, 2147483648
  %v1811 = vmul.f32 %v1809, 1.442695
  %v1812 = vpow.pop %v1811
  %v1813 = vmul.f32 %v1810, 1.442695
  %v1814 = vpow.pop %v1813
  %v1815 = vadd.f32 %v1812, 1.0
  %v1816 = vadd.f32 %v1814, 1.0
  %v1817 = vrcp.pop %v1815
  %v1818 = vmul.f32 1.0, %v1817
  %v1819 = vrcp.pop %v1816
  %v1820 = vmul.f32 1.0, %v1819
  %v1821 = vtanh.pop %v1808
  %v1822 = vmul.f32 %v1818, %v1530
  %1824 = vrot.lane.b32.xlu0 %v1821, 64
  %v1825 = vpop.permute.xlu0 %1824
  %v1827 = vmul.f32 %v1818, %v1825
  %1829 = vrot.lane.b32.xlu0 %v1827, 64
  %v1830 = vpop.permute.xlu0 %1829
  %v1832 = vadd.f32 %v1822, %v1830
  %v1833 = vtanh.pop %v1832
  %1835 = vrot.lane.b32.xlu0 %v1833, 64
  %v1836 = vpop.permute.xlu0 %1835
  %v1838 = vmul.f32 %v1820, %v1836
  %v1840 = vsel %vm316, %v1838, 0
  %1842 = vmatprep.subr.mxu0 %v301
  %1843 = vmatpush1.msra.mxu0 %v300
  %1844 = vmatprep.subr.mxu0 %v303
  %1845 = vmatpush1.msra.mxu0 %v302
  %1846 = vmatprep.subr.mxu0 %v305
  %1847 = vmatpush1.msra.mxu0 %v304
  %1848 = vmatprep.subr.mxu0 %v307
  %1849 = vmatpush1.msra.mxu0 %v306
  %1850 = vmatprep.subr.mxu0 %v309
  %1851 = vmatpush1.msra.mxu0 %v308
  %1852 = vmatprep.subr.mxu0 %v311
  %1853 = vmatpush1.msra.mxu0 %v310
  %1854 = vmatprep.subr.mxu0 %v313
  %1855 = vmatpush1.msra.mxu0 %v312
  %1856 = vmatprep.subr.mxu0 %v315
  %1857 = vmatpush1.msra.mxu0 %v314
  %1858 = vmatprep.subr.mxu0 0.0
  %1859 = vmatpush1.msra.mxu0 0.0
  %1860 = vmatprep.subr.mxu0 0.0
  %1861 = vmatpush1.msra.mxu0 0.0
  %1862 = vmatprep.subr.mxu0 0.0
  %1863 = vmatpush1.msra.mxu0 0.0
  %1864 = vmatprep.subr.mxu0 0.0
  %1865 = vmatpush1.msra.mxu0 0.0
  %1866 = vmatprep.subr.mxu0 0.0
  %1867 = vmatpush1.msra.mxu0 0.0
  %1868 = vmatprep.subr.mxu0 0.0
  %1869 = vmatpush1.msra.mxu0 0.0
  %1870 = vmatprep.subr.mxu0 0.0
  %1871 = vmatpush1.msra.mxu0 0.0
  %1872 = vmatprep.subr.mxu0 0.0
  %1873 = vmatpush1.msra.mxu0 0.0
  %1874 = vmatprep.subr.mxu0 0.0
  %1875 = vmatpush1.msra.mxu0 0.0
  %1876 = vmatprep.subr.mxu0 0.0
  %1877 = vmatpush1.msra.mxu0 0.0
  %1878 = vmatprep.subr.mxu0 0.0
  %1879 = vmatpush1.msra.mxu0 0.0
  %1880 = vmatprep.subr.mxu0 0.0
  %1881 = vmatpush1.msra.mxu0 0.0
  %1882 = vmatprep.subr.mxu0 0.0
  %1883 = vmatpush1.msra.mxu0 0.0
  %1884 = vmatprep.subr.mxu0 0.0
  %1885 = vmatpush1.msra.mxu0 0.0
  %1886 = vmatprep.subr.mxu0 0.0
  %1887 = vmatpush1.msra.mxu0 0.0
  %1888 = vmatprep.subr.mxu0 0.0
  %1889 = vmatpush1.msra.mxu0 0.0
  %1890 = vmatprep.subr.mxu0 0.0
  %1891 = vmatpush1.msra.mxu0 0.0
  %1892 = vmatprep.subr.mxu0 0.0
  %1893 = vmatpush1.msra.mxu0 0.0
  %1894 = vmatprep.subr.mxu0 0.0
  %1895 = vmatpush1.msra.mxu0 0.0
  %1896 = vmatprep.subr.mxu0 0.0
  %1897 = vmatpush1.msra.mxu0 0.0
  %1898 = vmatprep.subr.mxu0 0.0
  %1899 = vmatpush1.msra.mxu0 0.0
  %1900 = vmatprep.subr.mxu0 0.0
  %1901 = vmatpush1.msra.mxu0 0.0
  %1902 = vmatprep.subr.mxu0 0.0
  %1903 = vmatpush1.msra.mxu0 0.0
  %1904 = vmatprep.subr.mxu0 0.0
  %1905 = vmatpush1.msra.mxu0 0.0
  %1906 = vmatprep.mubr.f32.mxu0 0.0
  %1907 = vmatmul.mubr.f32.gmra.mrb[0].mxu0 %v1840
  %v1908 = vpop.f32.mrb[0].mxu0
  %v1909 = vadd.f32 %v1803, %v1908
  %v1910 = vpop.f32.mrb[0].mxu0
  %v1911 = vadd.f32 %v1805, %v1910
  %1912 = vdwg.mxu0
  %v1913 = vadd.f32 %v1909, %v49
  %v1914 = vadd.f32 %v1911, %v53
  %v1915 = vxor.u32 %v1913, 2147483648
  %v1916 = vxor.u32 %v1914, 2147483648
  %v1917 = vmul.f32 %v1915, 1.442695
  %v1918 = vpow.pop %v1917
  %v1919 = vmul.f32 %v1916, 1.442695
  %v1920 = vpow.pop %v1919
  %v1921 = vadd.f32 %v1918, 1.0
  %v1922 = vadd.f32 %v1920, 1.0
  %v1923 = vrcp.pop %v1921
  %v1924 = vmul.f32 1.0, %v1923
  %v1925 = vrcp.pop %v1922
  %v1926 = vmul.f32 1.0, %v1925
  %v1927 = vtanh.pop %v1914
  %v1928 = vmul.f32 %v1924, %v1636
  %1930 = vrot.lane.b32.xlu0 %v1927, 64
  %v1931 = vpop.permute.xlu0 %1930
  %v1933 = vmul.f32 %v1924, %v1931
  %1935 = vrot.lane.b32.xlu0 %v1933, 64
  %v1936 = vpop.permute.xlu0 %1935
  %v1938 = vadd.f32 %v1928, %v1936
  %v1939 = vtanh.pop %v1938
  %1941 = vrot.lane.b32.xlu0 %v1939, 64
  %v1942 = vpop.permute.xlu0 %1941
  %v1944 = vmul.f32 %v1926, %v1942
  %1946 = vrot.lane.b32.xlu0 %v1944, 64
  %v1947 = vpop.permute.xlu0 %1946
  %v1949 = vsel %vm316, %v1838, %v1947
  %v1950 = vmul.f32 %v1944, %v432
  %v1951 = vsel %vm316, %v1950, 0.0
  %1952 = vadd.xlane.f32.xlu0 %v1951
  %v1953 = vpop.xlane.xlu0 %1952
  %v1954 = vadd.f32 %v1953, %v442
  %vm1955 = vcmp.eq.s32.totalorder %v59, 5
  %v1956 = vsel %vm1955, 1, 0
  %vm1957 = vcmp.eq.s32.totalorder %v1956, 1
  %1959 = vset.pattern.permute.xlu0 0
  %1960 = vperm.xlu0 %1959, %v1954
  %v1961 = vpop.permute.xlu0 %1960
  %v1963 = vsel %vm1957, %v1961, %v1661
  %s1964 = scalar_lea.vmem %s0, 96
  %v1965 = vld [vmem:[%s1964] sm:$0xff]
  %v1966 = vld [vmem:[%s1964 + $0x8] sm:$0xff]
  %1967 = vmatprep.subr.mxu0 %v63
  %1968 = vmatpush1.msra.mxu0 %v62
  %1969 = vmatprep.subr.mxu0 %v67
  %1970 = vmatpush1.msra.mxu0 %v66
  %1971 = vmatprep.subr.mxu0 %v71
  %1972 = vmatpush1.msra.mxu0 %v70
  %1973 = vmatprep.subr.mxu0 %v75
  %1974 = vmatpush1.msra.mxu0 %v74
  %1975 = vmatprep.subr.mxu0 %v79
  %1976 = vmatpush1.msra.mxu0 %v78
  %1977 = vmatprep.subr.mxu0 %v83
  %1978 = vmatpush1.msra.mxu0 %v82
  %1979 = vmatprep.subr.mxu0 %v87
  %1980 = vmatpush1.msra.mxu0 %v86
  %1981 = vmatprep.subr.mxu0 %v91
  %1982 = vmatpush1.msra.mxu0 %v90
  %1983 = vmatprep.subr.mxu0 %v95
  %1984 = vmatpush1.msra.mxu0 %v94
  %1985 = vmatprep.subr.mxu0 %v99
  %1986 = vmatpush1.msra.mxu0 %v98
  %1987 = vmatprep.subr.mxu0 %v103
  %1988 = vmatpush1.msra.mxu0 %v102
  %1989 = vmatprep.subr.mxu0 %v107
  %1990 = vmatpush1.msra.mxu0 %v106
  %1991 = vmatprep.subr.mxu0 %v111
  %1992 = vmatpush1.msra.mxu0 %v110
  %1993 = vmatprep.subr.mxu0 %v115
  %1994 = vmatpush1.msra.mxu0 %v114
  %1995 = vmatprep.subr.mxu0 %v119
  %1996 = vmatpush1.msra.mxu0 %v118
  %1997 = vmatprep.subr.mxu0 %v123
  %1998 = vmatpush1.msra.mxu0 %v122
  %1999 = vmatprep.subr.mxu0 0.0
  %2000 = vmatpush1.msra.mxu0 0.0
  %2001 = vmatprep.subr.mxu0 0.0
  %2002 = vmatpush1.msra.mxu0 0.0
  %2003 = vmatprep.subr.mxu0 0.0
  %2004 = vmatpush1.msra.mxu0 0.0
  %2005 = vmatprep.subr.mxu0 0.0
  %2006 = vmatpush1.msra.mxu0 0.0
  %2007 = vmatprep.subr.mxu0 0.0
  %2008 = vmatpush1.msra.mxu0 0.0
  %2009 = vmatprep.subr.mxu0 0.0
  %2010 = vmatpush1.msra.mxu0 0.0
  %2011 = vmatprep.subr.mxu0 0.0
  %2012 = vmatpush1.msra.mxu0 0.0
  %2013 = vmatprep.subr.mxu0 0.0
  %2014 = vmatpush1.msra.mxu0 0.0
  %2015 = vmatprep.subr.mxu0 0.0
  %2016 = vmatpush1.msra.mxu0 0.0
  %2017 = vmatprep.subr.mxu0 0.0
  %2018 = vmatpush1.msra.mxu0 0.0
  %2019 = vmatprep.subr.mxu0 0.0
  %2020 = vmatpush1.msra.mxu0 0.0
  %2021 = vmatprep.subr.mxu0 0.0
  %2022 = vmatpush1.msra.mxu0 0.0
  %2023 = vmatprep.subr.mxu0 0.0
  %2024 = vmatpush1.msra.mxu0 0.0
  %2025 = vmatprep.subr.mxu0 0.0
  %2026 = vmatpush1.msra.mxu0 0.0
  %2027 = vmatprep.subr.mxu0 0.0
  %2028 = vmatpush1.msra.mxu0 0.0
  %2029 = vmatprep.subr.mxu0 0.0
  %2030 = vmatpush1.msra.mxu0 0.0
  %2031 = vmatprep.mubr.f32.mxu0 0.0
  %2032 = vmatmul.mubr.f32.gmra.mrb[0].mxu0 %v1949
  %v2033 = vpop.f32.mrb[0].mxu0
  %v2034 = vadd.f32 0.0, %v2033
  %v2035 = vpop.f32.mrb[0].mxu0
  %v2036 = vadd.f32 0.0, %v2035
  %2037 = vdwg.mxu0
  %2038 = vmatprep.subr.mxu0 %v65
  %2039 = vmatpush1.msra.mxu0 %v64
  %2040 = vmatprep.subr.mxu0 %v69
  %2041 = vmatpush1.msra.mxu0 %v68
  %2042 = vmatprep.subr.mxu0 %v73
  %2043 = vmatpush1.msra.mxu0 %v72
  %2044 = vmatprep.subr.mxu0 %v77
  %2045 = vmatpush1.msra.mxu0 %v76
  %2046 = vmatprep.subr.mxu0 %v81
  %2047 = vmatpush1.msra.mxu0 %v80
  %2048 = vmatprep.subr.mxu0 %v85
  %2049 = vmatpush1.msra.mxu0 %v84
  %2050 = vmatprep.subr.mxu0 %v89
  %2051 = vmatpush1.msra.mxu0 %v88
  %2052 = vmatprep.subr.mxu0 %v93
  %2053 = vmatpush1.msra.mxu0 %v92
  %2054 = vmatprep.subr.mxu0 %v97
  %2055 = vmatpush1.msra.mxu0 %v96
  %2056 = vmatprep.subr.mxu0 %v101
  %2057 = vmatpush1.msra.mxu0 %v100
  %2058 = vmatprep.subr.mxu0 %v105
  %2059 = vmatpush1.msra.mxu0 %v104
  %2060 = vmatprep.subr.mxu0 %v109
  %2061 = vmatpush1.msra.mxu0 %v108
  %2062 = vmatprep.subr.mxu0 %v113
  %2063 = vmatpush1.msra.mxu0 %v112
  %2064 = vmatprep.subr.mxu0 %v117
  %2065 = vmatpush1.msra.mxu0 %v116
  %2066 = vmatprep.subr.mxu0 %v121
  %2067 = vmatpush1.msra.mxu0 %v120
  %2068 = vmatprep.subr.mxu0 %v125
  %2069 = vmatpush1.msra.mxu0 %v124
  %2070 = vmatprep.subr.mxu0 0.0
  %2071 = vmatpush1.msra.mxu0 0.0
  %2072 = vmatprep.subr.mxu0 0.0
  %2073 = vmatpush1.msra.mxu0 0.0
  %2074 = vmatprep.subr.mxu0 0.0
  %2075 = vmatpush1.msra.mxu0 0.0
  %2076 = vmatprep.subr.mxu0 0.0
  %2077 = vmatpush1.msra.mxu0 0.0
  %2078 = vmatprep.subr.mxu0 0.0
  %2079 = vmatpush1.msra.mxu0 0.0
  %2080 = vmatprep.subr.mxu0 0.0
  %2081 = vmatpush1.msra.mxu0 0.0
  %2082 = vmatprep.subr.mxu0 0.0
  %2083 = vmatpush1.msra.mxu0 0.0
  %2084 = vmatprep.subr.mxu0 0.0
  %2085 = vmatpush1.msra.mxu0 0.0
  %2086 = vmatprep.subr.mxu0 0.0
  %2087 = vmatpush1.msra.mxu0 0.0
  %2088 = vmatprep.subr.mxu0 0.0
  %2089 = vmatpush1.msra.mxu0 0.0
  %2090 = vmatprep.subr.mxu0 0.0
  %2091 = vmatpush1.msra.mxu0 0.0
  %2092 = vmatprep.subr.mxu0 0.0
  %2093 = vmatpush1.msra.mxu0 0.0
  %2094 = vmatprep.subr.mxu0 0.0
  %2095 = vmatpush1.msra.mxu0 0.0
  %2096 = vmatprep.subr.mxu0 0.0
  %2097 = vmatpush1.msra.mxu0 0.0
  %2098 = vmatprep.subr.mxu0 0.0
  %2099 = vmatpush1.msra.mxu0 0.0
  %2100 = vmatprep.subr.mxu0 0.0
  %2101 = vmatpush1.msra.mxu0 0.0
  %2102 = vmatprep.mubr.f32.mxu0 0.0
  %2103 = vmatmul.mubr.f32.gmra.mrb[0].mxu0 %v1949
  %v2104 = vpop.f32.mrb[0].mxu0
  %v2105 = vadd.f32 0.0, %v2104
  %v2106 = vpop.f32.mrb[0].mxu0
  %v2107 = vadd.f32 0.0, %v2106
  %2108 = vdwg.mxu0
  %v2109 = vadd.f32 %v1965, %v2034
  %v2110 = vadd.f32 %v1966, %v2036
  %v2111 = vxor.u32 %v2109, 2147483648
  %v2112 = vxor.u32 %v2110, 2147483648
  %v2113 = vmul.f32 %v2111, 1.442695
  %v2114 = vpow.pop %v2113
  %v2115 = vmul.f32 %v2112, 1.442695
  %v2116 = vpow.pop %v2115
  %v2117 = vadd.f32 %v2114, 1.0
  %v2118 = vadd.f32 %v2116, 1.0
  %v2119 = vrcp.pop %v2117
  %v2120 = vmul.f32 1.0, %v2119
  %v2121 = vrcp.pop %v2118
  %v2122 = vmul.f32 1.0, %v2121
  %v2123 = vtanh.pop %v2110
  %v2124 = vmul.f32 %v2120, %v1832
  %2126 = vrot.lane.b32.xlu0 %v2123, 64
  %v2127 = vpop.permute.xlu0 %2126
  %v2129 = vmul.f32 %v2120, %v2127
  %2131 = vrot.lane.b32.xlu0 %v2129, 64
  %v2132 = vpop.permute.xlu0 %2131
  %v2134 = vadd.f32 %v2124, %v2132
  %v2135 = vtanh.pop %v2134
  %2137 = vrot.lane.b32.xlu0 %v2135, 64
  %v2138 = vpop.permute.xlu0 %2137
  %v2140 = vmul.f32 %v2122, %v2138
  %v2142 = vsel %vm316, %v2140, 0
  %2144 = vmatprep.subr.mxu0 %v301
  %2145 = vmatpush1.msra.mxu0 %v300
  %2146 = vmatprep.subr.mxu0 %v303
  %2147 = vmatpush1.msra.mxu0 %v302
  %2148 = vmatprep.subr.mxu0 %v305
  %2149 = vmatpush1.msra.mxu0 %v304
  %2150 = vmatprep.subr.mxu0 %v307
  %2151 = vmatpush1.msra.mxu0 %v306
  %2152 = vmatprep.subr.mxu0 %v309
  %2153 = vmatpush1.msra.mxu0 %v308
  %2154 = vmatprep.subr.mxu0 %v311
  %2155 = vmatpush1.msra.mxu0 %v310
  %2156 = vmatprep.subr.mxu0 %v313
  %2157 = vmatpush1.msra.mxu0 %v312
  %2158 = vmatprep.subr.mxu0 %v315
  %2159 = vmatpush1.msra.mxu0 %v314
  %2160 = vmatprep.subr.mxu0 0.0
  %2161 = vmatpush1.msra.mxu0 0.0
  %2162 = vmatprep.subr.mxu0 0.0
  %2163 = vmatpush1.msra.mxu0 0.0
  %2164 = vmatprep.subr.mxu0 0.0
  %2165 = vmatpush1.msra.mxu0 0.0
  %2166 = vmatprep.subr.mxu0 0.0
  %2167 = vmatpush1.msra.mxu0 0.0
  %2168 = vmatprep.subr.mxu0 0.0
  %2169 = vmatpush1.msra.mxu0 0.0
  %2170 = vmatprep.subr.mxu0 0.0
  %2171 = vmatpush1.msra.mxu0 0.0
  %2172 = vmatprep.subr.mxu0 0.0
  %2173 = vmatpush1.msra.mxu0 0.0
  %2174 = vmatprep.subr.mxu0 0.0
  %2175 = vmatpush1.msra.mxu0 0.0
  %2176 = vmatprep.subr.mxu0 0.0
  %2177 = vmatpush1.msra.mxu0 0.0
  %2178 = vmatprep.subr.mxu0 0.0
  %2179 = vmatpush1.msra.mxu0 0.0
  %2180 = vmatprep.subr.mxu0 0.0
  %2181 = vmatpush1.msra.mxu0 0.0
  %2182 = vmatprep.subr.mxu0 0.0
  %2183 = vmatpush1.msra.mxu0 0.0
  %2184 = vmatprep.subr.mxu0 0.0
  %2185 = vmatpush1.msra.mxu0 0.0
  %2186 = vmatprep.subr.mxu0 0.0
  %2187 = vmatpush1.msra.mxu0 0.0
  %2188 = vmatprep.subr.mxu0 0.0
  %2189 = vmatpush1.msra.mxu0 0.0
  %2190 = vmatprep.subr.mxu0 0.0
  %2191 = vmatpush1.msra.mxu0 0.0
  %2192 = vmatprep.subr.mxu0 0.0
  %2193 = vmatpush1.msra.mxu0 0.0
  %2194 = vmatprep.subr.mxu0 0.0
  %2195 = vmatpush1.msra.mxu0 0.0
  %2196 = vmatprep.subr.mxu0 0.0
  %2197 = vmatpush1.msra.mxu0 0.0
  %2198 = vmatprep.subr.mxu0 0.0
  %2199 = vmatpush1.msra.mxu0 0.0
  %2200 = vmatprep.subr.mxu0 0.0
  %2201 = vmatpush1.msra.mxu0 0.0
  %2202 = vmatprep.subr.mxu0 0.0
  %2203 = vmatpush1.msra.mxu0 0.0
  %2204 = vmatprep.subr.mxu0 0.0
  %2205 = vmatpush1.msra.mxu0 0.0
  %2206 = vmatprep.subr.mxu0 0.0
  %2207 = vmatpush1.msra.mxu0 0.0
  %2208 = vmatprep.mubr.f32.mxu0 0.0
  %2209 = vmatmul.mubr.f32.gmra.mrb[0].mxu0 %v2142
  %v2210 = vpop.f32.mrb[0].mxu0
  %v2211 = vadd.f32 %v2105, %v2210
  %v2212 = vpop.f32.mrb[0].mxu0
  %v2213 = vadd.f32 %v2107, %v2212
  %2214 = vdwg.mxu0
  %v2215 = vadd.f32 %v2211, %v49
  %v2216 = vadd.f32 %v2213, %v53
  %v2217 = vxor.u32 %v2215, 2147483648
  %v2218 = vxor.u32 %v2216, 2147483648
  %v2219 = vmul.f32 %v2217, 1.442695
  %v2220 = vpow.pop %v2219
  %v2221 = vmul.f32 %v2218, 1.442695
  %v2222 = vpow.pop %v2221
  %v2223 = vadd.f32 %v2220, 1.0
  %v2224 = vadd.f32 %v2222, 1.0
  %v2225 = vrcp.pop %v2223
  %v2226 = vmul.f32 1.0, %v2225
  %v2227 = vrcp.pop %v2224
  %v2228 = vmul.f32 1.0, %v2227
  %v2229 = vtanh.pop %v2216
  %v2230 = vmul.f32 %v2226, %v1938
  %2232 = vrot.lane.b32.xlu0 %v2229, 64
  %v2233 = vpop.permute.xlu0 %2232
  %v2235 = vmul.f32 %v2226, %v2233
  %2237 = vrot.lane.b32.xlu0 %v2235, 64
  %v2238 = vpop.permute.xlu0 %2237
  %v2240 = vadd.f32 %v2230, %v2238
  %v2241 = vtanh.pop %v2240
  %2243 = vrot.lane.b32.xlu0 %v2241, 64
  %v2244 = vpop.permute.xlu0 %2243
  %v2246 = vmul.f32 %v2228, %v2244
  %2248 = vrot.lane.b32.xlu0 %v2246, 64
  %v2249 = vpop.permute.xlu0 %2248
  %v2251 = vsel %vm316, %v2140, %v2249
  %v2252 = vmul.f32 %v2246, %v432
  %v2253 = vsel %vm316, %v2252, 0.0
  %2254 = vadd.xlane.f32.xlu0 %v2253
  %v2255 = vpop.xlane.xlu0 %2254
  %v2256 = vadd.f32 %v2255, %v442
  %vm2257 = vcmp.eq.s32.totalorder %v59, 6
  %v2258 = vsel %vm2257, 1, 0
  %vm2259 = vcmp.eq.s32.totalorder %v2258, 1
  %2261 = vset.pattern.permute.xlu0 0
  %2262 = vperm.xlu0 %2261, %v2256
  %v2263 = vpop.permute.xlu0 %2262
  %v2265 = vsel %vm2259, %v2263, %v1963
  %s2266 = scalar_lea.vmem %s0, 112
  %v2267 = vld [vmem:[%s2266] sm:$0xff]
  %v2268 = vld [vmem:[%s2266 + $0x8] sm:$0xff]
  %2269 = vmatprep.subr.mxu0 %v63
  %2270 = vmatpush1.msra.mxu0 %v62
  %2271 = vmatprep.subr.mxu0 %v67
  %2272 = vmatpush1.msra.mxu0 %v66
  %2273 = vmatprep.subr.mxu0 %v71
  %2274 = vmatpush1.msra.mxu0 %v70
  %2275 = vmatprep.subr.mxu0 %v75
  %2276 = vmatpush1.msra.mxu0 %v74
  %2277 = vmatprep.subr.mxu0 %v79
  %2278 = vmatpush1.msra.mxu0 %v78
  %2279 = vmatprep.subr.mxu0 %v83
  %2280 = vmatpush1.msra.mxu0 %v82
  %2281 = vmatprep.subr.mxu0 %v87
  %2282 = vmatpush1.msra.mxu0 %v86
  %2283 = vmatprep.subr.mxu0 %v91
  %2284 = vmatpush1.msra.mxu0 %v90
  %2285 = vmatprep.subr.mxu0 %v95
  %2286 = vmatpush1.msra.mxu0 %v94
  %2287 = vmatprep.subr.mxu0 %v99
  %2288 = vmatpush1.msra.mxu0 %v98
  %2289 = vmatprep.subr.mxu0 %v103
  %2290 = vmatpush1.msra.mxu0 %v102
  %2291 = vmatprep.subr.mxu0 %v107
  %2292 = vmatpush1.msra.mxu0 %v106
  %2293 = vmatprep.subr.mxu0 %v111
  %2294 = vmatpush1.msra.mxu0 %v110
  %2295 = vmatprep.subr.mxu0 %v115
  %2296 = vmatpush1.msra.mxu0 %v114
  %2297 = vmatprep.subr.mxu0 %v119
  %2298 = vmatpush1.msra.mxu0 %v118
  %2299 = vmatprep.subr.mxu0 %v123
  %2300 = vmatpush1.msra.mxu0 %v122
  %2301 = vmatprep.subr.mxu0 0.0
  %2302 = vmatpush1.msra.mxu0 0.0
  %2303 = vmatprep.subr.mxu0 0.0
  %2304 = vmatpush1.msra.mxu0 0.0
  %2305 = vmatprep.subr.mxu0 0.0
  %2306 = vmatpush1.msra.mxu0 0.0
  %2307 = vmatprep.subr.mxu0 0.0
  %2308 = vmatpush1.msra.mxu0 0.0
  %2309 = vmatprep.subr.mxu0 0.0
  %2310 = vmatpush1.msra.mxu0 0.0
  %2311 = vmatprep.subr.mxu0 0.0
  %2312 = vmatpush1.msra.mxu0 0.0
  %2313 = vmatprep.subr.mxu0 0.0
  %2314 = vmatpush1.msra.mxu0 0.0
  %2315 = vmatprep.subr.mxu0 0.0
  %2316 = vmatpush1.msra.mxu0 0.0
  %2317 = vmatprep.subr.mxu0 0.0
  %2318 = vmatpush1.msra.mxu0 0.0
  %2319 = vmatprep.subr.mxu0 0.0
  %2320 = vmatpush1.msra.mxu0 0.0
  %2321 = vmatprep.subr.mxu0 0.0
  %2322 = vmatpush1.msra.mxu0 0.0
  %2323 = vmatprep.subr.mxu0 0.0
  %2324 = vmatpush1.msra.mxu0 0.0
  %2325 = vmatprep.subr.mxu0 0.0
  %2326 = vmatpush1.msra.mxu0 0.0
  %2327 = vmatprep.subr.mxu0 0.0
  %2328 = vmatpush1.msra.mxu0 0.0
  %2329 = vmatprep.subr.mxu0 0.0
  %2330 = vmatpush1.msra.mxu0 0.0
  %2331 = vmatprep.subr.mxu0 0.0
  %2332 = vmatpush1.msra.mxu0 0.0
  %2333 = vmatprep.mubr.f32.mxu0 0.0
  %2334 = vmatmul.mubr.f32.gmra.mrb[0].mxu0 %v2251
  %v2335 = vpop.f32.mrb[0].mxu0
  %v2336 = vadd.f32 0.0, %v2335
  %v2337 = vpop.f32.mrb[0].mxu0
  %v2338 = vadd.f32 0.0, %v2337
  %2339 = vdwg.mxu0
  %2340 = vmatprep.subr.mxu0 %v65
  %2341 = vmatpush1.msra.mxu0 %v64
  %2342 = vmatprep.subr.mxu0 %v69
  %2343 = vmatpush1.msra.mxu0 %v68
  %2344 = vmatprep.subr.mxu0 %v73
  %2345 = vmatpush1.msra.mxu0 %v72
  %2346 = vmatprep.subr.mxu0 %v77
  %2347 = vmatpush1.msra.mxu0 %v76
  %2348 = vmatprep.subr.mxu0 %v81
  %2349 = vmatpush1.msra.mxu0 %v80
  %2350 = vmatprep.subr.mxu0 %v85
  %2351 = vmatpush1.msra.mxu0 %v84
  %2352 = vmatprep.subr.mxu0 %v89
  %2353 = vmatpush1.msra.mxu0 %v88
  %2354 = vmatprep.subr.mxu0 %v93
  %2355 = vmatpush1.msra.mxu0 %v92
  %2356 = vmatprep.subr.mxu0 %v97
  %2357 = vmatpush1.msra.mxu0 %v96
  %2358 = vmatprep.subr.mxu0 %v101
  %2359 = vmatpush1.msra.mxu0 %v100
  %2360 = vmatprep.subr.mxu0 %v105
  %2361 = vmatpush1.msra.mxu0 %v104
  %2362 = vmatprep.subr.mxu0 %v109
  %2363 = vmatpush1.msra.mxu0 %v108
  %2364 = vmatprep.subr.mxu0 %v113
  %2365 = vmatpush1.msra.mxu0 %v112
  %2366 = vmatprep.subr.mxu0 %v117
  %2367 = vmatpush1.msra.mxu0 %v116
  %2368 = vmatprep.subr.mxu0 %v121
  %2369 = vmatpush1.msra.mxu0 %v120
  %2370 = vmatprep.subr.mxu0 %v125
  %2371 = vmatpush1.msra.mxu0 %v124
  %2372 = vmatprep.subr.mxu0 0.0
  %2373 = vmatpush1.msra.mxu0 0.0
  %2374 = vmatprep.subr.mxu0 0.0
  %2375 = vmatpush1.msra.mxu0 0.0
  %2376 = vmatprep.subr.mxu0 0.0
  %2377 = vmatpush1.msra.mxu0 0.0
  %2378 = vmatprep.subr.mxu0 0.0
  %2379 = vmatpush1.msra.mxu0 0.0
  %2380 = vmatprep.subr.mxu0 0.0
  %2381 = vmatpush1.msra.mxu0 0.0
  %2382 = vmatprep.subr.mxu0 0.0
  %2383 = vmatpush1.msra.mxu0 0.0
  %2384 = vmatprep.subr.mxu0 0.0
  %2385 = vmatpush1.msra.mxu0 0.0
  %2386 = vmatprep.subr.mxu0 0.0
  %2387 = vmatpush1.msra.mxu0 0.0
  %2388 = vmatprep.subr.mxu0 0.0
  %2389 = vmatpush1.msra.mxu0 0.0
  %2390 = vmatprep.subr.mxu0 0.0
  %2391 = vmatpush1.msra.mxu0 0.0
  %2392 = vmatprep.subr.mxu0 0.0
  %2393 = vmatpush1.msra.mxu0 0.0
  %2394 = vmatprep.subr.mxu0 0.0
  %2395 = vmatpush1.msra.mxu0 0.0
  %2396 = vmatprep.subr.mxu0 0.0
  %2397 = vmatpush1.msra.mxu0 0.0
  %2398 = vmatprep.subr.mxu0 0.0
  %2399 = vmatpush1.msra.mxu0 0.0
  %2400 = vmatprep.subr.mxu0 0.0
  %2401 = vmatpush1.msra.mxu0 0.0
  %2402 = vmatprep.subr.mxu0 0.0
  %2403 = vmatpush1.msra.mxu0 0.0
  %2404 = vmatprep.mubr.f32.mxu0 0.0
  %2405 = vmatmul.mubr.f32.gmra.mrb[0].mxu0 %v2251
  %v2406 = vpop.f32.mrb[0].mxu0
  %v2407 = vadd.f32 0.0, %v2406
  %v2408 = vpop.f32.mrb[0].mxu0
  %v2409 = vadd.f32 0.0, %v2408
  %2410 = vdwg.mxu0
  %v2411 = vadd.f32 %v2267, %v2336
  %v2412 = vadd.f32 %v2268, %v2338
  %v2413 = vxor.u32 %v2411, 2147483648
  %v2414 = vxor.u32 %v2412, 2147483648
  %v2415 = vmul.f32 %v2413, 1.442695
  %v2416 = vpow.pop %v2415
  %v2417 = vmul.f32 %v2414, 1.442695
  %v2418 = vpow.pop %v2417
  %v2419 = vadd.f32 %v2416, 1.0
  %v2420 = vadd.f32 %v2418, 1.0
  %v2421 = vrcp.pop %v2419
  %v2422 = vmul.f32 1.0, %v2421
  %v2423 = vrcp.pop %v2420
  %v2424 = vmul.f32 1.0, %v2423
  %v2425 = vtanh.pop %v2412
  %v2426 = vmul.f32 %v2422, %v2134
  %2428 = vrot.lane.b32.xlu0 %v2425, 64
  %v2429 = vpop.permute.xlu0 %2428
  %v2431 = vmul.f32 %v2422, %v2429
  %2433 = vrot.lane.b32.xlu0 %v2431, 64
  %v2434 = vpop.permute.xlu0 %2433
  %v2436 = vadd.f32 %v2426, %v2434
  %v2437 = vtanh.pop %v2436
  %2439 = vrot.lane.b32.xlu0 %v2437, 64
  %v2440 = vpop.permute.xlu0 %2439
  %v2442 = vmul.f32 %v2424, %v2440
  %v2444 = vsel %vm316, %v2442, 0
  %2446 = vmatprep.subr.mxu0 %v301
  %2447 = vmatpush1.msra.mxu0 %v300
  %2448 = vmatprep.subr.mxu0 %v303
  %2449 = vmatpush1.msra.mxu0 %v302
  %2450 = vmatprep.subr.mxu0 %v305
  %2451 = vmatpush1.msra.mxu0 %v304
  %2452 = vmatprep.subr.mxu0 %v307
  %2453 = vmatpush1.msra.mxu0 %v306
  %2454 = vmatprep.subr.mxu0 %v309
  %2455 = vmatpush1.msra.mxu0 %v308
  %2456 = vmatprep.subr.mxu0 %v311
  %2457 = vmatpush1.msra.mxu0 %v310
  %2458 = vmatprep.subr.mxu0 %v313
  %2459 = vmatpush1.msra.mxu0 %v312
  %2460 = vmatprep.subr.mxu0 %v315
  %2461 = vmatpush1.msra.mxu0 %v314
  %2462 = vmatprep.subr.mxu0 0.0
  %2463 = vmatpush1.msra.mxu0 0.0
  %2464 = vmatprep.subr.mxu0 0.0
  %2465 = vmatpush1.msra.mxu0 0.0
  %2466 = vmatprep.subr.mxu0 0.0
  %2467 = vmatpush1.msra.mxu0 0.0
  %2468 = vmatprep.subr.mxu0 0.0
  %2469 = vmatpush1.msra.mxu0 0.0
  %2470 = vmatprep.subr.mxu0 0.0
  %2471 = vmatpush1.msra.mxu0 0.0
  %2472 = vmatprep.subr.mxu0 0.0
  %2473 = vmatpush1.msra.mxu0 0.0
  %2474 = vmatprep.subr.mxu0 0.0
  %2475 = vmatpush1.msra.mxu0 0.0
  %2476 = vmatprep.subr.mxu0 0.0
  %2477 = vmatpush1.msra.mxu0 0.0
  %2478 = vmatprep.subr.mxu0 0.0
  %2479 = vmatpush1.msra.mxu0 0.0
  %2480 = vmatprep.subr.mxu0 0.0
  %2481 = vmatpush1.msra.mxu0 0.0
  %2482 = vmatprep.subr.mxu0 0.0
  %2483 = vmatpush1.msra.mxu0 0.0
  %2484 = vmatprep.subr.mxu0 0.0
  %2485 = vmatpush1.msra.mxu0 0.0
  %2486 = vmatprep.subr.mxu0 0.0
  %2487 = vmatpush1.msra.mxu0 0.0
  %2488 = vmatprep.subr.mxu0 0.0
  %2489 = vmatpush1.msra.mxu0 0.0
  %2490 = vmatprep.subr.mxu0 0.0
  %2491 = vmatpush1.msra.mxu0 0.0
  %2492 = vmatprep.subr.mxu0 0.0
  %2493 = vmatpush1.msra.mxu0 0.0
  %2494 = vmatprep.subr.mxu0 0.0
  %2495 = vmatpush1.msra.mxu0 0.0
  %2496 = vmatprep.subr.mxu0 0.0
  %2497 = vmatpush1.msra.mxu0 0.0
  %2498 = vmatprep.subr.mxu0 0.0
  %2499 = vmatpush1.msra.mxu0 0.0
  %2500 = vmatprep.subr.mxu0 0.0
  %2501 = vmatpush1.msra.mxu0 0.0
  %2502 = vmatprep.subr.mxu0 0.0
  %2503 = vmatpush1.msra.mxu0 0.0
  %2504 = vmatprep.subr.mxu0 0.0
  %2505 = vmatpush1.msra.mxu0 0.0
  %2506 = vmatprep.subr.mxu0 0.0
  %2507 = vmatpush1.msra.mxu0 0.0
  %2508 = vmatprep.subr.mxu0 0.0
  %2509 = vmatpush1.msra.mxu0 0.0
  %2510 = vmatprep.mubr.f32.mxu0 0.0
  %2511 = vmatmul.mubr.f32.gmra.mrb[0].mxu0 %v2444
  %v2512 = vpop.f32.mrb[0].mxu0
  %v2513 = vadd.f32 %v2407, %v2512
  %v2514 = vpop.f32.mrb[0].mxu0
  %v2515 = vadd.f32 %v2409, %v2514
  %2516 = vdwg.mxu0
  %v2517 = vadd.f32 %v2513, %v49
  %v2518 = vadd.f32 %v2515, %v53
  %v2519 = vxor.u32 %v2517, 2147483648
  %v2520 = vxor.u32 %v2518, 2147483648
  %v2521 = vmul.f32 %v2519, 1.442695
  %v2522 = vpow.pop %v2521
  %v2523 = vmul.f32 %v2520, 1.442695
  %v2524 = vpow.pop %v2523
  %v2525 = vadd.f32 %v2522, 1.0
  %v2526 = vadd.f32 %v2524, 1.0
  %v2527 = vrcp.pop %v2525
  %v2528 = vmul.f32 1.0, %v2527
  %v2529 = vrcp.pop %v2526
  %v2530 = vmul.f32 1.0, %v2529
  %v2531 = vtanh.pop %v2518
  %v2532 = vmul.f32 %v2528, %v2240
  %2534 = vrot.lane.b32.xlu0 %v2531, 64
  %v2535 = vpop.permute.xlu0 %2534
  %v2537 = vmul.f32 %v2528, %v2535
  %2539 = vrot.lane.b32.xlu0 %v2537, 64
  %v2540 = vpop.permute.xlu0 %2539
  %v2542 = vadd.f32 %v2532, %v2540
  %v2543 = vtanh.pop %v2542
  %2545 = vrot.lane.b32.xlu0 %v2543, 64
  %v2546 = vpop.permute.xlu0 %2545
  %v2548 = vmul.f32 %v2530, %v2546
  %2550 = vrot.lane.b32.xlu0 %v2548, 64
  %v2551 = vpop.permute.xlu0 %2550
  %v2553 = vsel %vm316, %v2442, %v2551
  %v2554 = vmul.f32 %v2548, %v432
  %v2555 = vsel %vm316, %v2554, 0.0
  %2556 = vadd.xlane.f32.xlu0 %v2555
  %v2557 = vpop.xlane.xlu0 %2556
  %v2558 = vadd.f32 %v2557, %v442
  %vm2559 = vcmp.eq.s32.totalorder %v59, 7
  %v2560 = vsel %vm2559, 1, 0
  %vm2561 = vcmp.eq.s32.totalorder %v2560, 1
  %2563 = vset.pattern.permute.xlu0 0
  %2564 = vperm.xlu0 %2563, %v2558
  %v2565 = vpop.permute.xlu0 %2564
  %v2567 = vsel %vm2561, %v2565, %v2265
  %v2569 = vlaneseq
  %v2570 = vshrl.u32 %v2569, 7
  %v2571 = vsub.s32 0, %v2570
  %v2572 = vrot.slane %v31, %v2571
  %v2573 = vlaneseq
  %v2574 = vshrl.u32 %v2573, 7
  %v2575 = vsub.s32 1, %v2574
  %v2576 = vrot.slane %v31, %v2575
  %v2579 = vmul.f32 %v2565, %v2572
  %v2580 = vmul.f32 %v2565, %v2576
  %v2581 = vadd.f32 %v2579, %v37
  %v2582 = vadd.f32 %v2580, %v41
  %2583 = vmatprep.subr.mxu0 %v63
  %2584 = vmatpush1.msra.mxu0 %v62
  %2585 = vmatprep.subr.mxu0 %v67
  %2586 = vmatpush1.msra.mxu0 %v66
  %2587 = vmatprep.subr.mxu0 %v71
  %2588 = vmatpush1.msra.mxu0 %v70
  %2589 = vmatprep.subr.mxu0 %v75
  %2590 = vmatpush1.msra.mxu0 %v74
  %2591 = vmatprep.subr.mxu0 %v79
  %2592 = vmatpush1.msra.mxu0 %v78
  %2593 = vmatprep.subr.mxu0 %v83
  %2594 = vmatpush1.msra.mxu0 %v82
  %2595 = vmatprep.subr.mxu0 %v87
  %2596 = vmatpush1.msra.mxu0 %v86
  %2597 = vmatprep.subr.mxu0 %v91
  %2598 = vmatpush1.msra.mxu0 %v90
  %2599 = vmatprep.subr.mxu0 %v95
  %2600 = vmatpush1.msra.mxu0 %v94
  %2601 = vmatprep.subr.mxu0 %v99
  %2602 = vmatpush1.msra.mxu0 %v98
  %2603 = vmatprep.subr.mxu0 %v103
  %2604 = vmatpush1.msra.mxu0 %v102
  %2605 = vmatprep.subr.mxu0 %v107
  %2606 = vmatpush1.msra.mxu0 %v106
  %2607 = vmatprep.subr.mxu0 %v111
  %2608 = vmatpush1.msra.mxu0 %v110
  %2609 = vmatprep.subr.mxu0 %v115
  %2610 = vmatpush1.msra.mxu0 %v114
  %2611 = vmatprep.subr.mxu0 %v119
  %2612 = vmatpush1.msra.mxu0 %v118
  %2613 = vmatprep.subr.mxu0 %v123
  %2614 = vmatpush1.msra.mxu0 %v122
  %2615 = vmatprep.subr.mxu0 0.0
  %2616 = vmatpush1.msra.mxu0 0.0
  %2617 = vmatprep.subr.mxu0 0.0
  %2618 = vmatpush1.msra.mxu0 0.0
  %2619 = vmatprep.subr.mxu0 0.0
  %2620 = vmatpush1.msra.mxu0 0.0
  %2621 = vmatprep.subr.mxu0 0.0
  %2622 = vmatpush1.msra.mxu0 0.0
  %2623 = vmatprep.subr.mxu0 0.0
  %2624 = vmatpush1.msra.mxu0 0.0
  %2625 = vmatprep.subr.mxu0 0.0
  %2626 = vmatpush1.msra.mxu0 0.0
  %2627 = vmatprep.subr.mxu0 0.0
  %2628 = vmatpush1.msra.mxu0 0.0
  %2629 = vmatprep.subr.mxu0 0.0
  %2630 = vmatpush1.msra.mxu0 0.0
  %2631 = vmatprep.subr.mxu0 0.0
  %2632 = vmatpush1.msra.mxu0 0.0
  %2633 = vmatprep.subr.mxu0 0.0
  %2634 = vmatpush1.msra.mxu0 0.0
  %2635 = vmatprep.subr.mxu0 0.0
  %2636 = vmatpush1.msra.mxu0 0.0
  %2637 = vmatprep.subr.mxu0 0.0
  %2638 = vmatpush1.msra.mxu0 0.0
  %2639 = vmatprep.subr.mxu0 0.0
  %2640 = vmatpush1.msra.mxu0 0.0
  %2641 = vmatprep.subr.mxu0 0.0
  %2642 = vmatpush1.msra.mxu0 0.0
  %2643 = vmatprep.subr.mxu0 0.0
  %2644 = vmatpush1.msra.mxu0 0.0
  %2645 = vmatprep.subr.mxu0 0.0
  %2646 = vmatpush1.msra.mxu0 0.0
  %2647 = vmatprep.mubr.f32.mxu0 0.0
  %2648 = vmatmul.mubr.f32.gmra.mrb[0].mxu0 %v2553
  %v2649 = vpop.f32.mrb[0].mxu0
  %v2650 = vadd.f32 0.0, %v2649
  %v2651 = vpop.f32.mrb[0].mxu0
  %v2652 = vadd.f32 0.0, %v2651
  %2653 = vdwg.mxu0
  %2654 = vmatprep.subr.mxu0 %v65
  %2655 = vmatpush1.msra.mxu0 %v64
  %2656 = vmatprep.subr.mxu0 %v69
  %2657 = vmatpush1.msra.mxu0 %v68
  %2658 = vmatprep.subr.mxu0 %v73
  %2659 = vmatpush1.msra.mxu0 %v72
  %2660 = vmatprep.subr.mxu0 %v77
  %2661 = vmatpush1.msra.mxu0 %v76
  %2662 = vmatprep.subr.mxu0 %v81
  %2663 = vmatpush1.msra.mxu0 %v80
  %2664 = vmatprep.subr.mxu0 %v85
  %2665 = vmatpush1.msra.mxu0 %v84
  %2666 = vmatprep.subr.mxu0 %v89
  %2667 = vmatpush1.msra.mxu0 %v88
  %2668 = vmatprep.subr.mxu0 %v93
  %2669 = vmatpush1.msra.mxu0 %v92
  %2670 = vmatprep.subr.mxu0 %v97
  %2671 = vmatpush1.msra.mxu0 %v96
  %2672 = vmatprep.subr.mxu0 %v101
  %2673 = vmatpush1.msra.mxu0 %v100
  %2674 = vmatprep.subr.mxu0 %v105
  %2675 = vmatpush1.msra.mxu0 %v104
  %2676 = vmatprep.subr.mxu0 %v109
  %2677 = vmatpush1.msra.mxu0 %v108
  %2678 = vmatprep.subr.mxu0 %v113
  %2679 = vmatpush1.msra.mxu0 %v112
  %2680 = vmatprep.subr.mxu0 %v117
  %2681 = vmatpush1.msra.mxu0 %v116
  %2682 = vmatprep.subr.mxu0 %v121
  %2683 = vmatpush1.msra.mxu0 %v120
  %2684 = vmatprep.subr.mxu0 %v125
  %2685 = vmatpush1.msra.mxu0 %v124
  %2686 = vmatprep.subr.mxu0 0.0
  %2687 = vmatpush1.msra.mxu0 0.0
  %2688 = vmatprep.subr.mxu0 0.0
  %2689 = vmatpush1.msra.mxu0 0.0
  %2690 = vmatprep.subr.mxu0 0.0
  %2691 = vmatpush1.msra.mxu0 0.0
  %2692 = vmatprep.subr.mxu0 0.0
  %2693 = vmatpush1.msra.mxu0 0.0
  %2694 = vmatprep.subr.mxu0 0.0
  %2695 = vmatpush1.msra.mxu0 0.0
  %2696 = vmatprep.subr.mxu0 0.0
  %2697 = vmatpush1.msra.mxu0 0.0
  %2698 = vmatprep.subr.mxu0 0.0
  %2699 = vmatpush1.msra.mxu0 0.0
  %2700 = vmatprep.subr.mxu0 0.0
  %2701 = vmatpush1.msra.mxu0 0.0
  %2702 = vmatprep.subr.mxu0 0.0
  %2703 = vmatpush1.msra.mxu0 0.0
  %2704 = vmatprep.subr.mxu0 0.0
  %2705 = vmatpush1.msra.mxu0 0.0
  %2706 = vmatprep.subr.mxu0 0.0
  %2707 = vmatpush1.msra.mxu0 0.0
  %2708 = vmatprep.subr.mxu0 0.0
  %2709 = vmatpush1.msra.mxu0 0.0
  %2710 = vmatprep.subr.mxu0 0.0
  %2711 = vmatpush1.msra.mxu0 0.0
  %2712 = vmatprep.subr.mxu0 0.0
  %2713 = vmatpush1.msra.mxu0 0.0
  %2714 = vmatprep.subr.mxu0 0.0
  %2715 = vmatpush1.msra.mxu0 0.0
  %2716 = vmatprep.subr.mxu0 0.0
  %2717 = vmatpush1.msra.mxu0 0.0
  %2718 = vmatprep.mubr.f32.mxu0 0.0
  %2719 = vmatmul.mubr.f32.gmra.mrb[0].mxu0 %v2553
  %v2720 = vpop.f32.mrb[0].mxu0
  %v2721 = vadd.f32 0.0, %v2720
  %v2722 = vpop.f32.mrb[0].mxu0
  %v2723 = vadd.f32 0.0, %v2722
  %2724 = vdwg.mxu0
  %v2725 = vadd.f32 %v2581, %v2650
  %v2726 = vadd.f32 %v2582, %v2652
  %v2727 = vxor.u32 %v2725, 2147483648
  %v2728 = vxor.u32 %v2726, 2147483648
  %v2729 = vmul.f32 %v2727, 1.442695
  %v2730 = vpow.pop %v2729
  %v2731 = vmul.f32 %v2728, 1.442695
  %v2732 = vpow.pop %v2731
  %v2733 = vadd.f32 %v2730, 1.0
  %v2734 = vadd.f32 %v2732, 1.0
  %v2735 = vrcp.pop %v2733
  %v2736 = vmul.f32 1.0, %v2735
  %v2737 = vrcp.pop %v2734
  %v2738 = vmul.f32 1.0, %v2737
  %v2739 = vtanh.pop %v2726
  %v2740 = vmul.f32 %v2736, %v2436
  %2742 = vrot.lane.b32.xlu0 %v2739, 64
  %v2743 = vpop.permute.xlu0 %2742
  %v2745 = vmul.f32 %v2736, %v2743
  %2747 = vrot.lane.b32.xlu0 %v2745, 64
  %v2748 = vpop.permute.xlu0 %2747
  %v2750 = vadd.f32 %v2740, %v2748
  %v2751 = vtanh.pop %v2750
  %2753 = vrot.lane.b32.xlu0 %v2751, 64
  %v2754 = vpop.permute.xlu0 %2753
  %v2756 = vmul.f32 %v2738, %v2754
  %v2758 = vsel %vm316, %v2756, 0
  %2760 = vmatprep.subr.mxu0 %v301
  %2761 = vmatpush1.msra.mxu0 %v300
  %2762 = vmatprep.subr.mxu0 %v303
  %2763 = vmatpush1.msra.mxu0 %v302
  %2764 = vmatprep.subr.mxu0 %v305
  %2765 = vmatpush1.msra.mxu0 %v304
  %2766 = vmatprep.subr.mxu0 %v307
  %2767 = vmatpush1.msra.mxu0 %v306
  %2768 = vmatprep.subr.mxu0 %v309
  %2769 = vmatpush1.msra.mxu0 %v308
  %2770 = vmatprep.subr.mxu0 %v311
  %2771 = vmatpush1.msra.mxu0 %v310
  %2772 = vmatprep.subr.mxu0 %v313
  %2773 = vmatpush1.msra.mxu0 %v312
  %2774 = vmatprep.subr.mxu0 %v315
  %2775 = vmatpush1.msra.mxu0 %v314
  %2776 = vmatprep.subr.mxu0 0.0
  %2777 = vmatpush1.msra.mxu0 0.0
  %2778 = vmatprep.subr.mxu0 0.0
  %2779 = vmatpush1.msra.mxu0 0.0
  %2780 = vmatprep.subr.mxu0 0.0
  %2781 = vmatpush1.msra.mxu0 0.0
  %2782 = vmatprep.subr.mxu0 0.0
  %2783 = vmatpush1.msra.mxu0 0.0
  %2784 = vmatprep.subr.mxu0 0.0
  %2785 = vmatpush1.msra.mxu0 0.0
  %2786 = vmatprep.subr.mxu0 0.0
  %2787 = vmatpush1.msra.mxu0 0.0
  %2788 = vmatprep.subr.mxu0 0.0
  %2789 = vmatpush1.msra.mxu0 0.0
  %2790 = vmatprep.subr.mxu0 0.0
  %2791 = vmatpush1.msra.mxu0 0.0
  %2792 = vmatprep.subr.mxu0 0.0
  %2793 = vmatpush1.msra.mxu0 0.0
  %2794 = vmatprep.subr.mxu0 0.0
  %2795 = vmatpush1.msra.mxu0 0.0
  %2796 = vmatprep.subr.mxu0 0.0
  %2797 = vmatpush1.msra.mxu0 0.0
  %2798 = vmatprep.subr.mxu0 0.0
  %2799 = vmatpush1.msra.mxu0 0.0
  %2800 = vmatprep.subr.mxu0 0.0
  %2801 = vmatpush1.msra.mxu0 0.0
  %2802 = vmatprep.subr.mxu0 0.0
  %2803 = vmatpush1.msra.mxu0 0.0
  %2804 = vmatprep.subr.mxu0 0.0
  %2805 = vmatpush1.msra.mxu0 0.0
  %2806 = vmatprep.subr.mxu0 0.0
  %2807 = vmatpush1.msra.mxu0 0.0
  %2808 = vmatprep.subr.mxu0 0.0
  %2809 = vmatpush1.msra.mxu0 0.0
  %2810 = vmatprep.subr.mxu0 0.0
  %2811 = vmatpush1.msra.mxu0 0.0
  %2812 = vmatprep.subr.mxu0 0.0
  %2813 = vmatpush1.msra.mxu0 0.0
  %2814 = vmatprep.subr.mxu0 0.0
  %2815 = vmatpush1.msra.mxu0 0.0
  %2816 = vmatprep.subr.mxu0 0.0
  %2817 = vmatpush1.msra.mxu0 0.0
  %2818 = vmatprep.subr.mxu0 0.0
  %2819 = vmatpush1.msra.mxu0 0.0
  %2820 = vmatprep.subr.mxu0 0.0
  %2821 = vmatpush1.msra.mxu0 0.0
  %2822 = vmatprep.subr.mxu0 0.0
  %2823 = vmatpush1.msra.mxu0 0.0
  %2824 = vmatprep.mubr.f32.mxu0 0.0
  %2825 = vmatmul.mubr.f32.gmra.mrb[0].mxu0 %v2758
  %v2826 = vpop.f32.mrb[0].mxu0
  %v2827 = vadd.f32 %v2721, %v2826
  %v2828 = vpop.f32.mrb[0].mxu0
  %v2829 = vadd.f32 %v2723, %v2828
  %2830 = vdwg.mxu0
  %v2831 = vadd.f32 %v2827, %v49
  %v2832 = vadd.f32 %v2829, %v53
  %v2833 = vxor.u32 %v2831, 2147483648
  %v2834 = vxor.u32 %v2832, 2147483648
  %v2835 = vmul.f32 %v2833, 1.442695
  %v2836 = vpow.pop %v2835
  %v2837 = vmul.f32 %v2834, 1.442695
  %v2838 = vpow.pop %v2837
  %v2839 = vadd.f32 %v2836, 1.0
  %v2840 = vadd.f32 %v2838, 1.0
  %v2841 = vrcp.pop %v2839
  %v2842 = vmul.f32 1.0, %v2841
  %v2843 = vrcp.pop %v2840
  %v2844 = vmul.f32 1.0, %v2843
  %v2845 = vtanh.pop %v2832
  %v2846 = vmul.f32 %v2842, %v2542
  %2848 = vrot.lane.b32.xlu0 %v2845, 64
  %v2849 = vpop.permute.xlu0 %2848
  %v2851 = vmul.f32 %v2842, %v2849
  %2853 = vrot.lane.b32.xlu0 %v2851, 64
  %v2854 = vpop.permute.xlu0 %2853
  %v2856 = vadd.f32 %v2846, %v2854
  %v2857 = vtanh.pop %v2856
  %2859 = vrot.lane.b32.xlu0 %v2857, 64
  %v2860 = vpop.permute.xlu0 %2859
  %v2862 = vmul.f32 %v2844, %v2860
  %2864 = vrot.lane.b32.xlu0 %v2862, 64
  %v2865 = vpop.permute.xlu0 %2864
  %v2867 = vsel %vm316, %v2756, %v2865
  %v2868 = vmul.f32 %v2862, %v432
  %v2869 = vsel %vm316, %v2868, 0.0
  %2870 = vadd.xlane.f32.xlu0 %v2869
  %v2871 = vpop.xlane.xlu0 %2870
  %v2872 = vadd.f32 %v2871, %v442
  %vm2873 = vcmp.eq.s32.totalorder %v59, 8
  %v2874 = vsel %vm2873, 1, 0
  %vm2875 = vcmp.eq.s32.totalorder %v2874, 1
  %2877 = vset.pattern.permute.xlu0 0
  %2878 = vperm.xlu0 %2877, %v2872
  %v2879 = vpop.permute.xlu0 %2878
  %v2881 = vsel %vm2875, %v2879, %v2567
  %v2882 = vmul.f32 %v2879, %v2572
  %v2883 = vmul.f32 %v2879, %v2576
  %v2884 = vadd.f32 %v2882, %v37
  %v2885 = vadd.f32 %v2883, %v41
  %2886 = vmatprep.subr.mxu0 %v63
  %2887 = vmatpush1.msra.mxu0 %v62
  %2888 = vmatprep.subr.mxu0 %v67
  %2889 = vmatpush1.msra.mxu0 %v66
  %2890 = vmatprep.subr.mxu0 %v71
  %2891 = vmatpush1.msra.mxu0 %v70
  %2892 = vmatprep.subr.mxu0 %v75
  %2893 = vmatpush1.msra.mxu0 %v74
  %2894 = vmatprep.subr.mxu0 %v79
  %2895 = vmatpush1.msra.mxu0 %v78
  %2896 = vmatprep.subr.mxu0 %v83
  %2897 = vmatpush1.msra.mxu0 %v82
  %2898 = vmatprep.subr.mxu0 %v87
  %2899 = vmatpush1.msra.mxu0 %v86
  %2900 = vmatprep.subr.mxu0 %v91
  %2901 = vmatpush1.msra.mxu0 %v90
  %2902 = vmatprep.subr.mxu0 %v95
  %2903 = vmatpush1.msra.mxu0 %v94
  %2904 = vmatprep.subr.mxu0 %v99
  %2905 = vmatpush1.msra.mxu0 %v98
  %2906 = vmatprep.subr.mxu0 %v103
  %2907 = vmatpush1.msra.mxu0 %v102
  %2908 = vmatprep.subr.mxu0 %v107
  %2909 = vmatpush1.msra.mxu0 %v106
  %2910 = vmatprep.subr.mxu0 %v111
  %2911 = vmatpush1.msra.mxu0 %v110
  %2912 = vmatprep.subr.mxu0 %v115
  %2913 = vmatpush1.msra.mxu0 %v114
  %2914 = vmatprep.subr.mxu0 %v119
  %2915 = vmatpush1.msra.mxu0 %v118
  %2916 = vmatprep.subr.mxu0 %v123
  %2917 = vmatpush1.msra.mxu0 %v122
  %2918 = vmatprep.subr.mxu0 0.0
  %2919 = vmatpush1.msra.mxu0 0.0
  %2920 = vmatprep.subr.mxu0 0.0
  %2921 = vmatpush1.msra.mxu0 0.0
  %2922 = vmatprep.subr.mxu0 0.0
  %2923 = vmatpush1.msra.mxu0 0.0
  %2924 = vmatprep.subr.mxu0 0.0
  %2925 = vmatpush1.msra.mxu0 0.0
  %2926 = vmatprep.subr.mxu0 0.0
  %2927 = vmatpush1.msra.mxu0 0.0
  %2928 = vmatprep.subr.mxu0 0.0
  %2929 = vmatpush1.msra.mxu0 0.0
  %2930 = vmatprep.subr.mxu0 0.0
  %2931 = vmatpush1.msra.mxu0 0.0
  %2932 = vmatprep.subr.mxu0 0.0
  %2933 = vmatpush1.msra.mxu0 0.0
  %2934 = vmatprep.subr.mxu0 0.0
  %2935 = vmatpush1.msra.mxu0 0.0
  %2936 = vmatprep.subr.mxu0 0.0
  %2937 = vmatpush1.msra.mxu0 0.0
  %2938 = vmatprep.subr.mxu0 0.0
  %2939 = vmatpush1.msra.mxu0 0.0
  %2940 = vmatprep.subr.mxu0 0.0
  %2941 = vmatpush1.msra.mxu0 0.0
  %2942 = vmatprep.subr.mxu0 0.0
  %2943 = vmatpush1.msra.mxu0 0.0
  %2944 = vmatprep.subr.mxu0 0.0
  %2945 = vmatpush1.msra.mxu0 0.0
  %2946 = vmatprep.subr.mxu0 0.0
  %2947 = vmatpush1.msra.mxu0 0.0
  %2948 = vmatprep.subr.mxu0 0.0
  %2949 = vmatpush1.msra.mxu0 0.0
  %2950 = vmatprep.mubr.f32.mxu0 0.0
  %2951 = vmatmul.mubr.f32.gmra.mrb[0].mxu0 %v2867
  %v2952 = vpop.f32.mrb[0].mxu0
  %v2953 = vadd.f32 0.0, %v2952
  %v2954 = vpop.f32.mrb[0].mxu0
  %v2955 = vadd.f32 0.0, %v2954
  %2956 = vdwg.mxu0
  %2957 = vmatprep.subr.mxu0 %v65
  %2958 = vmatpush1.msra.mxu0 %v64
  %2959 = vmatprep.subr.mxu0 %v69
  %2960 = vmatpush1.msra.mxu0 %v68
  %2961 = vmatprep.subr.mxu0 %v73
  %2962 = vmatpush1.msra.mxu0 %v72
  %2963 = vmatprep.subr.mxu0 %v77
  %2964 = vmatpush1.msra.mxu0 %v76
  %2965 = vmatprep.subr.mxu0 %v81
  %2966 = vmatpush1.msra.mxu0 %v80
  %2967 = vmatprep.subr.mxu0 %v85
  %2968 = vmatpush1.msra.mxu0 %v84
  %2969 = vmatprep.subr.mxu0 %v89
  %2970 = vmatpush1.msra.mxu0 %v88
  %2971 = vmatprep.subr.mxu0 %v93
  %2972 = vmatpush1.msra.mxu0 %v92
  %2973 = vmatprep.subr.mxu0 %v97
  %2974 = vmatpush1.msra.mxu0 %v96
  %2975 = vmatprep.subr.mxu0 %v101
  %2976 = vmatpush1.msra.mxu0 %v100
  %2977 = vmatprep.subr.mxu0 %v105
  %2978 = vmatpush1.msra.mxu0 %v104
  %2979 = vmatprep.subr.mxu0 %v109
  %2980 = vmatpush1.msra.mxu0 %v108
  %2981 = vmatprep.subr.mxu0 %v113
  %2982 = vmatpush1.msra.mxu0 %v112
  %2983 = vmatprep.subr.mxu0 %v117
  %2984 = vmatpush1.msra.mxu0 %v116
  %2985 = vmatprep.subr.mxu0 %v121
  %2986 = vmatpush1.msra.mxu0 %v120
  %2987 = vmatprep.subr.mxu0 %v125
  %2988 = vmatpush1.msra.mxu0 %v124
  %2989 = vmatprep.subr.mxu0 0.0
  %2990 = vmatpush1.msra.mxu0 0.0
  %2991 = vmatprep.subr.mxu0 0.0
  %2992 = vmatpush1.msra.mxu0 0.0
  %2993 = vmatprep.subr.mxu0 0.0
  %2994 = vmatpush1.msra.mxu0 0.0
  %2995 = vmatprep.subr.mxu0 0.0
  %2996 = vmatpush1.msra.mxu0 0.0
  %2997 = vmatprep.subr.mxu0 0.0
  %2998 = vmatpush1.msra.mxu0 0.0
  %2999 = vmatprep.subr.mxu0 0.0
  %3000 = vmatpush1.msra.mxu0 0.0
  %3001 = vmatprep.subr.mxu0 0.0
  %3002 = vmatpush1.msra.mxu0 0.0
  %3003 = vmatprep.subr.mxu0 0.0
  %3004 = vmatpush1.msra.mxu0 0.0
  %3005 = vmatprep.subr.mxu0 0.0
  %3006 = vmatpush1.msra.mxu0 0.0
  %3007 = vmatprep.subr.mxu0 0.0
  %3008 = vmatpush1.msra.mxu0 0.0
  %3009 = vmatprep.subr.mxu0 0.0
  %3010 = vmatpush1.msra.mxu0 0.0
  %3011 = vmatprep.subr.mxu0 0.0
  %3012 = vmatpush1.msra.mxu0 0.0
  %3013 = vmatprep.subr.mxu0 0.0
  %3014 = vmatpush1.msra.mxu0 0.0
  %3015 = vmatprep.subr.mxu0 0.0
  %3016 = vmatpush1.msra.mxu0 0.0
  %3017 = vmatprep.subr.mxu0 0.0
  %3018 = vmatpush1.msra.mxu0 0.0
  %3019 = vmatprep.subr.mxu0 0.0
  %3020 = vmatpush1.msra.mxu0 0.0
  %3021 = vmatprep.mubr.f32.mxu0 0.0
  %3022 = vmatmul.mubr.f32.gmra.mrb[0].mxu0 %v2867
  %v3023 = vpop.f32.mrb[0].mxu0
  %v3024 = vadd.f32 0.0, %v3023
  %v3025 = vpop.f32.mrb[0].mxu0
  %v3026 = vadd.f32 0.0, %v3025
  %3027 = vdwg.mxu0
  %v3028 = vadd.f32 %v2884, %v2953
  %v3029 = vadd.f32 %v2885, %v2955
  %v3030 = vxor.u32 %v3028, 2147483648
  %v3031 = vxor.u32 %v3029, 2147483648
  %v3032 = vmul.f32 %v3030, 1.442695
  %v3033 = vpow.pop %v3032
  %v3034 = vmul.f32 %v3031, 1.442695
  %v3035 = vpow.pop %v3034
  %v3036 = vadd.f32 %v3033, 1.0
  %v3037 = vadd.f32 %v3035, 1.0
  %v3038 = vrcp.pop %v3036
  %v3039 = vmul.f32 1.0, %v3038
  %v3040 = vrcp.pop %v3037
  %v3041 = vmul.f32 1.0, %v3040
  %v3042 = vtanh.pop %v3029
  %v3043 = vmul.f32 %v3039, %v2750
  %3045 = vrot.lane.b32.xlu0 %v3042, 64
  %v3046 = vpop.permute.xlu0 %3045
  %v3048 = vmul.f32 %v3039, %v3046
  %3050 = vrot.lane.b32.xlu0 %v3048, 64
  %v3051 = vpop.permute.xlu0 %3050
  %v3053 = vadd.f32 %v3043, %v3051
  %v3054 = vtanh.pop %v3053
  %3056 = vrot.lane.b32.xlu0 %v3054, 64
  %v3057 = vpop.permute.xlu0 %3056
  %v3059 = vmul.f32 %v3041, %v3057
  %v3061 = vsel %vm316, %v3059, 0
  %3063 = vmatprep.subr.mxu0 %v301
  %3064 = vmatpush1.msra.mxu0 %v300
  %3065 = vmatprep.subr.mxu0 %v303
  %3066 = vmatpush1.msra.mxu0 %v302
  %3067 = vmatprep.subr.mxu0 %v305
  %3068 = vmatpush1.msra.mxu0 %v304
  %3069 = vmatprep.subr.mxu0 %v307
  %3070 = vmatpush1.msra.mxu0 %v306
  %3071 = vmatprep.subr.mxu0 %v309
  %3072 = vmatpush1.msra.mxu0 %v308
  %3073 = vmatprep.subr.mxu0 %v311
  %3074 = vmatpush1.msra.mxu0 %v310
  %3075 = vmatprep.subr.mxu0 %v313
  %3076 = vmatpush1.msra.mxu0 %v312
  %3077 = vmatprep.subr.mxu0 %v315
  %3078 = vmatpush1.msra.mxu0 %v314
  %3079 = vmatprep.subr.mxu0 0.0
  %3080 = vmatpush1.msra.mxu0 0.0
  %3081 = vmatprep.subr.mxu0 0.0
  %3082 = vmatpush1.msra.mxu0 0.0
  %3083 = vmatprep.subr.mxu0 0.0
  %3084 = vmatpush1.msra.mxu0 0.0
  %3085 = vmatprep.subr.mxu0 0.0
  %3086 = vmatpush1.msra.mxu0 0.0
  %3087 = vmatprep.subr.mxu0 0.0
  %3088 = vmatpush1.msra.mxu0 0.0
  %3089 = vmatprep.subr.mxu0 0.0
  %3090 = vmatpush1.msra.mxu0 0.0
  %3091 = vmatprep.subr.mxu0 0.0
  %3092 = vmatpush1.msra.mxu0 0.0
  %3093 = vmatprep.subr.mxu0 0.0
  %3094 = vmatpush1.msra.mxu0 0.0
  %3095 = vmatprep.subr.mxu0 0.0
  %3096 = vmatpush1.msra.mxu0 0.0
  %3097 = vmatprep.subr.mxu0 0.0
  %3098 = vmatpush1.msra.mxu0 0.0
  %3099 = vmatprep.subr.mxu0 0.0
  %3100 = vmatpush1.msra.mxu0 0.0
  %3101 = vmatprep.subr.mxu0 0.0
  %3102 = vmatpush1.msra.mxu0 0.0
  %3103 = vmatprep.subr.mxu0 0.0
  %3104 = vmatpush1.msra.mxu0 0.0
  %3105 = vmatprep.subr.mxu0 0.0
  %3106 = vmatpush1.msra.mxu0 0.0
  %3107 = vmatprep.subr.mxu0 0.0
  %3108 = vmatpush1.msra.mxu0 0.0
  %3109 = vmatprep.subr.mxu0 0.0
  %3110 = vmatpush1.msra.mxu0 0.0
  %3111 = vmatprep.subr.mxu0 0.0
  %3112 = vmatpush1.msra.mxu0 0.0
  %3113 = vmatprep.subr.mxu0 0.0
  %3114 = vmatpush1.msra.mxu0 0.0
  %3115 = vmatprep.subr.mxu0 0.0
  %3116 = vmatpush1.msra.mxu0 0.0
  %3117 = vmatprep.subr.mxu0 0.0
  %3118 = vmatpush1.msra.mxu0 0.0
  %3119 = vmatprep.subr.mxu0 0.0
  %3120 = vmatpush1.msra.mxu0 0.0
  %3121 = vmatprep.subr.mxu0 0.0
  %3122 = vmatpush1.msra.mxu0 0.0
  %3123 = vmatprep.subr.mxu0 0.0
  %3124 = vmatpush1.msra.mxu0 0.0
  %3125 = vmatprep.subr.mxu0 0.0
  %3126 = vmatpush1.msra.mxu0 0.0
  %3127 = vmatprep.mubr.f32.mxu0 0.0
  %3128 = vmatmul.mubr.f32.gmra.mrb[0].mxu0 %v3061
  %v3129 = vpop.f32.mrb[0].mxu0
  %v3130 = vadd.f32 %v3024, %v3129
  %v3131 = vpop.f32.mrb[0].mxu0
  %v3132 = vadd.f32 %v3026, %v3131
  %3133 = vdwg.mxu0
  %v3134 = vadd.f32 %v3130, %v49
  %v3135 = vadd.f32 %v3132, %v53
  %v3136 = vxor.u32 %v3134, 2147483648
  %v3137 = vxor.u32 %v3135, 2147483648
  %v3138 = vmul.f32 %v3136, 1.442695
  %v3139 = vpow.pop %v3138
  %v3140 = vmul.f32 %v3137, 1.442695
  %v3141 = vpow.pop %v3140
  %v3142 = vadd.f32 %v3139, 1.0
  %v3143 = vadd.f32 %v3141, 1.0
  %v3144 = vrcp.pop %v3142
  %v3145 = vmul.f32 1.0, %v3144
  %v3146 = vrcp.pop %v3143
  %v3147 = vmul.f32 1.0, %v3146
  %v3148 = vtanh.pop %v3135
  %v3149 = vmul.f32 %v3145, %v2856
  %3151 = vrot.lane.b32.xlu0 %v3148, 64
  %v3152 = vpop.permute.xlu0 %3151
  %v3154 = vmul.f32 %v3145, %v3152
  %3156 = vrot.lane.b32.xlu0 %v3154, 64
  %v3157 = vpop.permute.xlu0 %3156
  %v3159 = vadd.f32 %v3149, %v3157
  %v3160 = vtanh.pop %v3159
  %3162 = vrot.lane.b32.xlu0 %v3160, 64
  %v3163 = vpop.permute.xlu0 %3162
  %v3165 = vmul.f32 %v3147, %v3163
  %3167 = vrot.lane.b32.xlu0 %v3165, 64
  %v3168 = vpop.permute.xlu0 %3167
  %v3170 = vsel %vm316, %v3059, %v3168
  %v3171 = vmul.f32 %v3165, %v432
  %v3172 = vsel %vm316, %v3171, 0.0
  %3173 = vadd.xlane.f32.xlu0 %v3172
  %v3174 = vpop.xlane.xlu0 %3173
  %v3175 = vadd.f32 %v3174, %v442
  %vm3176 = vcmp.eq.s32.totalorder %v59, 9
  %v3177 = vsel %vm3176, 1, 0
  %vm3178 = vcmp.eq.s32.totalorder %v3177, 1
  %3180 = vset.pattern.permute.xlu0 0
  %3181 = vperm.xlu0 %3180, %v3175
  %v3182 = vpop.permute.xlu0 %3181
  %v3184 = vsel %vm3178, %v3182, %v2881
  %v3185 = vmul.f32 %v3182, %v2572
  %v3186 = vmul.f32 %v3182, %v2576
  %v3187 = vadd.f32 %v3185, %v37
  %v3188 = vadd.f32 %v3186, %v41
  %3189 = vmatprep.subr.mxu0 %v63
  %3190 = vmatpush1.msra.mxu0 %v62
  %3191 = vmatprep.subr.mxu0 %v67
  %3192 = vmatpush1.msra.mxu0 %v66
  %3193 = vmatprep.subr.mxu0 %v71
  %3194 = vmatpush1.msra.mxu0 %v70
  %3195 = vmatprep.subr.mxu0 %v75
  %3196 = vmatpush1.msra.mxu0 %v74
  %3197 = vmatprep.subr.mxu0 %v79
  %3198 = vmatpush1.msra.mxu0 %v78
  %3199 = vmatprep.subr.mxu0 %v83
  %3200 = vmatpush1.msra.mxu0 %v82
  %3201 = vmatprep.subr.mxu0 %v87
  %3202 = vmatpush1.msra.mxu0 %v86
  %3203 = vmatprep.subr.mxu0 %v91
  %3204 = vmatpush1.msra.mxu0 %v90
  %3205 = vmatprep.subr.mxu0 %v95
  %3206 = vmatpush1.msra.mxu0 %v94
  %3207 = vmatprep.subr.mxu0 %v99
  %3208 = vmatpush1.msra.mxu0 %v98
  %3209 = vmatprep.subr.mxu0 %v103
  %3210 = vmatpush1.msra.mxu0 %v102
  %3211 = vmatprep.subr.mxu0 %v107
  %3212 = vmatpush1.msra.mxu0 %v106
  %3213 = vmatprep.subr.mxu0 %v111
  %3214 = vmatpush1.msra.mxu0 %v110
  %3215 = vmatprep.subr.mxu0 %v115
  %3216 = vmatpush1.msra.mxu0 %v114
  %3217 = vmatprep.subr.mxu0 %v119
  %3218 = vmatpush1.msra.mxu0 %v118
  %3219 = vmatprep.subr.mxu0 %v123
  %3220 = vmatpush1.msra.mxu0 %v122
  %3221 = vmatprep.subr.mxu0 0.0
  %3222 = vmatpush1.msra.mxu0 0.0
  %3223 = vmatprep.subr.mxu0 0.0
  %3224 = vmatpush1.msra.mxu0 0.0
  %3225 = vmatprep.subr.mxu0 0.0
  %3226 = vmatpush1.msra.mxu0 0.0
  %3227 = vmatprep.subr.mxu0 0.0
  %3228 = vmatpush1.msra.mxu0 0.0
  %3229 = vmatprep.subr.mxu0 0.0
  %3230 = vmatpush1.msra.mxu0 0.0
  %3231 = vmatprep.subr.mxu0 0.0
  %3232 = vmatpush1.msra.mxu0 0.0
  %3233 = vmatprep.subr.mxu0 0.0
  %3234 = vmatpush1.msra.mxu0 0.0
  %3235 = vmatprep.subr.mxu0 0.0
  %3236 = vmatpush1.msra.mxu0 0.0
  %3237 = vmatprep.subr.mxu0 0.0
  %3238 = vmatpush1.msra.mxu0 0.0
  %3239 = vmatprep.subr.mxu0 0.0
  %3240 = vmatpush1.msra.mxu0 0.0
  %3241 = vmatprep.subr.mxu0 0.0
  %3242 = vmatpush1.msra.mxu0 0.0
  %3243 = vmatprep.subr.mxu0 0.0
  %3244 = vmatpush1.msra.mxu0 0.0
  %3245 = vmatprep.subr.mxu0 0.0
  %3246 = vmatpush1.msra.mxu0 0.0
  %3247 = vmatprep.subr.mxu0 0.0
  %3248 = vmatpush1.msra.mxu0 0.0
  %3249 = vmatprep.subr.mxu0 0.0
  %3250 = vmatpush1.msra.mxu0 0.0
  %3251 = vmatprep.subr.mxu0 0.0
  %3252 = vmatpush1.msra.mxu0 0.0
  %3253 = vmatprep.mubr.f32.mxu0 0.0
  %3254 = vmatmul.mubr.f32.gmra.mrb[0].mxu0 %v3170
  %v3255 = vpop.f32.mrb[0].mxu0
  %v3256 = vadd.f32 0.0, %v3255
  %v3257 = vpop.f32.mrb[0].mxu0
  %v3258 = vadd.f32 0.0, %v3257
  %3259 = vdwg.mxu0
  %3260 = vmatprep.subr.mxu0 %v65
  %3261 = vmatpush1.msra.mxu0 %v64
  %3262 = vmatprep.subr.mxu0 %v69
  %3263 = vmatpush1.msra.mxu0 %v68
  %3264 = vmatprep.subr.mxu0 %v73
  %3265 = vmatpush1.msra.mxu0 %v72
  %3266 = vmatprep.subr.mxu0 %v77
  %3267 = vmatpush1.msra.mxu0 %v76
  %3268 = vmatprep.subr.mxu0 %v81
  %3269 = vmatpush1.msra.mxu0 %v80
  %3270 = vmatprep.subr.mxu0 %v85
  %3271 = vmatpush1.msra.mxu0 %v84
  %3272 = vmatprep.subr.mxu0 %v89
  %3273 = vmatpush1.msra.mxu0 %v88
  %3274 = vmatprep.subr.mxu0 %v93
  %3275 = vmatpush1.msra.mxu0 %v92
  %3276 = vmatprep.subr.mxu0 %v97
  %3277 = vmatpush1.msra.mxu0 %v96
  %3278 = vmatprep.subr.mxu0 %v101
  %3279 = vmatpush1.msra.mxu0 %v100
  %3280 = vmatprep.subr.mxu0 %v105
  %3281 = vmatpush1.msra.mxu0 %v104
  %3282 = vmatprep.subr.mxu0 %v109
  %3283 = vmatpush1.msra.mxu0 %v108
  %3284 = vmatprep.subr.mxu0 %v113
  %3285 = vmatpush1.msra.mxu0 %v112
  %3286 = vmatprep.subr.mxu0 %v117
  %3287 = vmatpush1.msra.mxu0 %v116
  %3288 = vmatprep.subr.mxu0 %v121
  %3289 = vmatpush1.msra.mxu0 %v120
  %3290 = vmatprep.subr.mxu0 %v125
  %3291 = vmatpush1.msra.mxu0 %v124
  %3292 = vmatprep.subr.mxu0 0.0
  %3293 = vmatpush1.msra.mxu0 0.0
  %3294 = vmatprep.subr.mxu0 0.0
  %3295 = vmatpush1.msra.mxu0 0.0
  %3296 = vmatprep.subr.mxu0 0.0
  %3297 = vmatpush1.msra.mxu0 0.0
  %3298 = vmatprep.subr.mxu0 0.0
  %3299 = vmatpush1.msra.mxu0 0.0
  %3300 = vmatprep.subr.mxu0 0.0
  %3301 = vmatpush1.msra.mxu0 0.0
  %3302 = vmatprep.subr.mxu0 0.0
  %3303 = vmatpush1.msra.mxu0 0.0
  %3304 = vmatprep.subr.mxu0 0.0
  %3305 = vmatpush1.msra.mxu0 0.0
  %3306 = vmatprep.subr.mxu0 0.0
  %3307 = vmatpush1.msra.mxu0 0.0
  %3308 = vmatprep.subr.mxu0 0.0
  %3309 = vmatpush1.msra.mxu0 0.0
  %3310 = vmatprep.subr.mxu0 0.0
  %3311 = vmatpush1.msra.mxu0 0.0
  %3312 = vmatprep.subr.mxu0 0.0
  %3313 = vmatpush1.msra.mxu0 0.0
  %3314 = vmatprep.subr.mxu0 0.0
  %3315 = vmatpush1.msra.mxu0 0.0
  %3316 = vmatprep.subr.mxu0 0.0
  %3317 = vmatpush1.msra.mxu0 0.0
  %3318 = vmatprep.subr.mxu0 0.0
  %3319 = vmatpush1.msra.mxu0 0.0
  %3320 = vmatprep.subr.mxu0 0.0
  %3321 = vmatpush1.msra.mxu0 0.0
  %3322 = vmatprep.subr.mxu0 0.0
  %3323 = vmatpush1.msra.mxu0 0.0
  %3324 = vmatprep.mubr.f32.mxu0 0.0
  %3325 = vmatmul.mubr.f32.gmra.mrb[0].mxu0 %v3170
  %v3326 = vpop.f32.mrb[0].mxu0
  %v3327 = vadd.f32 0.0, %v3326
  %v3328 = vpop.f32.mrb[0].mxu0
  %v3329 = vadd.f32 0.0, %v3328
  %3330 = vdwg.mxu0
  %v3331 = vadd.f32 %v3187, %v3256
  %v3332 = vadd.f32 %v3188, %v3258
  %v3333 = vxor.u32 %v3331, 2147483648
  %v3334 = vxor.u32 %v3332, 2147483648
  %v3335 = vmul.f32 %v3333, 1.442695
  %v3336 = vpow.pop %v3335
  %v3337 = vmul.f32 %v3334, 1.442695
  %v3338 = vpow.pop %v3337
  %v3339 = vadd.f32 %v3336, 1.0
  %v3340 = vadd.f32 %v3338, 1.0
  %v3341 = vrcp.pop %v3339
  %v3342 = vmul.f32 1.0, %v3341
  %v3343 = vrcp.pop %v3340
  %v3344 = vmul.f32 1.0, %v3343
  %v3345 = vtanh.pop %v3332
  %v3346 = vmul.f32 %v3342, %v3053
  %3348 = vrot.lane.b32.xlu0 %v3345, 64
  %v3349 = vpop.permute.xlu0 %3348
  %v3351 = vmul.f32 %v3342, %v3349
  %3353 = vrot.lane.b32.xlu0 %v3351, 64
  %v3354 = vpop.permute.xlu0 %3353
  %v3356 = vadd.f32 %v3346, %v3354
  %v3357 = vtanh.pop %v3356
  %3359 = vrot.lane.b32.xlu0 %v3357, 64
  %v3360 = vpop.permute.xlu0 %3359
  %v3362 = vmul.f32 %v3344, %v3360
  %v3364 = vsel %vm316, %v3362, 0
  %3366 = vmatprep.subr.mxu0 %v301
  %3367 = vmatpush1.msra.mxu0 %v300
  %3368 = vmatprep.subr.mxu0 %v303
  %3369 = vmatpush1.msra.mxu0 %v302
  %3370 = vmatprep.subr.mxu0 %v305
  %3371 = vmatpush1.msra.mxu0 %v304
  %3372 = vmatprep.subr.mxu0 %v307
  %3373 = vmatpush1.msra.mxu0 %v306
  %3374 = vmatprep.subr.mxu0 %v309
  %3375 = vmatpush1.msra.mxu0 %v308
  %3376 = vmatprep.subr.mxu0 %v311
  %3377 = vmatpush1.msra.mxu0 %v310
  %3378 = vmatprep.subr.mxu0 %v313
  %3379 = vmatpush1.msra.mxu0 %v312
  %3380 = vmatprep.subr.mxu0 %v315
  %3381 = vmatpush1.msra.mxu0 %v314
  %3382 = vmatprep.subr.mxu0 0.0
  %3383 = vmatpush1.msra.mxu0 0.0
  %3384 = vmatprep.subr.mxu0 0.0
  %3385 = vmatpush1.msra.mxu0 0.0
  %3386 = vmatprep.subr.mxu0 0.0
  %3387 = vmatpush1.msra.mxu0 0.0
  %3388 = vmatprep.subr.mxu0 0.0
  %3389 = vmatpush1.msra.mxu0 0.0
  %3390 = vmatprep.subr.mxu0 0.0
  %3391 = vmatpush1.msra.mxu0 0.0
  %3392 = vmatprep.subr.mxu0 0.0
  %3393 = vmatpush1.msra.mxu0 0.0
  %3394 = vmatprep.subr.mxu0 0.0
  %3395 = vmatpush1.msra.mxu0 0.0
  %3396 = vmatprep.subr.mxu0 0.0
  %3397 = vmatpush1.msra.mxu0 0.0
  %3398 = vmatprep.subr.mxu0 0.0
  %3399 = vmatpush1.msra.mxu0 0.0
  %3400 = vmatprep.subr.mxu0 0.0
  %3401 = vmatpush1.msra.mxu0 0.0
  %3402 = vmatprep.subr.mxu0 0.0
  %3403 = vmatpush1.msra.mxu0 0.0
  %3404 = vmatprep.subr.mxu0 0.0
  %3405 = vmatpush1.msra.mxu0 0.0
  %3406 = vmatprep.subr.mxu0 0.0
  %3407 = vmatpush1.msra.mxu0 0.0
  %3408 = vmatprep.subr.mxu0 0.0
  %3409 = vmatpush1.msra.mxu0 0.0
  %3410 = vmatprep.subr.mxu0 0.0
  %3411 = vmatpush1.msra.mxu0 0.0
  %3412 = vmatprep.subr.mxu0 0.0
  %3413 = vmatpush1.msra.mxu0 0.0
  %3414 = vmatprep.subr.mxu0 0.0
  %3415 = vmatpush1.msra.mxu0 0.0
  %3416 = vmatprep.subr.mxu0 0.0
  %3417 = vmatpush1.msra.mxu0 0.0
  %3418 = vmatprep.subr.mxu0 0.0
  %3419 = vmatpush1.msra.mxu0 0.0
  %3420 = vmatprep.subr.mxu0 0.0
  %3421 = vmatpush1.msra.mxu0 0.0
  %3422 = vmatprep.subr.mxu0 0.0
  %3423 = vmatpush1.msra.mxu0 0.0
  %3424 = vmatprep.subr.mxu0 0.0
  %3425 = vmatpush1.msra.mxu0 0.0
  %3426 = vmatprep.subr.mxu0 0.0
  %3427 = vmatpush1.msra.mxu0 0.0
  %3428 = vmatprep.subr.mxu0 0.0
  %3429 = vmatpush1.msra.mxu0 0.0
  %3430 = vmatprep.mubr.f32.mxu0 0.0
  %3431 = vmatmul.mubr.f32.gmra.mrb[0].mxu0 %v3364
  %v3432 = vpop.f32.mrb[0].mxu0
  %v3433 = vadd.f32 %v3327, %v3432
  %v3434 = vpop.f32.mrb[0].mxu0
  %v3435 = vadd.f32 %v3329, %v3434
  %3436 = vdwg.mxu0
  %v3437 = vadd.f32 %v3433, %v49
  %v3438 = vadd.f32 %v3435, %v53
  %v3439 = vxor.u32 %v3437, 2147483648
  %v3440 = vxor.u32 %v3438, 2147483648
  %v3441 = vmul.f32 %v3439, 1.442695
  %v3442 = vpow.pop %v3441
  %v3443 = vmul.f32 %v3440, 1.442695
  %v3444 = vpow.pop %v3443
  %v3445 = vadd.f32 %v3442, 1.0
  %v3446 = vadd.f32 %v3444, 1.0
  %v3447 = vrcp.pop %v3445
  %v3448 = vmul.f32 1.0, %v3447
  %v3449 = vrcp.pop %v3446
  %v3450 = vmul.f32 1.0, %v3449
  %v3451 = vtanh.pop %v3438
  %v3452 = vmul.f32 %v3448, %v3159
  %3454 = vrot.lane.b32.xlu0 %v3451, 64
  %v3455 = vpop.permute.xlu0 %3454
  %v3457 = vmul.f32 %v3448, %v3455
  %3459 = vrot.lane.b32.xlu0 %v3457, 64
  %v3460 = vpop.permute.xlu0 %3459
  %v3462 = vadd.f32 %v3452, %v3460
  %v3463 = vtanh.pop %v3462
  %3465 = vrot.lane.b32.xlu0 %v3463, 64
  %v3466 = vpop.permute.xlu0 %3465
  %v3468 = vmul.f32 %v3450, %v3466
  %3470 = vrot.lane.b32.xlu0 %v3468, 64
  %v3471 = vpop.permute.xlu0 %3470
  %v3473 = vsel %vm316, %v3362, %v3471
  %v3474 = vmul.f32 %v3468, %v432
  %v3475 = vsel %vm316, %v3474, 0.0
  %3476 = vadd.xlane.f32.xlu0 %v3475
  %v3477 = vpop.xlane.xlu0 %3476
  %v3478 = vadd.f32 %v3477, %v442
  %vm3479 = vcmp.eq.s32.totalorder %v59, 10
  %v3480 = vsel %vm3479, 1, 0
  %vm3481 = vcmp.eq.s32.totalorder %v3480, 1
  %3483 = vset.pattern.permute.xlu0 0
  %3484 = vperm.xlu0 %3483, %v3478
  %v3485 = vpop.permute.xlu0 %3484
  %v3487 = vsel %vm3481, %v3485, %v3184
  %v3488 = vmul.f32 %v3485, %v2572
  %v3489 = vmul.f32 %v3485, %v2576
  %v3490 = vadd.f32 %v3488, %v37
  %v3491 = vadd.f32 %v3489, %v41
  %3492 = vmatprep.subr.mxu0 %v63
  %3493 = vmatpush1.msra.mxu0 %v62
  %3494 = vmatprep.subr.mxu0 %v67
  %3495 = vmatpush1.msra.mxu0 %v66
  %3496 = vmatprep.subr.mxu0 %v71
  %3497 = vmatpush1.msra.mxu0 %v70
  %3498 = vmatprep.subr.mxu0 %v75
  %3499 = vmatpush1.msra.mxu0 %v74
  %3500 = vmatprep.subr.mxu0 %v79
  %3501 = vmatpush1.msra.mxu0 %v78
  %3502 = vmatprep.subr.mxu0 %v83
  %3503 = vmatpush1.msra.mxu0 %v82
  %3504 = vmatprep.subr.mxu0 %v87
  %3505 = vmatpush1.msra.mxu0 %v86
  %3506 = vmatprep.subr.mxu0 %v91
  %3507 = vmatpush1.msra.mxu0 %v90
  %3508 = vmatprep.subr.mxu0 %v95
  %3509 = vmatpush1.msra.mxu0 %v94
  %3510 = vmatprep.subr.mxu0 %v99
  %3511 = vmatpush1.msra.mxu0 %v98
  %3512 = vmatprep.subr.mxu0 %v103
  %3513 = vmatpush1.msra.mxu0 %v102
  %3514 = vmatprep.subr.mxu0 %v107
  %3515 = vmatpush1.msra.mxu0 %v106
  %3516 = vmatprep.subr.mxu0 %v111
  %3517 = vmatpush1.msra.mxu0 %v110
  %3518 = vmatprep.subr.mxu0 %v115
  %3519 = vmatpush1.msra.mxu0 %v114
  %3520 = vmatprep.subr.mxu0 %v119
  %3521 = vmatpush1.msra.mxu0 %v118
  %3522 = vmatprep.subr.mxu0 %v123
  %3523 = vmatpush1.msra.mxu0 %v122
  %3524 = vmatprep.subr.mxu0 0.0
  %3525 = vmatpush1.msra.mxu0 0.0
  %3526 = vmatprep.subr.mxu0 0.0
  %3527 = vmatpush1.msra.mxu0 0.0
  %3528 = vmatprep.subr.mxu0 0.0
  %3529 = vmatpush1.msra.mxu0 0.0
  %3530 = vmatprep.subr.mxu0 0.0
  %3531 = vmatpush1.msra.mxu0 0.0
  %3532 = vmatprep.subr.mxu0 0.0
  %3533 = vmatpush1.msra.mxu0 0.0
  %3534 = vmatprep.subr.mxu0 0.0
  %3535 = vmatpush1.msra.mxu0 0.0
  %3536 = vmatprep.subr.mxu0 0.0
  %3537 = vmatpush1.msra.mxu0 0.0
  %3538 = vmatprep.subr.mxu0 0.0
  %3539 = vmatpush1.msra.mxu0 0.0
  %3540 = vmatprep.subr.mxu0 0.0
  %3541 = vmatpush1.msra.mxu0 0.0
  %3542 = vmatprep.subr.mxu0 0.0
  %3543 = vmatpush1.msra.mxu0 0.0
  %3544 = vmatprep.subr.mxu0 0.0
  %3545 = vmatpush1.msra.mxu0 0.0
  %3546 = vmatprep.subr.mxu0 0.0
  %3547 = vmatpush1.msra.mxu0 0.0
  %3548 = vmatprep.subr.mxu0 0.0
  %3549 = vmatpush1.msra.mxu0 0.0
  %3550 = vmatprep.subr.mxu0 0.0
  %3551 = vmatpush1.msra.mxu0 0.0
  %3552 = vmatprep.subr.mxu0 0.0
  %3553 = vmatpush1.msra.mxu0 0.0
  %3554 = vmatprep.subr.mxu0 0.0
  %3555 = vmatpush1.msra.mxu0 0.0
  %3556 = vmatprep.mubr.f32.mxu0 0.0
  %3557 = vmatmul.mubr.f32.gmra.mrb[0].mxu0 %v3473
  %v3558 = vpop.f32.mrb[0].mxu0
  %v3559 = vadd.f32 0.0, %v3558
  %v3560 = vpop.f32.mrb[0].mxu0
  %v3561 = vadd.f32 0.0, %v3560
  %3562 = vdwg.mxu0
  %3563 = vmatprep.subr.mxu0 %v65
  %3564 = vmatpush1.msra.mxu0 %v64
  %3565 = vmatprep.subr.mxu0 %v69
  %3566 = vmatpush1.msra.mxu0 %v68
  %3567 = vmatprep.subr.mxu0 %v73
  %3568 = vmatpush1.msra.mxu0 %v72
  %3569 = vmatprep.subr.mxu0 %v77
  %3570 = vmatpush1.msra.mxu0 %v76
  %3571 = vmatprep.subr.mxu0 %v81
  %3572 = vmatpush1.msra.mxu0 %v80
  %3573 = vmatprep.subr.mxu0 %v85
  %3574 = vmatpush1.msra.mxu0 %v84
  %3575 = vmatprep.subr.mxu0 %v89
  %3576 = vmatpush1.msra.mxu0 %v88
  %3577 = vmatprep.subr.mxu0 %v93
  %3578 = vmatpush1.msra.mxu0 %v92
  %3579 = vmatprep.subr.mxu0 %v97
  %3580 = vmatpush1.msra.mxu0 %v96
  %3581 = vmatprep.subr.mxu0 %v101
  %3582 = vmatpush1.msra.mxu0 %v100
  %3583 = vmatprep.subr.mxu0 %v105
  %3584 = vmatpush1.msra.mxu0 %v104
  %3585 = vmatprep.subr.mxu0 %v109
  %3586 = vmatpush1.msra.mxu0 %v108
  %3587 = vmatprep.subr.mxu0 %v113
  %3588 = vmatpush1.msra.mxu0 %v112
  %3589 = vmatprep.subr.mxu0 %v117
  %3590 = vmatpush1.msra.mxu0 %v116
  %3591 = vmatprep.subr.mxu0 %v121
  %3592 = vmatpush1.msra.mxu0 %v120
  %3593 = vmatprep.subr.mxu0 %v125
  %3594 = vmatpush1.msra.mxu0 %v124
  %3595 = vmatprep.subr.mxu0 0.0
  %3596 = vmatpush1.msra.mxu0 0.0
  %3597 = vmatprep.subr.mxu0 0.0
  %3598 = vmatpush1.msra.mxu0 0.0
  %3599 = vmatprep.subr.mxu0 0.0
  %3600 = vmatpush1.msra.mxu0 0.0
  %3601 = vmatprep.subr.mxu0 0.0
  %3602 = vmatpush1.msra.mxu0 0.0
  %3603 = vmatprep.subr.mxu0 0.0
  %3604 = vmatpush1.msra.mxu0 0.0
  %3605 = vmatprep.subr.mxu0 0.0
  %3606 = vmatpush1.msra.mxu0 0.0
  %3607 = vmatprep.subr.mxu0 0.0
  %3608 = vmatpush1.msra.mxu0 0.0
  %3609 = vmatprep.subr.mxu0 0.0
  %3610 = vmatpush1.msra.mxu0 0.0
  %3611 = vmatprep.subr.mxu0 0.0
  %3612 = vmatpush1.msra.mxu0 0.0
  %3613 = vmatprep.subr.mxu0 0.0
  %3614 = vmatpush1.msra.mxu0 0.0
  %3615 = vmatprep.subr.mxu0 0.0
  %3616 = vmatpush1.msra.mxu0 0.0
  %3617 = vmatprep.subr.mxu0 0.0
  %3618 = vmatpush1.msra.mxu0 0.0
  %3619 = vmatprep.subr.mxu0 0.0
  %3620 = vmatpush1.msra.mxu0 0.0
  %3621 = vmatprep.subr.mxu0 0.0
  %3622 = vmatpush1.msra.mxu0 0.0
  %3623 = vmatprep.subr.mxu0 0.0
  %3624 = vmatpush1.msra.mxu0 0.0
  %3625 = vmatprep.subr.mxu0 0.0
  %3626 = vmatpush1.msra.mxu0 0.0
  %3627 = vmatprep.mubr.f32.mxu0 0.0
  %3628 = vmatmul.mubr.f32.gmra.mrb[0].mxu0 %v3473
  %v3629 = vpop.f32.mrb[0].mxu0
  %v3630 = vadd.f32 0.0, %v3629
  %v3631 = vpop.f32.mrb[0].mxu0
  %v3632 = vadd.f32 0.0, %v3631
  %3633 = vdwg.mxu0
  %v3634 = vadd.f32 %v3490, %v3559
  %v3635 = vadd.f32 %v3491, %v3561
  %v3636 = vxor.u32 %v3634, 2147483648
  %v3637 = vxor.u32 %v3635, 2147483648
  %v3638 = vmul.f32 %v3636, 1.442695
  %v3639 = vpow.pop %v3638
  %v3640 = vmul.f32 %v3637, 1.442695
  %v3641 = vpow.pop %v3640
  %v3642 = vadd.f32 %v3639, 1.0
  %v3643 = vadd.f32 %v3641, 1.0
  %v3644 = vrcp.pop %v3642
  %v3645 = vmul.f32 1.0, %v3644
  %v3646 = vrcp.pop %v3643
  %v3647 = vmul.f32 1.0, %v3646
  %v3648 = vtanh.pop %v3635
  %v3649 = vmul.f32 %v3645, %v3356
  %3651 = vrot.lane.b32.xlu0 %v3648, 64
  %v3652 = vpop.permute.xlu0 %3651
  %v3654 = vmul.f32 %v3645, %v3652
  %3656 = vrot.lane.b32.xlu0 %v3654, 64
  %v3657 = vpop.permute.xlu0 %3656
  %v3659 = vadd.f32 %v3649, %v3657
  %v3660 = vtanh.pop %v3659
  %3662 = vrot.lane.b32.xlu0 %v3660, 64
  %v3663 = vpop.permute.xlu0 %3662
  %v3665 = vmul.f32 %v3647, %v3663
  %v3667 = vsel %vm316, %v3665, 0
  %3669 = vmatprep.subr.mxu0 %v301
  %3670 = vmatpush1.msra.mxu0 %v300
  %3671 = vmatprep.subr.mxu0 %v303
  %3672 = vmatpush1.msra.mxu0 %v302
  %3673 = vmatprep.subr.mxu0 %v305
  %3674 = vmatpush1.msra.mxu0 %v304
  %3675 = vmatprep.subr.mxu0 %v307
  %3676 = vmatpush1.msra.mxu0 %v306
  %3677 = vmatprep.subr.mxu0 %v309
  %3678 = vmatpush1.msra.mxu0 %v308
  %3679 = vmatprep.subr.mxu0 %v311
  %3680 = vmatpush1.msra.mxu0 %v310
  %3681 = vmatprep.subr.mxu0 %v313
  %3682 = vmatpush1.msra.mxu0 %v312
  %3683 = vmatprep.subr.mxu0 %v315
  %3684 = vmatpush1.msra.mxu0 %v314
  %3685 = vmatprep.subr.mxu0 0.0
  %3686 = vmatpush1.msra.mxu0 0.0
  %3687 = vmatprep.subr.mxu0 0.0
  %3688 = vmatpush1.msra.mxu0 0.0
  %3689 = vmatprep.subr.mxu0 0.0
  %3690 = vmatpush1.msra.mxu0 0.0
  %3691 = vmatprep.subr.mxu0 0.0
  %3692 = vmatpush1.msra.mxu0 0.0
  %3693 = vmatprep.subr.mxu0 0.0
  %3694 = vmatpush1.msra.mxu0 0.0
  %3695 = vmatprep.subr.mxu0 0.0
  %3696 = vmatpush1.msra.mxu0 0.0
  %3697 = vmatprep.subr.mxu0 0.0
  %3698 = vmatpush1.msra.mxu0 0.0
  %3699 = vmatprep.subr.mxu0 0.0
  %3700 = vmatpush1.msra.mxu0 0.0
  %3701 = vmatprep.subr.mxu0 0.0
  %3702 = vmatpush1.msra.mxu0 0.0
  %3703 = vmatprep.subr.mxu0 0.0
  %3704 = vmatpush1.msra.mxu0 0.0
  %3705 = vmatprep.subr.mxu0 0.0
  %3706 = vmatpush1.msra.mxu0 0.0
  %3707 = vmatprep.subr.mxu0 0.0
  %3708 = vmatpush1.msra.mxu0 0.0
  %3709 = vmatprep.subr.mxu0 0.0
  %3710 = vmatpush1.msra.mxu0 0.0
  %3711 = vmatprep.subr.mxu0 0.0
  %3712 = vmatpush1.msra.mxu0 0.0
  %3713 = vmatprep.subr.mxu0 0.0
  %3714 = vmatpush1.msra.mxu0 0.0
  %3715 = vmatprep.subr.mxu0 0.0
  %3716 = vmatpush1.msra.mxu0 0.0
  %3717 = vmatprep.subr.mxu0 0.0
  %3718 = vmatpush1.msra.mxu0 0.0
  %3719 = vmatprep.subr.mxu0 0.0
  %3720 = vmatpush1.msra.mxu0 0.0
  %3721 = vmatprep.subr.mxu0 0.0
  %3722 = vmatpush1.msra.mxu0 0.0
  %3723 = vmatprep.subr.mxu0 0.0
  %3724 = vmatpush1.msra.mxu0 0.0
  %3725 = vmatprep.subr.mxu0 0.0
  %3726 = vmatpush1.msra.mxu0 0.0
  %3727 = vmatprep.subr.mxu0 0.0
  %3728 = vmatpush1.msra.mxu0 0.0
  %3729 = vmatprep.subr.mxu0 0.0
  %3730 = vmatpush1.msra.mxu0 0.0
  %3731 = vmatprep.subr.mxu0 0.0
  %3732 = vmatpush1.msra.mxu0 0.0
  %3733 = vmatprep.mubr.f32.mxu0 0.0
  %3734 = vmatmul.mubr.f32.gmra.mrb[0].mxu0 %v3667
  %v3735 = vpop.f32.mrb[0].mxu0
  %v3736 = vadd.f32 %v3630, %v3735
  %v3737 = vpop.f32.mrb[0].mxu0
  %v3738 = vadd.f32 %v3632, %v3737
  %3739 = vdwg.mxu0
  %v3740 = vadd.f32 %v3736, %v49
  %v3741 = vadd.f32 %v3738, %v53
  %v3742 = vxor.u32 %v3740, 2147483648
  %v3743 = vxor.u32 %v3741, 2147483648
  %v3744 = vmul.f32 %v3742, 1.442695
  %v3745 = vpow.pop %v3744
  %v3746 = vmul.f32 %v3743, 1.442695
  %v3747 = vpow.pop %v3746
  %v3748 = vadd.f32 %v3745, 1.0
  %v3749 = vadd.f32 %v3747, 1.0
  %v3750 = vrcp.pop %v3748
  %v3751 = vmul.f32 1.0, %v3750
  %v3752 = vrcp.pop %v3749
  %v3753 = vmul.f32 1.0, %v3752
  %v3754 = vtanh.pop %v3741
  %v3755 = vmul.f32 %v3751, %v3462
  %3757 = vrot.lane.b32.xlu0 %v3754, 64
  %v3758 = vpop.permute.xlu0 %3757
  %v3760 = vmul.f32 %v3751, %v3758
  %3762 = vrot.lane.b32.xlu0 %v3760, 64
  %v3763 = vpop.permute.xlu0 %3762
  %v3765 = vadd.f32 %v3755, %v3763
  %v3766 = vtanh.pop %v3765
  %3768 = vrot.lane.b32.xlu0 %v3766, 64
  %v3769 = vpop.permute.xlu0 %3768
  %v3771 = vmul.f32 %v3753, %v3769
  %v3772 = vmul.f32 %v3771, %v432
  %v3773 = vsel %vm316, %v3772, 0.0
  %3774 = vadd.xlane.f32.xlu0 %v3773
  %v3775 = vpop.xlane.xlu0 %3774
  %v3776 = vadd.f32 %v3775, %v442
  %vm3777 = vcmp.eq.s32.totalorder %v59, 11
  %v3778 = vsel %vm3777, 1, 0
  %vm3779 = vcmp.eq.s32.totalorder %v3778, 1
  %3781 = vset.pattern.permute.xlu0 0
  %3782 = vperm.xlu0 %3781, %v3776
  %v3783 = vpop.permute.xlu0 %3782
  %v3785 = vsel %vm3779, %v3783, %v3487
  %3786 = vst [vmem:[%s8] sm:$0xff] %v3785
  // Predicated region
  $region34: #{sequence_forward.1} parent=0 // pred_check
    _
  $region35: #{sequence_forward.1} parent=0 // pred_check_branch
    %3788 = sbr.rel (0) target = $region37
  $region36: #{sequence_forward.1} parent=0 // pred_region
    _
  $region37: #{sequence_forward.1} parent=0 // pred_fallthru
    _
  // Predicated region
  $region38: #{sequence_forward.1} parent=0 // pred_check
    _
  $region39: #{sequence_forward.1} parent=0 // pred_check_branch
    %3790 = sbr.rel (0) target = $region41
  $region40: #{sequence_forward.1} parent=0 // pred_region
    _
  $region41: #{sequence_forward.1} parent=0 // pred_fallthru
    _

</llo_original>
